<compile_context>
chip_gen: v5e
topology: v5e:2x2
jax: 0.10.0
libtpu: 0.0.40
codegen_flags: <defaults>
</compile_context>

<pallas_src>
import functools

import jax
import jax.numpy as jnp
import numpy as np
from jax.experimental import pallas as pl
from jax.experimental.pallas import tpu as pltpu

LANE = 128  # TPU lane width; vocab and head-output columns are padded to this.
MIB = 1024 * 1024


def _vmem_capacity_bytes() -> int:
    cap = 128 * MIB
    try:
        cap = int(getattr(pltpu.get_tpu_info(), "vmem_capacity_bytes", cap) or cap)
    except Exception:
        pass
    return cap


def _vmem_limit_bytes() -> int:
    # Generation-aware scoped VMEM: ~96 MiB on 128 MiB parts (v5e/v6e), ~48 MiB
    # on 64 MiB/TC parts (v7x), always leaving >=16 MiB compiler headroom.
    return int(min(_vmem_capacity_bytes() - 16 * MIB, 96 * MIB))


def choose_tile_l(L: int) -> int:
    """Generation-aware L tile: ~512 rows on 64 MiB-VMEM parts (v7x), ~1024 on
    128 MiB parts (v5e/v6e); largest multiple of 16 that divides L."""
    target = 512 if _vmem_capacity_bytes() <= 64 * MIB else 1024
    for t in range(min(target, L), 15, -16):
        if L % t == 0:
            return t
    return L


# -----------------------------------------------------------------------------
# Fused kernel: embedding lookup + Hyena-style block + token-classification head
# -----------------------------------------------------------------------------
def _fused_backbone_head_kernel(
    ids_ref, q_ref,
    emb_ref, w_in_ref, b_in_ref, filt_ref, w_out_ref, b_out_ref,
    w_cls_ref, w_q_ref, b_cls_ref,
    o_ref,
    vcarry_ref,
):
    """One grid step = one (TILE_L,) id slab of one batch element -> bf16 logits.

    ids_ref:   (TL, 1)   int32 token ids
    q_ref:     (TL, 1)   f32 per-token quality
    emb_ref:   (Vp, D)   bf16 embedding table (vocab padded to 128)
    w_in_ref:  (D, 3D)   bf16 fused in-projection, b_in_ref: (1, 3D) f32
    filt_ref:  (3, D)    f32 causal depthwise conv filter (width 3)
    w_out_ref: (D, D)    bf16, b_out_ref: (1, D) f32
    w_cls_ref: (D, CP)   bf16 (CP = classes padded to 128), w_q/b_cls: (1, CP) f32
    o_ref:     (TL, CP)  bf16 padded logits
    vcarry_ref:(2, D)    f32 scratch: last two v rows of the previous L tile

    NOTE: correctness of the conv carry requires the L grid axis to be the
    innermost axis, iterated in order per batch element (grid=(B, L//TL) with
    L marked "arbitrary"); under "parallel" B sharding each core owns its own
    scratch, so the carry stays per-(core, batch-element).
    """
    lt = pl.program_id(1)

    # Reset the conv carry at the first L tile of every batch element.
    @pl.when(lt == 0)
    def _():
        vcarry_ref[...] = jnp.zeros_like(vcarry_ref)

    prev = vcarry_ref[...]                 # (2, D): [v[t-2], v[t-1]] of prev tile

    tl = ids_ref.shape[0]
    vpad, d = emb_ref.shape

    # In-kernel embedding lookup: exact one-hot (TL, Vp) @ (Vp, D) on the MXU
    # (vocab is tiny for HyenaDNA, so this replaces the HBM round-trip of an
    # XLA gather with a cheap matmul).
    ids = ids_ref[...]                                              # (TL, 1) i32
    tok_iota = jax.lax.broadcasted_iota(jnp.int32, (tl, vpad), 1)
    onehot = jnp.where(tok_iota == ids, 1.0, 0.0).astype(jnp.bfloat16)
    u = jnp.dot(onehot, emb_ref[...],
                preferred_element_type=jnp.float32)                 # (TL, D) f32
    u_bf = u.astype(jnp.bfloat16)          # exact (values are bf16 table rows)

    # Fused in-projection: one (TL, D) @ (D, 3D) dot, bf16 operands, f32 acc.
    # Slices at D boundaries are whole-vreg selections when D % 128 == 0.
    xin = jnp.dot(u_bf, w_in_ref[...],
                  preferred_element_type=jnp.float32) + b_in_ref[...]
    x1 = xin[:, 0:d]
    x2 = xin[:, d:2 * d]
    v = xin[:, 2 * d:3 * d]

    # Causal depthwise conv (width 3) with 2-row carry across L tiles.
    # Shifts go to the XLU via pltpu.roll; first 1-2 rows take the carried rows.
    row = jax.lax.broadcasted_iota(jnp.int32, (tl, d), 0)
    r1 = pltpu.roll(v, shift=1, axis=0)
    r2 = pltpu.roll(v, shift=2, axis=0)
    prev0 = prev[0:1, :]                   # v[t-2] for local row 0
    prev1 = prev[1:2, :]                   # v[t-1] for row 0 / v[t-2] for row 1
    v1 = jnp.where(row >= 1, r1, prev1)
    v2 = jnp.where(row >= 2, r2, jnp.where(row >= 1, prev1, prev0))

    f = filt_ref[...]                      # (3, D)
    y = v * f[0:1, :] + v1 * f[1:2, :] + v2 * f[2:3, :]

    # Carry the last two v rows into the next L tile of this batch element.
    vcarry_ref[...] = v[tl - 2:tl, :]

    # Gating + output projection + residual.  Elementwise math stays f32
    # (v5e has no bf16 VPU/EUP; on v6e/v7x a bf16 gating chain is optional).
    gated = x1 * jax.nn.silu(x2 * y)
    out = jnp.dot(gated.astype(jnp.bfloat16), w_out_ref[...],
                  preferred_element_type=jnp.float32) + b_out_ref[...]
    hidden = u + out

    # Fused token-classification head (lane-dense, classes padded to CP):
    #   logits = concat([hidden, quals], -1) @ W + b
    #          = hidden @ W_h + quals * w_q + b   (no concat materialized)
    logits = jnp.dot(hidden.astype(jnp.bfloat16), w_cls_ref[...],
                     preferred_element_type=jnp.float32)
    o_ref[...] = (logits + q_ref[...] * w_q_ref[...]
                  + b_cls_ref[...]).astype(o_ref.dtype)


# -----------------------------------------------------------------------------
# pallas_call plumbing
# -----------------------------------------------------------------------------
def _const_spec(shape):
    """BlockSpec for a weight that is identical at every grid step.

    Requests single buffering (no double buffer needed for constant-index
    inputs); falls back to a plain spec if pipeline_mode/Buffered(1) is
    unavailable in this JAX version.
    """
    rep = lambda b, l: (0,) * len(shape)
    try:
        return pl.BlockSpec(shape, rep, pipeline_mode=pl.Buffered(1))
    except Exception:
        return pl.BlockSpec(shape, rep)


def fused_backbone_and_head(ids3, q3, params, *, tile_l):
    B, L, _ = ids3.shape
    VP, D = params["emb_pad"].shape
    CP = params["w_cls_pad"].shape[1]
    assert L % tile_l == 0, "tile_l must divide L"
    # bf16 output block => sublane packing of 16 rows.
    assert tile_l % 16 == 0 or tile_l == L, "tile_l must be a multiple of 16"
    assert tile_l >= 2

    grid = (B, L // tile_l)

    # Advisory cost hint for XLA scheduling around this custom call.
    flops = 2 * B * L * (VP * D + 3 * D * D + D * D + D * CP) + 12 * B * L * D
    transcendentals = B * L * D
    bytes_accessed = (
        B * L * 4                                   # ids (int32)
        + B * L * 4                                 # quals (f32)
        + (VP * D + 4 * D * D + D * CP) * 2         # bf16 table + weights
        + (3 * D + 3 * D + D + 2 * CP) * 4          # f32 filter / biases
        + B * L * CP * 2                            # bf16 padded logits out
    )

    return pl.pallas_call(
        _fused_backbone_head_kernel,
        out_shape=jax.ShapeDtypeStruct((B, L, CP), jnp.bfloat16),
        grid_spec=pltpu.PrefetchScalarGridSpec(
            num_scalar_prefetch=0,
            grid=grid,
            in_specs=[
                pl.BlockSpec((None, tile_l, 1), lambda b, l: (b, l, 0)),   # ids
                pl.BlockSpec((None, tile_l, 1), lambda b, l: (b, l, 0)),   # quals
                _const_spec((VP, D)),                                      # emb table
                _const_spec((D, 3 * D)),                                   # w_in
                _const_spec((1, 3 * D)),                                   # b_in
                _const_spec((3, D)),                                       # filt
                _const_spec((D, D)),                                       # w_out
                _const_spec((1, D)),                                       # b_out
                _const_spec((D, CP)),                                      # w_cls (pad)
                _const_spec((1, CP)),                                      # w_q   (pad)
                _const_spec((1, CP)),                                      # b_cls (pad)
            ],
            out_specs=pl.BlockSpec((None, tile_l, CP), lambda b, l: (b, l, 0)),
            scratch_shapes=[pltpu.VMEM((2, D), jnp.float32)],              # conv carry
        ),
        compiler_params=pltpu.CompilerParams(
            # B parallel (megacore / v7x dual-TC); L MUST stay "arbitrary"
            # (in-order, innermost) because of the conv carry scratch.
            dimension_semantics=("parallel", "arbitrary"),
            vmem_limit_bytes=_vmem_limit_bytes(),
        ),
        cost_estimate=pl.CostEstimate(
            flops=int(flops),
            transcendentals=int(transcendentals),
            bytes_accessed=int(bytes_accessed),
        ),
    )(ids3, q3,
      params["emb_pad"], params["w_in"], params["b_in"], params["filt"],
      params["w_out"], params["b_out"],
      params["w_cls_pad"], params["w_q_pad"], params["b_cls_pad"])


# -----------------------------------------------------------------------------
# Parameter init (deterministic) and full forward
# -----------------------------------------------------------------------------
def init_params(key, vocab_size, d_model, num_classes):
    ks = jax.random.split(key, 8)
    sd = 1.0 / float(np.sqrt(d_model))
    vp = ((vocab_size + LANE - 1) // LANE) * LANE    # lane-dense padded vocab
    cp = ((num_classes + LANE - 1) // LANE) * LANE   # lane-dense padded classes

    emb = jax.random.normal(ks[0], (vocab_size, d_model), jnp.float32) * 0.02
    emb_pad = jnp.zeros((vp, d_model), jnp.float32).at[:vocab_size].set(emb)

    w_in = jax.random.normal(ks[1], (d_model, 3 * d_model), jnp.float32) * sd
    w_cls = jax.random.normal(ks[4], (d_model, num_classes), jnp.float32) * sd
    w_q = jax.random.normal(ks[5], (1, num_classes), jnp.float32) * sd

    w_cls_pad = jnp.zeros((d_model, cp), jnp.float32).at[:, :num_classes].set(w_cls)
    w_q_pad = jnp.zeros((1, cp), jnp.float32).at[:, :num_classes].set(w_q)
    b_cls_pad = jnp.zeros((1, cp), jnp.float32)

    return {
        # bf16 MXU operands (halves weight HBM traffic); biases, filter and all
        # elementwise math stay f32 (v5e-safe).
        "emb_pad": emb_pad.astype(jnp.bfloat16),
        "w_in": w_in.astype(jnp.bfloat16),
        "b_in": jnp.zeros((1, 3 * d_model), jnp.float32),
        "filt": jax.random.normal(ks[2], (3, d_model), jnp.float32) * 0.5,
        "w_out": (jax.random.normal(ks[3], (d_model, d_model), jnp.float32)
                  * sd).astype(jnp.bfloat16),
        "b_out": jnp.zeros((1, d_model), jnp.float32),
        "w_cls_pad": w_cls_pad.astype(jnp.bfloat16),
        "w_q_pad": w_q_pad,
        "b_cls_pad": b_cls_pad,
    }


@functools.partial(jax.jit, static_argnames=("num_classes", "tile_l"))
def token_classification_forward(params, input_ids, input_quals, *,
                                 num_classes, tile_l):
    """forward(input_ids, input_quals) -> per-token logits (B, L, num_classes).

    Logits are returned in bf16 (lane-dense kernel output, halved writeback);
    consumers (softmax / cross-entropy) should upcast as needed.
    """
    B, L = input_ids.shape
    ids3 = input_ids.reshape(B, L, 1).astype(jnp.int32)
    q3 = input_quals.reshape(B, L, 1).astype(jnp.float32)
    logits_pad = fused_backbone_and_head(ids3, q3, params, tile_l=tile_l)
    # Cheap bf16 un-pad; a downstream consumer could also take padded logits.
    return logits_pad[..., :num_classes]


# -----------------------------------------------------------------------------
# Pure-JAX reference (same bf16-operand / f32-accumulate / bf16-output math)
# -----------------------------------------------------------------------------
def _reference_forward(params, input_ids, input_quals, num_classes):
    def dot_bf(a, w):
        return jnp.dot(a.astype(jnp.bfloat16), w,
                       preferred_element_type=jnp.float32)

    emb = jnp.take(params["emb_pad"], input_ids, axis=0)     # (B, L, D) bf16
    u = emb.astype(jnp.float32)
    D = u.shape[-1]

    xin = dot_bf(emb, params["w_in"]) + params["b_in"]
    x1, x2, v = xin[..., :D], xin[..., D:2 * D], xin[..., 2 * D:]

    v1 = jnp.concatenate([jnp.zeros_like(v[:, :1]), v[:, :-1]], axis=1)
    v2 = jnp.concatenate([jnp.zeros_like(v[:, :2]), v[:, :-2]], axis=1)
    f = params["filt"]
    y = v * f[0] + v1 * f[1] + v2 * f[2]

    gated = x1 * jax.nn.silu(x2 * y)
    hidden = u + dot_bf(gated, params["w_out"]) + params["b_out"]

    B, L = input_ids.shape
    q3 = input_quals.reshape(B, L, 1).astype(jnp.float32)
    logits = (dot_bf(hidden, params["w_cls_pad"])
              + q3 * params["w_q_pad"] + params["b_cls_pad"])
    return logits[..., :num_classes].astype(jnp.bfloat16)


if __name__ == "__main__":
    # Small but layout-friendly demo shapes: D a multiple of 128 (lane-aligned
    # fused in-proj slices), TILE_L = 256 so there are two L tiles per batch
    # element and the cross-tile conv carry is exercised.  Production use
    # would pick tile_l = choose_tile_l(L).
    B, L, D = 2, 512, 128
    VOCAB, NUM_CLASSES = 16, 3
    TILE_L = 256

    key = jax.random.PRNGKey(0)
    k_ids, k_quals, k_params = jax.random.split(key, 3)

    input_ids = jax.random.randint(k_ids, (B, L), 0, VOCAB, dtype=jnp.int32)
    input_quals = jax.random.uniform(k_quals, (B, L), dtype=jnp.float32)

    params = init_params(k_params, VOCAB, D, NUM_CLASSES)

    logits = token_classification_forward(params, input_ids, input_quals,
                                          num_classes=NUM_CLASSES, tile_l=TILE_L)
    jax.block_until_ready(logits)

    assert logits.shape == (B, L, NUM_CLASSES)
    assert logits.dtype == jnp.bfloat16

    # Sanity check vs a pure-JAX reference using identical precision choices
    # (bf16 operands, f32 accumulation, bf16 output quantization).
    ref = _reference_forward(params, input_ids, input_quals, NUM_CLASSES)
    np.testing.assert_allclose(np.asarray(logits, dtype=np.float32),
                               np.asarray(ref, dtype=np.float32),
                               atol=1e-2, rtol=1e-2)

    print("KERNEL_OK")
</pallas_src>

<mosaic_0001>
module attributes {stable_mosaic.version = 11 : i64} {
  func.func @_fused_backbone_head_kernel(%arg0: i32, %arg1: i32, %arg2: memref<1x256x1xi32, #tpu.memory_space<vmem>>, %arg3: memref<1x256x1xf32, #tpu.memory_space<vmem>>, %arg4: memref<128x128xbf16, #tpu.memory_space<vmem>>, %arg5: memref<128x384xbf16, #tpu.memory_space<vmem>>, %arg6: memref<1x384xf32, #tpu.memory_space<vmem>>, %arg7: memref<3x128xf32, #tpu.memory_space<vmem>>, %arg8: memref<128x128xbf16, #tpu.memory_space<vmem>>, %arg9: memref<1x128xf32, #tpu.memory_space<vmem>>, %arg10: memref<128x128xbf16, #tpu.memory_space<vmem>>, %arg11: memref<1x128xf32, #tpu.memory_space<vmem>>, %arg12: memref<1x128xf32, #tpu.memory_space<vmem>>, %arg13: memref<1x256x128xbf16, #tpu.memory_space<vmem>>, %arg14: memref<2x128xf32, #tpu.memory_space<vmem>>) attributes {dimension_semantics = [#tpu.dimension_semantics<parallel>, #tpu.dimension_semantics<arbitrary>], iteration_bounds = array<i64: 2, 2>, scalar_prefetch = 0 : i64, scratch_operands = 1 : i64, tpu.core_type = #tpu.core_type<tc>, window_params = [{transform_indices = @transform_0, window_bounds = array<i64: 1, 256, 1>}, {transform_indices = @transform_1, window_bounds = array<i64: 1, 256, 1>}, {pipeline_mode = #tpu.pipeline_mode<synchronous>, transform_indices = @transform_2, window_bounds = array<i64: 128, 128>}, {pipeline_mode = #tpu.pipeline_mode<synchronous>, transform_indices = @transform_3, window_bounds = array<i64: 128, 384>}, {pipeline_mode = #tpu.pipeline_mode<synchronous>, transform_indices = @transform_4, window_bounds = array<i64: 1, 384>}, {pipeline_mode = #tpu.pipeline_mode<synchronous>, transform_indices = @transform_5, window_bounds = array<i64: 3, 128>}, {pipeline_mode = #tpu.pipeline_mode<synchronous>, transform_indices = @transform_6, window_bounds = array<i64: 128, 128>}, {pipeline_mode = #tpu.pipeline_mode<synchronous>, transform_indices = @transform_7, window_bounds = array<i64: 1, 128>}, {pipeline_mode = #tpu.pipeline_mode<synchronous>, transform_indices = @transform_8, window_bounds = array<i64: 128, 128>}, {pipeline_mode = #tpu.pipeline_mode<synchronous>, transform_indices = @transform_9, window_bounds = array<i64: 1, 128>}, {pipeline_mode = #tpu.pipeline_mode<synchronous>, transform_indices = @transform_10, window_bounds = array<i64: 1, 128>}, {transform_indices = @transform_11, window_bounds = array<i64: 1, 256, 128>}]} {
    %c0_i32 = arith.constant 0 : i32
    %0 = arith.cmpi eq, %arg1, %c0_i32 : i32
    %1 = arith.extui %0 : i1 to i32
    %c0_i32_0 = arith.constant 0 : i32
    %2 = arith.cmpi ne, %1, %c0_i32_0 : i32
    scf.if %2 {
      %cst_40 = arith.constant 0.000000e+00 : f32
      %90 = vector.broadcast %cst_40 : f32 to vector<2x128xf32>
      %c0_41 = arith.constant 0 : index
      %c0_42 = arith.constant 0 : index
      %91 = vector.load %arg14[%c0_41, %c0_42] : memref<2x128xf32, #tpu.memory_space<vmem>>, vector<2x128xf32>
      tpu.vector_store %arg14[%c0_41, %c0_42], %90 {strides = array<i32>} : memref<2x128xf32, #tpu.memory_space<vmem>>, vector<2x128xf32>,
    } else {
    }
    %c0 = arith.constant 0 : index
    %c0_1 = arith.constant 0 : index
    %3 = vector.load %arg14[%c0, %c0_1] : memref<2x128xf32, #tpu.memory_space<vmem>>, vector<2x128xf32>
    %c0_2 = arith.constant 0 : index
    %c0_3 = arith.constant 0 : index
    %c0_4 = arith.constant 0 : index
    %4 = vector.load %arg2[%c0_2, %c0_3, %c0_4] : memref<1x256x1xi32, #tpu.memory_space<vmem>>, vector<1x256x1xi32>
    %5 = vector.shape_cast %4 : vector<1x256x1xi32> to vector<256x1xi32>
    %6 = tpu.iota {dimensions = array<i32: 1>} : vector<256x128xi32>
    %7 = vector.broadcast %5 : vector<256x1xi32> to vector<256x128xi32>
    %8 = arith.cmpi eq, %6, %7 : vector<256x128xi32>
    %cst = arith.constant 1.000000e+00 : f32
    %cst_5 = arith.constant 0.000000e+00 : f32
    %9 = vector.broadcast %cst : f32 to vector<256x128xf32>
    %10 = vector.broadcast %cst_5 : f32 to vector<256x128xf32>
    %11 = arith.select %8, %9, %10 : vector<256x128xi1>, vector<256x128xf32>
    %12 = arith.truncf %11 : vector<256x128xf32> to vector<256x128xbf16>
    %c0_6 = arith.constant 0 : index
    %c0_7 = arith.constant 0 : index
    %13 = vector.load %arg4[%c0_6, %c0_7] : memref<128x128xbf16, #tpu.memory_space<vmem>>, vector<128x128xbf16>
    %cst_8 = arith.constant dense<0.000000e+00> : vector<256x128xf32>
    %14 = tpu.matmul %12, %13, %cst_8 {dimension_numbers = #tpu.dot_dimension_numbers<[1], [0], [0], [1], [0, 0, 1, 1], [], []>} : vector<256x128xbf16>, vector<128x128xbf16>, vector<256x128xf32> -> vector<256x128xf32>
    %15 = arith.truncf %14 : vector<256x128xf32> to vector<256x128xbf16>
    %c0_9 = arith.constant 0 : index
    %c0_10 = arith.constant 0 : index
    %16 = vector.load %arg5[%c0_9, %c0_10] : memref<128x384xbf16, #tpu.memory_space<vmem>>, vector<128x384xbf16>
    %cst_11 = arith.constant dense<0.000000e+00> : vector<256x384xf32>
    %17 = tpu.matmul %15, %16, %cst_11 {dimension_numbers = #tpu.dot_dimension_numbers<[1], [0], [0], [1], [0, 0, 1, 1], [], []>} : vector<256x128xbf16>, vector<128x384xbf16>, vector<256x384xf32> -> vector<256x384xf32>
    %c0_12 = arith.constant 0 : index
    %c0_13 = arith.constant 0 : index
    %18 = vector.load %arg6[%c0_12, %c0_13] : memref<1x384xf32, #tpu.memory_space<vmem>>, vector<1x384xf32>
    %19 = vector.broadcast %18 : vector<1x384xf32> to vector<256x384xf32>
    %20 = arith.addf %17, %19 : vector<256x384xf32>
    %21 = vector.extract_strided_slice %20 {offsets = [0, 0], sizes = [256, 128], strides = [1, 1]} : vector<256x384xf32> to vector<256x128xf32>
    %22 = vector.extract_strided_slice %20 {offsets = [0, 128], sizes = [256, 128], strides = [1, 1]} : vector<256x384xf32> to vector<256x128xf32>
    %23 = vector.extract_strided_slice %20 {offsets = [0, 256], sizes = [256, 128], strides = [1, 1]} : vector<256x384xf32> to vector<256x128xf32>
    %24 = tpu.iota {dimensions = array<i32: 0>} : vector<256x128xi32>
    %c1_i32 = arith.constant 1 : i32
    %25 = tpu.dynamic_rotate %23 by %c1_i32 dim 0 : vector<256x128xf32>, i32 -> vector<256x128xf32>
    %c2_i32 = arith.constant 2 : i32
    %26 = tpu.dynamic_rotate %23 by %c2_i32 dim 0 : vector<256x128xf32>, i32 -> vector<256x128xf32>
    %27 = vector.extract_strided_slice %3 {offsets = [0, 0], sizes = [1, 128], strides = [1, 1]} : vector<2x128xf32> to vector<1x128xf32>
    %28 = vector.extract_strided_slice %3 {offsets = [1, 0], sizes = [1, 128], strides = [1, 1]} : vector<2x128xf32> to vector<1x128xf32>
    %c1_i32_14 = arith.constant 1 : i32
    %29 = vector.broadcast %c1_i32_14 : i32 to vector<256x128xi32>
    %30 = arith.cmpi sge, %24, %29 : vector<256x128xi32>
    %31 = vector.shape_cast %28 : vector<1x128xf32> to vector<1x128xf32>
    %32 = vector.broadcast %31 : vector<1x128xf32> to vector<256x128xf32>
    %33 = arith.select %30, %25, %32 : vector<256x128xi1>, vector<256x128xf32>
    %c2_i32_15 = arith.constant 2 : i32
    %34 = vector.broadcast %c2_i32_15 : i32 to vector<256x128xi32>
    %35 = arith.cmpi sge, %24, %34 : vector<256x128xi32>
    %c1_i32_16 = arith.constant 1 : i32
    %36 = vector.broadcast %c1_i32_16 : i32 to vector<256x128xi32>
    %37 = arith.cmpi sge, %24, %36 : vector<256x128xi32>
    %38 = vector.shape_cast %28 : vector<1x128xf32> to vector<1x128xf32>
    %39 = vector.broadcast %38 : vector<1x128xf32> to vector<256x128xf32>
    %40 = vector.shape_cast %27 : vector<1x128xf32> to vector<1x128xf32>
    %41 = vector.broadcast %40 : vector<1x128xf32> to vector<256x128xf32>
    %42 = arith.select %37, %39, %41 : vector<256x128xi1>, vector<256x128xf32>
    %43 = arith.select %35, %26, %42 : vector<256x128xi1>, vector<256x128xf32>
    %c0_17 = arith.constant 0 : index
    %c0_18 = arith.constant 0 : index
    %44 = vector.load %arg7[%c0_17, %c0_18] : memref<3x128xf32, #tpu.memory_space<vmem>>, vector<3x128xf32>
    %45 = vector.extract_strided_slice %44 {offsets = [0, 0], sizes = [1, 128], strides = [1, 1]} : vector<3x128xf32> to vector<1x128xf32>
    %46 = vector.broadcast %45 : vector<1x128xf32> to vector<256x128xf32>
    %47 = arith.mulf %23, %46 : vector<256x128xf32>
    %48 = vector.extract_strided_slice %44 {offsets = [1, 0], sizes = [1, 128], strides = [1, 1]} : vector<3x128xf32> to vector<1x128xf32>
    %49 = vector.broadcast %48 : vector<1x128xf32> to vector<256x128xf32>
    %50 = arith.mulf %33, %49 : vector<256x128xf32>
    %51 = arith.addf %47, %50 : vector<256x128xf32>
    %52 = vector.extract_strided_slice %44 {offsets = [2, 0], sizes = [1, 128], strides = [1, 1]} : vector<3x128xf32> to vector<1x128xf32>
    %53 = vector.broadcast %52 : vector<1x128xf32> to vector<256x128xf32>
    %54 = arith.mulf %43, %53 : vector<256x128xf32>
    %55 = arith.addf %51, %54 : vector<256x128xf32>
    %56 = vector.extract_strided_slice %23 {offsets = [254, 0], sizes = [2, 128], strides = [1, 1]} : vector<256x128xf32> to vector<2x128xf32>
    %c0_19 = arith.constant 0 : index
    %c0_20 = arith.constant 0 : index
    %57 = vector.load %arg14[%c0_19, %c0_20] : memref<2x128xf32, #tpu.memory_space<vmem>>, vector<2x128xf32>
    tpu.vector_store %arg14[%c0_19, %c0_20], %56 {strides = array<i32>} : memref<2x128xf32, #tpu.memory_space<vmem>>, vector<2x128xf32>,
    %58 = arith.mulf %22, %55 : vector<256x128xf32>
    %59 = arith.negf %58 : vector<256x128xf32>
    %60 = math.exp %59 : vector<256x128xf32>
    %cst_21 = arith.constant 1.000000e+00 : f32
    %61 = vector.broadcast %cst_21 : f32 to vector<256x128xf32>
    %62 = arith.addf %61, %60 : vector<256x128xf32>
    %63 = arith.divf %61, %62 : vector<256x128xf32>
    %64 = arith.mulf %58, %63 : vector<256x128xf32>
    %65 = arith.mulf %21, %64 : vector<256x128xf32>
    %66 = arith.truncf %65 : vector<256x128xf32> to vector<256x128xbf16>
    %c0_22 = arith.constant 0 : index
    %c0_23 = arith.constant 0 : index
    %67 = vector.load %arg8[%c0_22, %c0_23] : memref<128x128xbf16, #tpu.memory_space<vmem>>, vector<128x128xbf16>
    %cst_24 = arith.constant dense<0.000000e+00> : vector<256x128xf32>
    %68 = tpu.matmul %66, %67, %cst_24 {dimension_numbers = #tpu.dot_dimension_numbers<[1], [0], [0], [1], [0, 0, 1, 1], [], []>} : vector<256x128xbf16>, vector<128x128xbf16>, vector<256x128xf32> -> vector<256x128xf32>
    %c0_25 = arith.constant 0 : index
    %c0_26 = arith.constant 0 : index
    %69 = vector.load %arg9[%c0_25, %c0_26] : memref<1x128xf32, #tpu.memory_space<vmem>>, vector<1x128xf32>
    %70 = vector.broadcast %69 : vector<1x128xf32> to vector<256x128xf32>
    %71 = arith.addf %68, %70 : vector<256x128xf32>
    %72 = arith.addf %14, %71 : vector<256x128xf32>
    %73 = arith.truncf %72 : vector<256x128xf32> to vector<256x128xbf16>
    %c0_27 = arith.constant 0 : index
    %c0_28 = arith.constant 0 : index
    %74 = vector.load %arg10[%c0_27, %c0_28] : memref<128x128xbf16, #tpu.memory_space<vmem>>, vector<128x128xbf16>
    %cst_29 = arith.constant dense<0.000000e+00> : vector<256x128xf32>
    %75 = tpu.matmul %73, %74, %cst_29 {dimension_numbers = #tpu.dot_dimension_numbers<[1], [0], [0], [1], [0, 0, 1, 1], [], []>} : vector<256x128xbf16>, vector<128x128xbf16>, vector<256x128xf32> -> vector<256x128xf32>
    %c0_30 = arith.constant 0 : index
    %c0_31 = arith.constant 0 : index
    %c0_32 = arith.constant 0 : index
    %76 = vector.load %arg3[%c0_30, %c0_31, %c0_32] : memref<1x256x1xf32, #tpu.memory_space<vmem>>, vector<1x256x1xf32>
    %77 = vector.shape_cast %76 : vector<1x256x1xf32> to vector<256x1xf32>
    %c0_33 = arith.constant 0 : index
    %c0_34 = arith.constant 0 : index
    %78 = vector.load %arg11[%c0_33, %c0_34] : memref<1x128xf32, #tpu.memory_space<vmem>>, vector<1x128xf32>
    %79 = vector.broadcast %77 : vector<256x1xf32> to vector<256x128xf32>
    %80 = vector.broadcast %78 : vector<1x128xf32> to vector<256x128xf32>
    %81 = arith.mulf %79, %80 : vector<256x128xf32>
    %82 = arith.addf %75, %81 : vector<256x128xf32>
    %c0_35 = arith.constant 0 : index
    %c0_36 = arith.constant 0 : index
    %83 = vector.load %arg12[%c0_35, %c0_36] : memref<1x128xf32, #tpu.memory_space<vmem>>, vector<1x128xf32>
    %84 = vector.broadcast %83 : vector<1x128xf32> to vector<256x128xf32>
    %85 = arith.addf %82, %84 : vector<256x128xf32>
    %86 = arith.truncf %85 : vector<256x128xf32> to vector<256x128xbf16>
    %c0_37 = arith.constant 0 : index
    %c0_38 = arith.constant 0 : index
    %c0_39 = arith.constant 0 : index
    %87 = vector.load %arg13[%c0_37, %c0_38, %c0_39] : memref<1x256x128xbf16, #tpu.memory_space<vmem>>, vector<1x256x128xbf16>
    %88 = vector.shape_cast %87 : vector<1x256x128xbf16> to vector<256x128xbf16>
    %89 = vector.shape_cast %86 : vector<256x128xbf16> to vector<1x256x128xbf16>
    tpu.vector_store %arg13[%c0_37, %c0_38, %c0_39], %89 {strides = array<i32>} : memref<1x256x128xbf16, #tpu.memory_space<vmem>>, vector<1x256x128xbf16>,
    return
  }
  func.func @transform_0(%arg0: i32, %arg1: i32) -> (i32, i32, i32) {
    %c0_i32 = arith.constant 0 : i32
    %c0_i32_0 = arith.constant 0 : i32
    return %arg0, %arg1, %c0_i32 : i32, i32, i32
  }
  func.func @transform_1(%arg0: i32, %arg1: i32) -> (i32, i32, i32) {
    %c0_i32 = arith.constant 0 : i32
    %c0_i32_0 = arith.constant 0 : i32
    return %arg0, %arg1, %c0_i32 : i32, i32, i32
  }
  func.func @transform_2(%arg0: i32, %arg1: i32) -> (i32, i32) {
    %c0_i32 = arith.constant 0 : i32
    %c0_i32_0 = arith.constant 0 : i32
    %c0_i32_1 = arith.constant 0 : i32
    return %c0_i32, %c0_i32_0 : i32, i32
  }
  func.func @transform_3(%arg0: i32, %arg1: i32) -> (i32, i32) {
    %c0_i32 = arith.constant 0 : i32
    %c0_i32_0 = arith.constant 0 : i32
    %c0_i32_1 = arith.constant 0 : i32
    return %c0_i32, %c0_i32_0 : i32, i32
  }
  func.func @transform_4(%arg0: i32, %arg1: i32) -> (i32, i32) {
    %c0_i32 = arith.constant 0 : i32
    %c0_i32_0 = arith.constant 0 : i32
    %c0_i32_1 = arith.constant 0 : i32
    return %c0_i32, %c0_i32_0 : i32, i32
  }
  func.func @transform_5(%arg0: i32, %arg1: i32) -> (i32, i32) {
    %c0_i32 = arith.constant 0 : i32
    %c0_i32_0 = arith.constant 0 : i32
    %c0_i32_1 = arith.constant 0 : i32
    return %c0_i32, %c0_i32_0 : i32, i32
  }
  func.func @transform_6(%arg0: i32, %arg1: i32) -> (i32, i32) {
    %c0_i32 = arith.constant 0 : i32
    %c0_i32_0 = arith.constant 0 : i32
    %c0_i32_1 = arith.constant 0 : i32
    return %c0_i32, %c0_i32_0 : i32, i32
  }
  func.func @transform_7(%arg0: i32, %arg1: i32) -> (i32, i32) {
    %c0_i32 = arith.constant 0 : i32
    %c0_i32_0 = arith.constant 0 : i32
    %c0_i32_1 = arith.constant 0 : i32
    return %c0_i32, %c0_i32_0 : i32, i32
  }
  func.func @transform_8(%arg0: i32, %arg1: i32) -> (i32, i32) {
    %c0_i32 = arith.constant 0 : i32
    %c0_i32_0 = arith.constant 0 : i32
    %c0_i32_1 = arith.constant 0 : i32
    return %c0_i32, %c0_i32_0 : i32, i32
  }
  func.func @transform_9(%arg0: i32, %arg1: i32) -> (i32, i32) {
    %c0_i32 = arith.constant 0 : i32
    %c0_i32_0 = arith.constant 0 : i32
    %c0_i32_1 = arith.constant 0 : i32
    return %c0_i32, %c0_i32_0 : i32, i32
  }
  func.func @transform_10(%arg0: i32, %arg1: i32) -> (i32, i32) {
    %c0_i32 = arith.constant 0 : i32
    %c0_i32_0 = arith.constant 0 : i32
    %c0_i32_1 = arith.constant 0 : i32
    return %c0_i32, %c0_i32_0 : i32, i32
  }
  func.func @transform_11(%arg0: i32, %arg1: i32) -> (i32, i32, i32) {
    %c0_i32 = arith.constant 0 : i32
    %c0_i32_0 = arith.constant 0 : i32
    return %arg0, %arg1, %c0_i32 : i32, i32, i32
  }
}

</mosaic_0001>

<llo_original>
// kernel: token_classification_forward.1
$region0: #{token_classification_forward.1}
  #allocation0 [shape = 'u32[]', space=smem, size = 0x4, offset = 0x4, fixed_abs, tag = 'smem constant byte address 0x4 - core index']
  #allocation1 [shape = 'u32[72,128]{1,0:T(1,128)}', space=vmem, size = 0x9000, scoped, tag = 'internal scratch']
  #allocation2 [shape = 'f32[2,128]{1,0:T(2,128)}', space=vmem, size = 0x400, scoped, tag = 'scratch operand']
  %s0 = inlined_call_operand.vmem [shape: s32[2,512,1], index: 0, kind: input, shape index: {}]
  %s1 = inlined_call_operand.vmem [shape: f32[2,512,1], index: 1, kind: input, shape index: {}]
  %s2 = inlined_call_operand.vmem [shape: bf16[128,128], index: 2, kind: input, shape index: {}]
  %s3 = inlined_call_operand.vmem [shape: bf16[128,384], index: 3, kind: input, shape index: {}]
  %s4 = inlined_call_operand.vmem [shape: f32[1,384], index: 4, kind: input, shape index: {}]
  %s5 = inlined_call_operand.vmem [shape: f32[3,128], index: 5, kind: input, shape index: {}]
  %s6 = inlined_call_operand.vmem [shape: bf16[128,128], index: 6, kind: input, shape index: {}]
  %s7 = inlined_call_operand.vmem [shape: f32[1,128], index: 7, kind: input, shape index: {}]
  %s8 = inlined_call_operand.vmem [shape: bf16[128,128], index: 8, kind: input, shape index: {}]
  %s9 = inlined_call_operand.vmem [shape: f32[1,128], index: 9, kind: input, shape index: {}]
  %s10 = inlined_call_operand.vmem [shape: f32[1,128], index: 10, kind: input, shape index: {}]
  %s11 = inlined_call_operand.vmem [shape: bf16[2,512,128], index: 11, kind: output, shape index: {}]
  %s12 = sld [smem:[#allocation0]]
  $region81: #{token_classification_forward.1} parent=0
    _
  %s14 = ssub.s32 1, %s12
  %s15 = scalar_select 0, %s14, %s12
  loop: start=0, step=1, limit=6
  $region2: #{token_classification_forward.1} parent=0 // loop_pre_header
    _
  $region3: #{token_classification_forward.1} parent=0 // loop_header
    %s17 = sphi 0, %s21
    %p18 = scmp.ge.s32.totalorder %s17, 6
    %s24 = sphi 0, %s36
    %s25 = sphi 0, %s32
    %s26 = sphi 0, %s24
    %s27 = sphi 0, %s25
    %s28 = sphi 0, %s26
    %s29 = sphi 0, %s27
    %s41 = sphi 0, %s43
    %s44 = sphi 0, %s41
    %s45 = sphi 0, %s44
    %s61 = sphi 0, %s45
    %s69 = sphi 0, %s71
    %s72 = sphi 0, %s69
    %s73 = sphi 0, %s72
    %s89 = sphi 0, %s73
    %s93 = sphi 0, %s93
    %s95 = sphi 0, %s93
    %s96 = sphi 0, %s95
    %s110 = sphi 0, %s96
    %s114 = sphi 0, %s114
    %s116 = sphi 0, %s114
    %s117 = sphi 0, %s116
    %s131 = sphi 0, %s117
    %s135 = sphi 0, %s135
    %s137 = sphi 0, %s135
    %s138 = sphi 0, %s137
    %s152 = sphi 0, %s138
    %s156 = sphi 0, %s156
    %s158 = sphi 0, %s156
    %s159 = sphi 0, %s158
    %s173 = sphi 0, %s159
    %s177 = sphi 0, %s177
    %s179 = sphi 0, %s177
    %s180 = sphi 0, %s179
    %s194 = sphi 0, %s180
    %s198 = sphi 0, %s198
    %s200 = sphi 0, %s198
    %s201 = sphi 0, %s200
    %s215 = sphi 0, %s201
    %s219 = sphi 0, %s219
    %s221 = sphi 0, %s219
    %s222 = sphi 0, %s221
    %s236 = sphi 0, %s222
    %s240 = sphi 0, %s240
    %s242 = sphi 0, %s240
    %s243 = sphi 0, %s242
    %s257 = sphi 0, %s243
    %s261 = sphi 0, %s261
    %s263 = sphi 0, %s261
    %s264 = sphi 0, %s263
    %s278 = sphi 0, %s264
    %s286 = sphi 0, %s288
    %s289 = sphi 0, %s286
    %s290 = sphi 0, %s289
    %s306 = sphi 0, %s290
  $region4: #{token_classification_forward.1} parent=0 // loop_header_branch
    %20 = sbr.rel (%p18) target = $region8
  $region5: #{token_classification_forward.1} parent=0 // loop_body
    %s22 = ssub.s32 %s17, 1
    %s23 = ssub.s32 %s17, 2
    %s30 = sadd.s32 1, %s25
    %p31 = scmp.ge.s32.totalorder %s30, 2
    %s32 = scalar_select %p31, 0, %s30
    %s33 = sadd.s32 1, %s24
    %s34 = scalar_select %p31, %s33, %s24
    %p35 = scmp.ge.s32.totalorder %s34, 2
    %s36 = scalar_select %p35, 0, %s34
    %s37 = ssub.s32 %s24, %s36
    %s38 = ssub.s32 %s25, %s32
    %s39 = sor.u32 %s37, %s38
    %p40 = scmp.eq.s32.totalorder %s39, 0
    %s42 = sadd.s32 %s41, 1
    %s43 = scalar_select %p40, %s41, %s42
    %p46 = pneg %p40
    %p47 = scmp.eq.s32.totalorder %s17, 3
    %p48 = por %p46, %p47
    %p49 = scmp.ne.s32.totalorder %s41, %s44
    %p50 = scmp.eq.s32.totalorder %s17, 0
    %p51 = por %p49, %p50
    %p52 = scmp.ne.s32.totalorder %s41, %s44
    %p53 = scmp.eq.s32.totalorder %s22, 3
    %p54 = por %p52, %p53
    %p55 = scmp.ne.s32.totalorder %s44, %s45
    %p56 = scmp.eq.s32.totalorder %s22, 0
    %p57 = por %p55, %p56
    %p58 = scmp.ne.s32.totalorder %s44, %s45
    %p59 = scmp.eq.s32.totalorder %s23, 3
    %p60 = por %p58, %p59
    %p62 = scmp.ne.s32.totalorder %s45, %s61
    %p63 = scmp.eq.s32.totalorder %s23, 0
    %p64 = por %p62, %p63
    %s65 = ssub.s32 %s24, %s36
    %s66 = ssub.s32 %s25, %s32
    %s67 = sor.u32 %s65, %s66
    %p68 = scmp.eq.s32.totalorder %s67, 0
    %s70 = sadd.s32 %s69, 1
    %s71 = scalar_select %p68, %s69, %s70
    %p74 = pneg %p68
    %p75 = scmp.eq.s32.totalorder %s17, 3
    %p76 = por %p74, %p75
    %p77 = scmp.ne.s32.totalorder %s69, %s72
    %p78 = scmp.eq.s32.totalorder %s17, 0
    %p79 = por %p77, %p78
    %p80 = scmp.ne.s32.totalorder %s69, %s72
    %p81 = scmp.eq.s32.totalorder %s22, 3
    %p82 = por %p80, %p81
    %p83 = scmp.ne.s32.totalorder %s72, %s73
    %p84 = scmp.eq.s32.totalorder %s22, 0
    %p85 = por %p83, %p84
    %p86 = scmp.ne.s32.totalorder %s72, %s73
    %p87 = scmp.eq.s32.totalorder %s23, 3
    %p88 = por %p86, %p87
    %p90 = scmp.ne.s32.totalorder %s73, %s89
    %p91 = scmp.eq.s32.totalorder %s23, 0
    %p92 = por %p90, %p91
    %s94 = sadd.s32 %s93, 1
    %p97 = scmp.eq.s32.totalorder %s17, 3
    %p98 = scmp.ne.s32.totalorder %s93, %s95
    %p99 = scmp.eq.s32.totalorder %s17, 0
    %p100 = por %p98, %p99
    %p101 = scmp.ne.s32.totalorder %s93, %s95
    %p102 = scmp.eq.s32.totalorder %s22, 3
    %p103 = por %p101, %p102
    %p104 = scmp.ne.s32.totalorder %s95, %s96
    %p105 = scmp.eq.s32.totalorder %s22, 0
    %p106 = por %p104, %p105
    %p107 = scmp.ne.s32.totalorder %s95, %s96
    %p108 = scmp.eq.s32.totalorder %s23, 3
    %p109 = por %p107, %p108
    %p111 = scmp.ne.s32.totalorder %s96, %s110
    %p112 = scmp.eq.s32.totalorder %s23, 0
    %p113 = por %p111, %p112
    %s115 = sadd.s32 %s114, 1
    %p118 = scmp.eq.s32.totalorder %s17, 3
    %p119 = scmp.ne.s32.totalorder %s114, %s116
    %p120 = scmp.eq.s32.totalorder %s17, 0
    %p121 = por %p119, %p120
    %p122 = scmp.ne.s32.totalorder %s114, %s116
    %p123 = scmp.eq.s32.totalorder %s22, 3
    %p124 = por %p122, %p123
    %p125 = scmp.ne.s32.totalorder %s116, %s117
    %p126 = scmp.eq.s32.totalorder %s22, 0
    %p127 = por %p125, %p126
    %p128 = scmp.ne.s32.totalorder %s116, %s117
    %p129 = scmp.eq.s32.totalorder %s23, 3
    %p130 = por %p128, %p129
    %p132 = scmp.ne.s32.totalorder %s117, %s131
    %p133 = scmp.eq.s32.totalorder %s23, 0
    %p134 = por %p132, %p133
    %s136 = sadd.s32 %s135, 1
    %p139 = scmp.eq.s32.totalorder %s17, 3
    %p140 = scmp.ne.s32.totalorder %s135, %s137
    %p141 = scmp.eq.s32.totalorder %s17, 0
    %p142 = por %p140, %p141
    %p143 = scmp.ne.s32.totalorder %s135, %s137
    %p144 = scmp.eq.s32.totalorder %s22, 3
    %p145 = por %p143, %p144
    %p146 = scmp.ne.s32.totalorder %s137, %s138
    %p147 = scmp.eq.s32.totalorder %s22, 0
    %p148 = por %p146, %p147
    %p149 = scmp.ne.s32.totalorder %s137, %s138
    %p150 = scmp.eq.s32.totalorder %s23, 3
    %p151 = por %p149, %p150
    %p153 = scmp.ne.s32.totalorder %s138, %s152
    %p154 = scmp.eq.s32.totalorder %s23, 0
    %p155 = por %p153, %p154
    %s157 = sadd.s32 %s156, 1
    %p160 = scmp.eq.s32.totalorder %s17, 3
    %p161 = scmp.ne.s32.totalorder %s156, %s158
    %p162 = scmp.eq.s32.totalorder %s17, 0
    %p163 = por %p161, %p162
    %p164 = scmp.ne.s32.totalorder %s156, %s158
    %p165 = scmp.eq.s32.totalorder %s22, 3
    %p166 = por %p164, %p165
    %p167 = scmp.ne.s32.totalorder %s158, %s159
    %p168 = scmp.eq.s32.totalorder %s22, 0
    %p169 = por %p167, %p168
    %p170 = scmp.ne.s32.totalorder %s158, %s159
    %p171 = scmp.eq.s32.totalorder %s23, 3
    %p172 = por %p170, %p171
    %p174 = scmp.ne.s32.totalorder %s159, %s173
    %p175 = scmp.eq.s32.totalorder %s23, 0
    %p176 = por %p174, %p175
    %s178 = sadd.s32 %s177, 1
    %p181 = scmp.eq.s32.totalorder %s17, 3
    %p182 = scmp.ne.s32.totalorder %s177, %s179
    %p183 = scmp.eq.s32.totalorder %s17, 0
    %p184 = por %p182, %p183
    %p185 = scmp.ne.s32.totalorder %s177, %s179
    %p186 = scmp.eq.s32.totalorder %s22, 3
    %p187 = por %p185, %p186
    %p188 = scmp.ne.s32.totalorder %s179, %s180
    %p189 = scmp.eq.s32.totalorder %s22, 0
    %p190 = por %p188, %p189
    %p191 = scmp.ne.s32.totalorder %s179, %s180
    %p192 = scmp.eq.s32.totalorder %s23, 3
    %p193 = por %p191, %p192
    %p195 = scmp.ne.s32.totalorder %s180, %s194
    %p196 = scmp.eq.s32.totalorder %s23, 0
    %p197 = por %p195, %p196
    %s199 = sadd.s32 %s198, 1
    %p202 = scmp.eq.s32.totalorder %s17, 3
    %p203 = scmp.ne.s32.totalorder %s198, %s200
    %p204 = scmp.eq.s32.totalorder %s17, 0
    %p205 = por %p203, %p204
    %p206 = scmp.ne.s32.totalorder %s198, %s200
    %p207 = scmp.eq.s32.totalorder %s22, 3
    %p208 = por %p206, %p207
    %p209 = scmp.ne.s32.totalorder %s200, %s201
    %p210 = scmp.eq.s32.totalorder %s22, 0
    %p211 = por %p209, %p210
    %p212 = scmp.ne.s32.totalorder %s200, %s201
    %p213 = scmp.eq.s32.totalorder %s23, 3
    %p214 = por %p212, %p213
    %p216 = scmp.ne.s32.totalorder %s201, %s215
    %p217 = scmp.eq.s32.totalorder %s23, 0
    %p218 = por %p216, %p217
    %s220 = sadd.s32 %s219, 1
    %p223 = scmp.eq.s32.totalorder %s17, 3
    %p224 = scmp.ne.s32.totalorder %s219, %s221
    %p225 = scmp.eq.s32.totalorder %s17, 0
    %p226 = por %p224, %p225
    %p227 = scmp.ne.s32.totalorder %s219, %s221
    %p228 = scmp.eq.s32.totalorder %s22, 3
    %p229 = por %p227, %p228
    %p230 = scmp.ne.s32.totalorder %s221, %s222
    %p231 = scmp.eq.s32.totalorder %s22, 0
    %p232 = por %p230, %p231
    %p233 = scmp.ne.s32.totalorder %s221, %s222
    %p234 = scmp.eq.s32.totalorder %s23, 3
    %p235 = por %p233, %p234
    %p237 = scmp.ne.s32.totalorder %s222, %s236
    %p238 = scmp.eq.s32.totalorder %s23, 0
    %p239 = por %p237, %p238
    %s241 = sadd.s32 %s240, 1
    %p244 = scmp.eq.s32.totalorder %s17, 3
    %p245 = scmp.ne.s32.totalorder %s240, %s242
    %p246 = scmp.eq.s32.totalorder %s17, 0
    %p247 = por %p245, %p246
    %p248 = scmp.ne.s32.totalorder %s240, %s242
    %p249 = scmp.eq.s32.totalorder %s22, 3
    %p250 = por %p248, %p249
    %p251 = scmp.ne.s32.totalorder %s242, %s243
    %p252 = scmp.eq.s32.totalorder %s22, 0
    %p253 = por %p251, %p252
    %p254 = scmp.ne.s32.totalorder %s242, %s243
    %p255 = scmp.eq.s32.totalorder %s23, 3
    %p256 = por %p254, %p255
    %p258 = scmp.ne.s32.totalorder %s243, %s257
    %p259 = scmp.eq.s32.totalorder %s23, 0
    %p260 = por %p258, %p259
    %s262 = sadd.s32 %s261, 1
    %p265 = scmp.eq.s32.totalorder %s17, 3
    %p266 = scmp.ne.s32.totalorder %s261, %s263
    %p267 = scmp.eq.s32.totalorder %s17, 0
    %p268 = por %p266, %p267
    %p269 = scmp.ne.s32.totalorder %s261, %s263
    %p270 = scmp.eq.s32.totalorder %s22, 3
    %p271 = por %p269, %p270
    %p272 = scmp.ne.s32.totalorder %s263, %s264
    %p273 = scmp.eq.s32.totalorder %s22, 0
    %p274 = por %p272, %p273
    %p275 = scmp.ne.s32.totalorder %s263, %s264
    %p276 = scmp.eq.s32.totalorder %s23, 3
    %p277 = por %p275, %p276
    %p279 = scmp.ne.s32.totalorder %s264, %s278
    %p280 = scmp.eq.s32.totalorder %s23, 0
    %p281 = por %p279, %p280
    %s282 = ssub.s32 %s24, %s36
    %s283 = ssub.s32 %s25, %s32
    %s284 = sor.u32 %s282, %s283
    %p285 = scmp.eq.s32.totalorder %s284, 0
    %s287 = sadd.s32 %s286, 1
    %s288 = scalar_select %p285, %s286, %s287
    %p291 = pneg %p285
    %p292 = scmp.eq.s32.totalorder %s17, 3
    %p293 = por %p291, %p292
    %p294 = scmp.ne.s32.totalorder %s286, %s289
    %p295 = scmp.eq.s32.totalorder %s17, 0
    %p296 = por %p294, %p295
    %p297 = scmp.ne.s32.totalorder %s286, %s289
    %p298 = scmp.eq.s32.totalorder %s22, 3
    %p299 = por %p297, %p298
    %p300 = scmp.ne.s32.totalorder %s289, %s290
    %p301 = scmp.eq.s32.totalorder %s22, 0
    %p302 = por %p300, %p301
    %p303 = scmp.ne.s32.totalorder %s289, %s290
    %p304 = scmp.eq.s32.totalorder %s23, 3
    %p305 = por %p303, %p304
    %p307 = scmp.ne.s32.totalorder %s290, %s306
    %p308 = scmp.eq.s32.totalorder %s23, 0
    %p309 = por %p307, %p308
    %p310 = scmp.le.s32.totalorder 1, %s17
    %p311 = scmp.lt.s32.totalorder %s17, 5
    %p312 = pnand %p310, %p311
    %p313 = pneg %p312
    // Predicated region
    $region9: #{token_classification_forward.1} parent=5 // pred_check
      _
    $region10: #{token_classification_forward.1} parent=5 // pred_check_branch
      %315 = sbr.rel (%p312) target = $region12
    $region11: #{token_classification_forward.1} parent=5 // pred_region
      %s316 = ssub.s32 %s17, 1
      // Predicated region
      $region13: #{token_classification_forward.1} parent=11 // pred_check
        %p317 = pneg %p106
      $region14: #{token_classification_forward.1} parent=11 // pred_check_branch
        %319 = sbr.rel (%p317) target = $region16
      $region15: #{token_classification_forward.1} parent=11 // pred_region
        _
      $region16: #{token_classification_forward.1} parent=11 // pred_fallthru
        _
      // Predicated region
      $region17: #{token_classification_forward.1} parent=11 // pred_check
        %p320 = pneg %p127
      $region18: #{token_classification_forward.1} parent=11 // pred_check_branch
        %322 = sbr.rel (%p320) target = $region20
      $region19: #{token_classification_forward.1} parent=11 // pred_region
        _
      $region20: #{token_classification_forward.1} parent=11 // pred_fallthru
        _
      // Predicated region
      $region21: #{token_classification_forward.1} parent=11 // pred_check
        %p323 = pneg %p148
      $region22: #{token_classification_forward.1} parent=11 // pred_check_branch
        %325 = sbr.rel (%p323) target = $region24
      $region23: #{token_classification_forward.1} parent=11 // pred_region
        _
      $region24: #{token_classification_forward.1} parent=11 // pred_fallthru
        _
      // Predicated region
      $region25: #{token_classification_forward.1} parent=11 // pred_check
        %p326 = pneg %p169
      $region26: #{token_classification_forward.1} parent=11 // pred_check_branch
        %328 = sbr.rel (%p326) target = $region28
      $region27: #{token_classification_forward.1} parent=11 // pred_region
        _
      $region28: #{token_classification_forward.1} parent=11 // pred_fallthru
        _
      // Predicated region
      $region29: #{token_classification_forward.1} parent=11 // pred_check
        %p329 = pneg %p190
      $region30: #{token_classification_forward.1} parent=11 // pred_check_branch
        %331 = sbr.rel (%p329) target = $region32
      $region31: #{token_classification_forward.1} parent=11 // pred_region
        _
      $region32: #{token_classification_forward.1} parent=11 // pred_fallthru
        _
      // Predicated region
      $region33: #{token_classification_forward.1} parent=11 // pred_check
        %p332 = pneg %p211
      $region34: #{token_classification_forward.1} parent=11 // pred_check_branch
        %334 = sbr.rel (%p332) target = $region36
      $region35: #{token_classification_forward.1} parent=11 // pred_region
        _
      $region36: #{token_classification_forward.1} parent=11 // pred_fallthru
        _
      // Predicated region
      $region37: #{token_classification_forward.1} parent=11 // pred_check
        %p335 = pneg %p232
      $region38: #{token_classification_forward.1} parent=11 // pred_check_branch
        %337 = sbr.rel (%p335) target = $region40
      $region39: #{token_classification_forward.1} parent=11 // pred_region
        _
      $region40: #{token_classification_forward.1} parent=11 // pred_fallthru
        _
      // Predicated region
      $region41: #{token_classification_forward.1} parent=11 // pred_check
        %p338 = pneg %p253
      $region42: #{token_classification_forward.1} parent=11 // pred_check_branch
        %340 = sbr.rel (%p338) target = $region44
      $region43: #{token_classification_forward.1} parent=11 // pred_region
        _
      $region44: #{token_classification_forward.1} parent=11 // pred_fallthru
        _
      // Predicated region
      $region45: #{token_classification_forward.1} parent=11 // pred_check
        %p341 = pneg %p274
      $region46: #{token_classification_forward.1} parent=11 // pred_check_branch
        %343 = sbr.rel (%p341) target = $region48
      $region47: #{token_classification_forward.1} parent=11 // pred_region
        _
      $region48: #{token_classification_forward.1} parent=11 // pred_fallthru
        _
    $region12: #{token_classification_forward.1} parent=5 // pred_fallthru
      _
    %p344 = scmp.lt.s32.totalorder %s17, 4
    // Predicated region
    $region49: #{token_classification_forward.1} parent=5 // pred_check
      %p345 = pneg %p344
    $region50: #{token_classification_forward.1} parent=5 // pred_check_branch
      %347 = sbr.rel (%p345) target = $region52
    $region51: #{token_classification_forward.1} parent=5 // pred_region
      // Predicated region
      $region53: #{token_classification_forward.1} parent=51 // pred_check
        %p348 = pneg %p51
      $region54: #{token_classification_forward.1} parent=51 // pred_check_branch
        %350 = sbr.rel (%p348) target = $region56
      $region55: #{token_classification_forward.1} parent=51 // pred_region
        %s351 = smul.u32 32, %s25
        %p352 = scmp.lt.s32.totalorder %s24, 1
        %s353 = scalar_select %p352, %s24, 1
        %p354 = scmp.lt.s32.totalorder %s351, 63
        %s355 = scalar_select %p354, %s351, 63
        %s356 = smul.addr %s353, 64
        %s357 = sadd.s32 %s355, %s356
        %s358 = smul.addr %s357, 8
        %s359 = scalar_lea.vmem %s0, %s358
        %s360 = smul.u32 32, %s25
      $region56: #{token_classification_forward.1} parent=51 // pred_fallthru
        _
      // Predicated region
      $region57: #{token_classification_forward.1} parent=51 // pred_check
        %p361 = pneg %p79
      $region58: #{token_classification_forward.1} parent=51 // pred_check_branch
        %363 = sbr.rel (%p361) target = $region60
      $region59: #{token_classification_forward.1} parent=51 // pred_region
        %s364 = smul.u32 32, %s25
        %p365 = scmp.lt.s32.totalorder %s24, 1
        %s366 = scalar_select %p365, %s24, 1
        %p367 = scmp.lt.s32.totalorder %s364, 63
        %s368 = scalar_select %p367, %s364, 63
        %s369 = smul.addr %s366, 64
        %s370 = sadd.s32 %s368, %s369
        %s371 = smul.addr %s370, 8
        %s372 = scalar_lea.vmem %s1, %s371
        %s373 = smul.u32 32, %s25
      $region60: #{token_classification_forward.1} parent=51 // pred_fallthru
        _
    $region52: #{token_classification_forward.1} parent=5 // pred_fallthru
      _
    %p374 = scmp.le.s32.totalorder 1, %s17
    %p375 = scmp.lt.s32.totalorder %s17, 5
    %p376 = pnand %p374, %p375
    %p377 = pneg %p376
    // Predicated region
    $region61: #{token_classification_forward.1} parent=5 // pred_check
      _
    $region62: #{token_classification_forward.1} parent=5 // pred_check_branch
      %379 = sbr.rel (%p376) target = $region64
    $region63: #{token_classification_forward.1} parent=5 // pred_region
      %s380 = ssub.s32 %s17, 1
      %s381 = smul.u32 32, %s27
      %p382 = scmp.lt.s32.totalorder %s26, 1
      %s383 = scalar_select %p382, %s26, 1
      %p384 = scmp.lt.s32.totalorder %s381, 63
      %s385 = scalar_select %p384, %s381, 63
      %s386 = smul.addr %s383, 64
      %s387 = sadd.s32 %s385, %s386
      %s388 = smul.addr %s387, 8
      %s389 = scalar_lea.vmem %s0, %s388
      %p390 = pneg %p57
      %p391 = pneg %p54
      %s392 = smul.u32 32, %s27
      %p393 = scmp.lt.s32.totalorder %s26, 1
      %s394 = scalar_select %p393, %s26, 1
      %p395 = scmp.lt.s32.totalorder %s392, 63
      %s396 = scalar_select %p395, %s392, 63
      %s397 = smul.addr %s394, 64
      %s398 = sadd.s32 %s396, %s397
      %s399 = smul.addr %s398, 8
      %s400 = scalar_lea.vmem %s1, %s399
      %p401 = pneg %p85
      %p402 = pneg %p82
      %p403 = pneg %p106
      %p404 = pneg %p103
      %p405 = pneg %p127
      %p406 = pneg %p124
      %p407 = pneg %p148
      %p408 = pneg %p145
      %p409 = pneg %p169
      %p410 = pneg %p166
      %p411 = pneg %p190
      %p412 = pneg %p187
      %p413 = pneg %p211
      %p414 = pneg %p208
      %p415 = pneg %p232
      %p416 = pneg %p229
      %p417 = pneg %p253
      %p418 = pneg %p250
      %p419 = pneg %p274
      %p420 = pneg %p271
      %p421 = pneg %p302
      %p422 = pneg %p299
      %s423 = smul.u32 32, %s27
      %p424 = scmp.lt.s32.totalorder %s26, 1
      %s425 = scalar_select %p424, %s26, 1
      %p426 = scmp.lt.s32.totalorder %s423, 63
      %s427 = scalar_select %p426, %s423, 63
      %s428 = smul.addr %s425, 64
      %s429 = sadd.s32 %s427, %s428
      %s430 = smul.addr %s429, 4
      %s431 = scalar_lea.vmem %s11, %s430
      %s432 = smul.u32 32, %s27
      %p433 = scmp.lt.s32.totalorder %s26, 1
      %s434 = scalar_select %p433, %s26, 1
      %p435 = scmp.lt.s32.totalorder %s432, 63
      %s436 = scalar_select %p435, %s432, 63
      %s437 = smul.addr %s434, 64
      %s438 = sadd.s32 %s436, %s437
      %s439 = smul.addr %s438, 8
      %s440 = scalar_lea.vmem %s0, %s439
      %s441 = smul.u32 32, %s27
      %s442 = smul.u32 32, %s27
      %p443 = scmp.lt.s32.totalorder %s26, 1
      %s444 = scalar_select %p443, %s26, 1
      %p445 = scmp.lt.s32.totalorder %s442, 63
      %s446 = scalar_select %p445, %s442, 63
      %s447 = smul.addr %s444, 64
      %s448 = sadd.s32 %s446, %s447
      %s449 = smul.addr %s448, 8
      %s450 = scalar_lea.vmem %s1, %s449
      %s451 = smul.u32 32, %s27
      %s452 = smul.u32 32, %s27
      %p453 = scmp.lt.s32.totalorder %s26, 1
      %s454 = scalar_select %p453, %s26, 1
      %p455 = scmp.lt.s32.totalorder %s452, 63
      %s456 = scalar_select %p455, %s452, 63
      %s457 = smul.addr %s454, 64
      %s458 = sadd.s32 %s456, %s457
      %s459 = smul.addr %s458, 4
      %s460 = scalar_lea.vmem %s11, %s459
      %s461 = smul.u32 32, %s27
      %p462 = scmp.eq.s32.totalorder %s27, 0
      // Predicated region
      $region65: #{token_classification_forward.1} parent=63 // pred_check
        %p463 = pneg %p462
      $region66: #{token_classification_forward.1} parent=63 // pred_check_branch
        %465 = sbr.rel (%p463) target = $region68
      $region67: #{token_classification_forward.1} parent=63 // pred_region
        %466 = vst [vmem:[#allocation2] sm:$0x3] 0.0
      $region68: #{token_classification_forward.1} parent=63 // pred_fallthru
        _
      %v467 = vld [vmem:[#allocation2] sm:$0x3]
      %v468 = vld [vmem:[%s440] sm:$0xff]
      %v469 = vld [vmem:[%s440 + $0x8] sm:$0xff]
      %v470 = vld [vmem:[%s440 + $0x10] sm:$0xff]
      %v471 = vld [vmem:[%s440 + $0x18] sm:$0xff]
      %v472 = vld [vmem:[%s440 + $0x20] sm:$0xff]
      %v473 = vld [vmem:[%s440 + $0x28] sm:$0xff]
      %v474 = vld [vmem:[%s440 + $0x30] sm:$0xff]
      %v475 = vld [vmem:[%s440 + $0x38] sm:$0xff]
      %v476 = vld [vmem:[%s440 + $0x40] sm:$0xff]
      %v477 = vld [vmem:[%s440 + $0x48] sm:$0xff]
      %v478 = vld [vmem:[%s440 + $0x50] sm:$0xff]
      %v479 = vld [vmem:[%s440 + $0x58] sm:$0xff]
      %v480 = vld [vmem:[%s440 + $0x60] sm:$0xff]
      %v481 = vld [vmem:[%s440 + $0x68] sm:$0xff]
      %v482 = vld [vmem:[%s440 + $0x70] sm:$0xff]
      %v483 = vld [vmem:[%s440 + $0x78] sm:$0xff]
      %v484 = vld [vmem:[%s440 + $0x80] sm:$0xff]
      %v485 = vld [vmem:[%s440 + $0x88] sm:$0xff]
      %v486 = vld [vmem:[%s440 + $0x90] sm:$0xff]
      %v487 = vld [vmem:[%s440 + $0x98] sm:$0xff]
      %v488 = vld [vmem:[%s440 + $0xa0] sm:$0xff]
      %v489 = vld [vmem:[%s440 + $0xa8] sm:$0xff]
      %v490 = vld [vmem:[%s440 + $0xb0] sm:$0xff]
      %v491 = vld [vmem:[%s440 + $0xb8] sm:$0xff]
      %v492 = vld [vmem:[%s440 + $0xc0] sm:$0xff]
      %v493 = vld [vmem:[%s440 + $0xc8] sm:$0xff]
      %v494 = vld [vmem:[%s440 + $0xd0] sm:$0xff]
      %v495 = vld [vmem:[%s440 + $0xd8] sm:$0xff]
      %v496 = vld [vmem:[%s440 + $0xe0] sm:$0xff]
      %v497 = vld [vmem:[%s440 + $0xe8] sm:$0xff]
      %v498 = vld [vmem:[%s440 + $0xf0] sm:$0xff]
      %v499 = vld [vmem:[%s440 + $0xf8] sm:$0xff]
      %v500 = vlaneseq
      %v501 = vand.u32 %v500, 127
      %502 = vset.pattern.permute.xlu0 0
      %503 = vperm.xlu0 %502, %v468
      %v504 = vpop.permute.xlu0 %503
      %505 = vset.pattern.permute.xlu0 0
      %506 = vperm.xlu0 %505, %v469
      %v507 = vpop.permute.xlu0 %506
      %508 = vset.pattern.permute.xlu0 0
      %509 = vperm.xlu0 %508, %v470
      %v510 = vpop.permute.xlu0 %509
      %511 = vset.pattern.permute.xlu0 0
      %512 = vperm.xlu0 %511, %v471
      %v513 = vpop.permute.xlu0 %512
      %514 = vset.pattern.permute.xlu0 0
      %515 = vperm.xlu0 %514, %v472
      %v516 = vpop.permute.xlu0 %515
      %517 = vset.pattern.permute.xlu0 0
      %518 = vperm.xlu0 %517, %v473
      %v519 = vpop.permute.xlu0 %518
      %520 = vset.pattern.permute.xlu0 0
      %521 = vperm.xlu0 %520, %v474
      %v522 = vpop.permute.xlu0 %521
      %523 = vset.pattern.permute.xlu0 0
      %524 = vperm.xlu0 %523, %v475
      %v525 = vpop.permute.xlu0 %524
      %526 = vset.pattern.permute.xlu0 0
      %527 = vperm.xlu0 %526, %v476
      %v528 = vpop.permute.xlu0 %527
      %529 = vset.pattern.permute.xlu0 0
      %530 = vperm.xlu0 %529, %v477
      %v531 = vpop.permute.xlu0 %530
      %532 = vset.pattern.permute.xlu0 0
      %533 = vperm.xlu0 %532, %v478
      %v534 = vpop.permute.xlu0 %533
      %535 = vset.pattern.permute.xlu0 0
      %536 = vperm.xlu0 %535, %v479
      %v537 = vpop.permute.xlu0 %536
      %538 = vset.pattern.permute.xlu0 0
      %539 = vperm.xlu0 %538, %v480
      %v540 = vpop.permute.xlu0 %539
      %541 = vset.pattern.permute.xlu0 0
      %542 = vperm.xlu0 %541, %v481
      %v543 = vpop.permute.xlu0 %542
      %544 = vset.pattern.permute.xlu0 0
      %545 = vperm.xlu0 %544, %v482
      %v546 = vpop.permute.xlu0 %545
      %547 = vset.pattern.permute.xlu0 0
      %548 = vperm.xlu0 %547, %v483
      %v549 = vpop.permute.xlu0 %548
      %550 = vset.pattern.permute.xlu0 0
      %551 = vperm.xlu0 %550, %v484
      %v552 = vpop.permute.xlu0 %551
      %553 = vset.pattern.permute.xlu0 0
      %554 = vperm.xlu0 %553, %v485
      %v555 = vpop.permute.xlu0 %554
      %556 = vset.pattern.permute.xlu0 0
      %557 = vperm.xlu0 %556, %v486
      %v558 = vpop.permute.xlu0 %557
      %559 = vset.pattern.permute.xlu0 0
      %560 = vperm.xlu0 %559, %v487
      %v561 = vpop.permute.xlu0 %560
      %562 = vset.pattern.permute.xlu0 0
      %563 = vperm.xlu0 %562, %v488
      %v564 = vpop.permute.xlu0 %563
      %565 = vset.pattern.permute.xlu0 0
      %566 = vperm.xlu0 %565, %v489
      %v567 = vpop.permute.xlu0 %566
      %568 = vset.pattern.permute.xlu0 0
      %569 = vperm.xlu0 %568, %v490
      %v570 = vpop.permute.xlu0 %569
      %571 = vset.pattern.permute.xlu0 0
      %572 = vperm.xlu0 %571, %v491
      %v573 = vpop.permute.xlu0 %572
      %574 = vset.pattern.permute.xlu0 0
      %575 = vperm.xlu0 %574, %v492
      %v576 = vpop.permute.xlu0 %575
      %577 = vset.pattern.permute.xlu0 0
      %578 = vperm.xlu0 %577, %v493
      %v579 = vpop.permute.xlu0 %578
      %580 = vset.pattern.permute.xlu0 0
      %581 = vperm.xlu0 %580, %v494
      %v582 = vpop.permute.xlu0 %581
      %583 = vset.pattern.permute.xlu0 0
      %584 = vperm.xlu0 %583, %v495
      %v585 = vpop.permute.xlu0 %584
      %586 = vset.pattern.permute.xlu0 0
      %587 = vperm.xlu0 %586, %v496
      %v588 = vpop.permute.xlu0 %587
      %589 = vset.pattern.permute.xlu0 0
      %590 = vperm.xlu0 %589, %v497
      %v591 = vpop.permute.xlu0 %590
      %592 = vset.pattern.permute.xlu0 0
      %593 = vperm.xlu0 %592, %v498
      %v594 = vpop.permute.xlu0 %593
      %595 = vset.pattern.permute.xlu0 0
      %596 = vperm.xlu0 %595, %v499
      %v597 = vpop.permute.xlu0 %596
      %vm598 = vcmp.eq.s32.totalorder %v501, %v504
      %vm599 = vcmp.eq.s32.totalorder %v501, %v507
      %vm600 = vcmp.eq.s32.totalorder %v501, %v510
      %vm601 = vcmp.eq.s32.totalorder %v501, %v513
      %vm602 = vcmp.eq.s32.totalorder %v501, %v516
      %vm603 = vcmp.eq.s32.totalorder %v501, %v519
      %vm604 = vcmp.eq.s32.totalorder %v501, %v522
      %vm605 = vcmp.eq.s32.totalorder %v501, %v525
      %vm606 = vcmp.eq.s32.totalorder %v501, %v528
      %vm607 = vcmp.eq.s32.totalorder %v501, %v531
      %vm608 = vcmp.eq.s32.totalorder %v501, %v534
      %vm609 = vcmp.eq.s32.totalorder %v501, %v537
      %vm610 = vcmp.eq.s32.totalorder %v501, %v540
      %vm611 = vcmp.eq.s32.totalorder %v501, %v543
      %vm612 = vcmp.eq.s32.totalorder %v501, %v546
      %vm613 = vcmp.eq.s32.totalorder %v501, %v549
      %vm614 = vcmp.eq.s32.totalorder %v501, %v552
      %vm615 = vcmp.eq.s32.totalorder %v501, %v555
      %vm616 = vcmp.eq.s32.totalorder %v501, %v558
      %vm617 = vcmp.eq.s32.totalorder %v501, %v561
      %vm618 = vcmp.eq.s32.totalorder %v501, %v564
      %vm619 = vcmp.eq.s32.totalorder %v501, %v567
      %vm620 = vcmp.eq.s32.totalorder %v501, %v570
      %vm621 = vcmp.eq.s32.totalorder %v501, %v573
      %vm622 = vcmp.eq.s32.totalorder %v501, %v576
      %vm623 = vcmp.eq.s32.totalorder %v501, %v579
      %vm624 = vcmp.eq.s32.totalorder %v501, %v582
      %vm625 = vcmp.eq.s32.totalorder %v501, %v585
      %vm626 = vcmp.eq.s32.totalorder %v501, %v588
      %vm627 = vcmp.eq.s32.totalorder %v501, %v591
      %vm628 = vcmp.eq.s32.totalorder %v501, %v594
      %vm629 = vcmp.eq.s32.totalorder %v501, %v597
      %v630 = vsel %vm598, 1.0, 0.0
      %v631 = vsel %vm599, 1.0, 0.0
      %v632 = vsel %vm600, 1.0, 0.0
      %v633 = vsel %vm601, 1.0, 0.0
      %v634 = vsel %vm602, 1.0, 0.0
      %v635 = vsel %vm603, 1.0, 0.0
      %v636 = vsel %vm604, 1.0, 0.0
      %v637 = vsel %vm605, 1.0, 0.0
      %v638 = vsel %vm606, 1.0, 0.0
      %v639 = vsel %vm607, 1.0, 0.0
      %v640 = vsel %vm608, 1.0, 0.0
      %v641 = vsel %vm609, 1.0, 0.0
      %v642 = vsel %vm610, 1.0, 0.0
      %v643 = vsel %vm611, 1.0, 0.0
      %v644 = vsel %vm612, 1.0, 0.0
      %v645 = vsel %vm613, 1.0, 0.0
      %v646 = vsel %vm614, 1.0, 0.0
      %v647 = vsel %vm615, 1.0, 0.0
      %v648 = vsel %vm616, 1.0, 0.0
      %v649 = vsel %vm617, 1.0, 0.0
      %v650 = vsel %vm618, 1.0, 0.0
      %v651 = vsel %vm619, 1.0, 0.0
      %v652 = vsel %vm620, 1.0, 0.0
      %v653 = vsel %vm621, 1.0, 0.0
      %v654 = vsel %vm622, 1.0, 0.0
      %v655 = vsel %vm623, 1.0, 0.0
      %v656 = vsel %vm624, 1.0, 0.0
      %v657 = vsel %vm625, 1.0, 0.0
      %v658 = vsel %vm626, 1.0, 0.0
      %v659 = vsel %vm627, 1.0, 0.0
      %v660 = vsel %vm628, 1.0, 0.0
      %v661 = vsel %vm629, 1.0, 0.0
      %v662 = vpack.c.bf16 %v631, %v630
      %v663 = vpack.c.bf16 %v633, %v632
      %v664 = vpack.c.bf16 %v635, %v634
      %v665 = vpack.c.bf16 %v637, %v636
      %v666 = vpack.c.bf16 %v639, %v638
      %v667 = vpack.c.bf16 %v641, %v640
      %v668 = vpack.c.bf16 %v643, %v642
      %v669 = vpack.c.bf16 %v645, %v644
      %v670 = vpack.c.bf16 %v647, %v646
      %v671 = vpack.c.bf16 %v649, %v648
      %v672 = vpack.c.bf16 %v651, %v650
      %v673 = vpack.c.bf16 %v653, %v652
      %v674 = vpack.c.bf16 %v655, %v654
      %v675 = vpack.c.bf16 %v657, %v656
      %v676 = vpack.c.bf16 %v659, %v658
      %v677 = vpack.c.bf16 %v661, %v660
      %v678 = vld [vmem:[%s2] sm:$0xf]
      %v679 = vld [vmem:[%s2 + $0x4] sm:$0xf]
      %v680 = vld [vmem:[%s2 + $0x8] sm:$0xf]
      %v681 = vld [vmem:[%s2 + $0xc] sm:$0xf]
      %v682 = vld [vmem:[%s2 + $0x10] sm:$0xf]
      %v683 = vld [vmem:[%s2 + $0x14] sm:$0xf]
      %v684 = vld [vmem:[%s2 + $0x18] sm:$0xf]
      %v685 = vld [vmem:[%s2 + $0x1c] sm:$0xf]
      %v686 = vld [vmem:[%s2 + $0x20] sm:$0xf]
      %v687 = vld [vmem:[%s2 + $0x24] sm:$0xf]
      %v688 = vld [vmem:[%s2 + $0x28] sm:$0xf]
      %v689 = vld [vmem:[%s2 + $0x2c] sm:$0xf]
      %v690 = vld [vmem:[%s2 + $0x30] sm:$0xf]
      %v691 = vld [vmem:[%s2 + $0x34] sm:$0xf]
      %v692 = vld [vmem:[%s2 + $0x38] sm:$0xf]
      %v693 = vld [vmem:[%s2 + $0x3c] sm:$0xf]
      %v710 = vunpack.c.l.b16 %v678
      %v711 = vunpack.c.l.b16 %v679
      %v712 = vunpack.c.l.b16 %v680
      %v713 = vunpack.c.l.b16 %v681
      %v714 = vunpack.c.l.b16 %v682
      %v715 = vunpack.c.l.b16 %v683
      %v716 = vunpack.c.l.b16 %v684
      %v717 = vunpack.c.l.b16 %v685
      %v718 = vunpack.c.l.b16 %v686
      %v719 = vunpack.c.l.b16 %v687
      %v720 = vunpack.c.l.b16 %v688
      %v721 = vunpack.c.l.b16 %v689
      %v722 = vunpack.c.l.b16 %v690
      %v723 = vunpack.c.l.b16 %v691
      %v724 = vunpack.c.l.b16 %v692
      %v725 = vunpack.c.l.b16 %v693
      %v726 = vpack.c.b16 %v711, %v710
      %v727 = vpack.c.b16 %v713, %v712
      %v728 = vpack.c.b16 %v715, %v714
      %v729 = vpack.c.b16 %v717, %v716
      %v730 = vpack.c.b16 %v719, %v718
      %v731 = vpack.c.b16 %v721, %v720
      %v732 = vpack.c.b16 %v723, %v722
      %v733 = vpack.c.b16 %v725, %v724
      %742 = vmatpush.bf16.msra.mxu0 %v733
      %743 = vmatpush.bf16.msra.mxu0 %v732
      %744 = vmatpush.bf16.msra.mxu0 %v731
      %745 = vmatpush.bf16.msra.mxu0 %v730
      %746 = vmatpush.bf16.msra.mxu0 %v729
      %747 = vmatpush.bf16.msra.mxu0 %v728
      %748 = vmatpush.bf16.msra.mxu0 %v727
      %749 = vmatpush.bf16.msra.mxu0 %v726
      %750 = vmatmul.bf16.gmra.mxu0 %v662
      %v751 = vpop.f32.mrf.mxu0
      %v752 = vadd.f32 0.0, %v751
      %v753 = vpop.f32.mrf.mxu0
      %v754 = vadd.f32 0.0, %v753
      %755 = vmatmul.bf16.gmra.mxu0 %v663
      %v756 = vpop.f32.mrf.mxu0
      %v757 = vadd.f32 0.0, %v756
      %v758 = vpop.f32.mrf.mxu0
      %v759 = vadd.f32 0.0, %v758
      %760 = vmatmul.bf16.gmra.mxu0 %v664
      %v761 = vpop.f32.mrf.mxu0
      %v762 = vadd.f32 0.0, %v761
      %v763 = vpop.f32.mrf.mxu0
      %v764 = vadd.f32 0.0, %v763
      %765 = vmatmul.bf16.gmra.mxu0 %v665
      %v766 = vpop.f32.mrf.mxu0
      %v767 = vadd.f32 0.0, %v766
      %v768 = vpop.f32.mrf.mxu0
      %v769 = vadd.f32 0.0, %v768
      %770 = vmatmul.bf16.gmra.mxu0 %v666
      %v771 = vpop.f32.mrf.mxu0
      %v772 = vadd.f32 0.0, %v771
      %v773 = vpop.f32.mrf.mxu0
      %v774 = vadd.f32 0.0, %v773
      %775 = vmatmul.bf16.gmra.mxu0 %v667
      %v776 = vpop.f32.mrf.mxu0
      %v777 = vadd.f32 0.0, %v776
      %v778 = vpop.f32.mrf.mxu0
      %v779 = vadd.f32 0.0, %v778
      %780 = vmatmul.bf16.gmra.mxu0 %v668
      %v781 = vpop.f32.mrf.mxu0
      %v782 = vadd.f32 0.0, %v781
      %v783 = vpop.f32.mrf.mxu0
      %v784 = vadd.f32 0.0, %v783
      %785 = vmatmul.bf16.gmra.mxu0 %v669
      %v786 = vpop.f32.mrf.mxu0
      %v787 = vadd.f32 0.0, %v786
      %v788 = vpop.f32.mrf.mxu0
      %v789 = vadd.f32 0.0, %v788
      %790 = vmatmul.bf16.gmra.mxu0 %v670
      %v791 = vpop.f32.mrf.mxu0
      %v792 = vadd.f32 0.0, %v791
      %v793 = vpop.f32.mrf.mxu0
      %v794 = vadd.f32 0.0, %v793
      %795 = vmatmul.bf16.gmra.mxu0 %v671
      %v796 = vpop.f32.mrf.mxu0
      %v797 = vadd.f32 0.0, %v796
      %v798 = vpop.f32.mrf.mxu0
      %v799 = vadd.f32 0.0, %v798
      %800 = vmatmul.bf16.gmra.mxu0 %v672
      %v801 = vpop.f32.mrf.mxu0
      %v802 = vadd.f32 0.0, %v801
      %v803 = vpop.f32.mrf.mxu0
      %v804 = vadd.f32 0.0, %v803
      %805 = vmatmul.bf16.gmra.mxu0 %v673
      %v806 = vpop.f32.mrf.mxu0
      %v807 = vadd.f32 0.0, %v806
      %v808 = vpop.f32.mrf.mxu0
      %v809 = vadd.f32 0.0, %v808
      %810 = vmatmul.bf16.gmra.mxu0 %v674
      %v811 = vpop.f32.mrf.mxu0
      %v812 = vadd.f32 0.0, %v811
      %v813 = vpop.f32.mrf.mxu0
      %v814 = vadd.f32 0.0, %v813
      %815 = vmatmul.bf16.gmra.mxu0 %v675
      %v816 = vpop.f32.mrf.mxu0
      %v817 = vadd.f32 0.0, %v816
      %v818 = vpop.f32.mrf.mxu0
      %v819 = vadd.f32 0.0, %v818
      %820 = vmatmul.bf16.gmra.mxu0 %v676
      %v821 = vpop.f32.mrf.mxu0
      %v822 = vadd.f32 0.0, %v821
      %v823 = vpop.f32.mrf.mxu0
      %v824 = vadd.f32 0.0, %v823
      %825 = vmatmul.bf16.gmra.mxu0 %v677
      %v826 = vpop.f32.mrf.mxu0
      %v827 = vadd.f32 0.0, %v826
      %v828 = vpop.f32.mrf.mxu0
      %v829 = vadd.f32 0.0, %v828
      %830 = vdwg.mxu0
      %v831 = vpack.c.bf16 %v754, %v752
      %v832 = vpack.c.bf16 %v759, %v757
      %v833 = vpack.c.bf16 %v764, %v762
      %v834 = vpack.c.bf16 %v769, %v767
      %v835 = vpack.c.bf16 %v774, %v772
      %v836 = vpack.c.bf16 %v779, %v777
      %v837 = vpack.c.bf16 %v784, %v782
      %v838 = vpack.c.bf16 %v789, %v787
      %v839 = vpack.c.bf16 %v794, %v792
      %v840 = vpack.c.bf16 %v799, %v797
      %v841 = vpack.c.bf16 %v804, %v802
      %v842 = vpack.c.bf16 %v809, %v807
      %v843 = vpack.c.bf16 %v814, %v812
      %v844 = vpack.c.bf16 %v819, %v817
      %v845 = vpack.c.bf16 %v824, %v822
      %v846 = vpack.c.bf16 %v829, %v827
      %v847 = vld [vmem:[%s3] sm:$0xff]
      %v848 = vld [vmem:[%s3 + $0x8] sm:$0xf]
      %v849 = vld [vmem:[%s3 + $0xc] sm:$0xff]
      %v850 = vld [vmem:[%s3 + $0x14] sm:$0xf]
      %v851 = vld [vmem:[%s3 + $0x18] sm:$0xff]
      %v852 = vld [vmem:[%s3 + $0x20] sm:$0xf]
      %v853 = vld [vmem:[%s3 + $0x24] sm:$0xff]
      %v854 = vld [vmem:[%s3 + $0x2c] sm:$0xf]
      %v855 = vld [vmem:[%s3 + $0x30] sm:$0xff]
      %v856 = vld [vmem:[%s3 + $0x38] sm:$0xf]
      %v857 = vld [vmem:[%s3 + $0x3c] sm:$0xff]
      %v858 = vld [vmem:[%s3 + $0x44] sm:$0xf]
      %v859 = vld [vmem:[%s3 + $0x48] sm:$0xff]
      %v860 = vld [vmem:[%s3 + $0x50] sm:$0xf]
      %v861 = vld [vmem:[%s3 + $0x54] sm:$0xff]
      %v862 = vld [vmem:[%s3 + $0x5c] sm:$0xf]
      %v863 = vld [vmem:[%s3 + $0x60] sm:$0xff]
      %v864 = vld [vmem:[%s3 + $0x68] sm:$0xf]
      %v865 = vld [vmem:[%s3 + $0x6c] sm:$0xff]
      %v866 = vld [vmem:[%s3 + $0x74] sm:$0xf]
      %v867 = vld [vmem:[%s3 + $0x78] sm:$0xff]
      %v868 = vld [vmem:[%s3 + $0x80] sm:$0xf]
      %v869 = vld [vmem:[%s3 + $0x84] sm:$0xff]
      %v870 = vld [vmem:[%s3 + $0x8c] sm:$0xf]
      %v871 = vld [vmem:[%s3 + $0x90] sm:$0xff]
      %v872 = vld [vmem:[%s3 + $0x98] sm:$0xf]
      %v873 = vld [vmem:[%s3 + $0x9c] sm:$0xff]
      %v874 = vld [vmem:[%s3 + $0xa4] sm:$0xf]
      %v875 = vld [vmem:[%s3 + $0xa8] sm:$0xff]
      %v876 = vld [vmem:[%s3 + $0xb0] sm:$0xf]
      %v877 = vld [vmem:[%s3 + $0xb4] sm:$0xff]
      %v878 = vld [vmem:[%s3 + $0xbc] sm:$0xf]
      %v879 = vld [vmem:[%s4] sm:$0x7]
      %v881 = vperm.slane %v879, 0
      %v882 = vperm.slane %v879, 1
      %v883 = vperm.slane %v879, 2
      %v919 = vunpack.c.l.b16 %v847
      %v920 = vunpack.c.h.b16 %v847
      %v921 = vunpack.c.l.b16 %v848
      %v922 = vunpack.c.l.b16 %v849
      %v923 = vunpack.c.h.b16 %v849
      %v924 = vunpack.c.l.b16 %v850
      %v925 = vunpack.c.l.b16 %v851
      %v926 = vunpack.c.h.b16 %v851
      %v927 = vunpack.c.l.b16 %v852
      %v928 = vunpack.c.l.b16 %v853
      %v929 = vunpack.c.h.b16 %v853
      %v930 = vunpack.c.l.b16 %v854
      %v931 = vunpack.c.l.b16 %v855
      %v932 = vunpack.c.h.b16 %v855
      %v933 = vunpack.c.l.b16 %v856
      %v934 = vunpack.c.l.b16 %v857
      %v935 = vunpack.c.h.b16 %v857
      %v936 = vunpack.c.l.b16 %v858
      %v937 = vunpack.c.l.b16 %v859
      %v938 = vunpack.c.h.b16 %v859
      %v939 = vunpack.c.l.b16 %v860
      %v940 = vunpack.c.l.b16 %v861
      %v941 = vunpack.c.h.b16 %v861
      %v942 = vunpack.c.l.b16 %v862
      %v943 = vunpack.c.l.b16 %v863
      %v944 = vunpack.c.h.b16 %v863
      %v945 = vunpack.c.l.b16 %v864
      %v946 = vunpack.c.l.b16 %v865
      %v947 = vunpack.c.h.b16 %v865
      %v948 = vunpack.c.l.b16 %v866
      %v949 = vunpack.c.l.b16 %v867
      %v950 = vunpack.c.h.b16 %v867
      %v951 = vunpack.c.l.b16 %v868
      %v952 = vunpack.c.l.b16 %v869
      %v953 = vunpack.c.h.b16 %v869
      %v954 = vunpack.c.l.b16 %v870
      %v955 = vunpack.c.l.b16 %v871
      %v956 = vunpack.c.h.b16 %v871
      %v957 = vunpack.c.l.b16 %v872
      %v958 = vunpack.c.l.b16 %v873
      %v959 = vunpack.c.h.b16 %v873
      %v960 = vunpack.c.l.b16 %v874
      %v961 = vunpack.c.l.b16 %v875
      %v962 = vunpack.c.h.b16 %v875
      %v963 = vunpack.c.l.b16 %v876
      %v964 = vunpack.c.l.b16 %v877
      %v965 = vunpack.c.h.b16 %v877
      %v966 = vunpack.c.l.b16 %v878
      %v967 = vpack.c.b16 %v922, %v919
      %v968 = vpack.c.b16 %v923, %v920
      %v969 = vpack.c.b16 %v924, %v921
      %v970 = vpack.c.b16 %v928, %v925
      %v971 = vpack.c.b16 %v929, %v926
      %v972 = vpack.c.b16 %v930, %v927
      %v973 = vpack.c.b16 %v934, %v931
      %v974 = vpack.c.b16 %v935, %v932
      %v975 = vpack.c.b16 %v936, %v933
      %v976 = vpack.c.b16 %v940, %v937
      %v977 = vpack.c.b16 %v941, %v938
      %v978 = vpack.c.b16 %v942, %v939
      %v979 = vpack.c.b16 %v946, %v943
      %v980 = vpack.c.b16 %v947, %v944
      %v981 = vpack.c.b16 %v948, %v945
      %v982 = vpack.c.b16 %v952, %v949
      %v983 = vpack.c.b16 %v953, %v950
      %v984 = vpack.c.b16 %v954, %v951
      %v985 = vpack.c.b16 %v958, %v955
      %v986 = vpack.c.b16 %v959, %v956
      %v987 = vpack.c.b16 %v960, %v957
      %v988 = vpack.c.b16 %v964, %v961
      %v989 = vpack.c.b16 %v965, %v962
      %v990 = vpack.c.b16 %v966, %v963
      %1015 = vmatpush.bf16.msra.mxu0 %v988
      %1016 = vmatpush.bf16.msra.mxu0 %v985
      %1017 = vmatpush.bf16.msra.mxu0 %v982
      %1018 = vmatpush.bf16.msra.mxu0 %v979
      %1019 = vmatpush.bf16.msra.mxu0 %v976
      %1020 = vmatpush.bf16.msra.mxu0 %v973
      %1021 = vmatpush.bf16.msra.mxu0 %v970
      %1022 = vmatpush.bf16.msra.mxu0 %v967
      %1023 = vmatmul.bf16.gmra.mxu0 %v831
      %v1024 = vpop.f32.mrf.mxu0
      %v1025 = vadd.f32 %v881, %v1024
      %v1026 = vpop.f32.mrf.mxu0
      %v1027 = vadd.f32 %v881, %v1026
      %1028 = vmatmul.bf16.gmra.mxu0 %v832
      %v1029 = vpop.f32.mrf.mxu0
      %v1030 = vadd.f32 %v881, %v1029
      %v1031 = vpop.f32.mrf.mxu0
      %v1032 = vadd.f32 %v881, %v1031
      %1033 = vmatmul.bf16.gmra.mxu0 %v833
      %v1034 = vpop.f32.mrf.mxu0
      %v1035 = vadd.f32 %v881, %v1034
      %v1036 = vpop.f32.mrf.mxu0
      %v1037 = vadd.f32 %v881, %v1036
      %1038 = vmatmul.bf16.gmra.mxu0 %v834
      %v1039 = vpop.f32.mrf.mxu0
      %v1040 = vadd.f32 %v881, %v1039
      %v1041 = vpop.f32.mrf.mxu0
      %v1042 = vadd.f32 %v881, %v1041
      %1043 = vmatmul.bf16.gmra.mxu0 %v835
      %v1044 = vpop.f32.mrf.mxu0
      %v1045 = vadd.f32 %v881, %v1044
      %v1046 = vpop.f32.mrf.mxu0
      %v1047 = vadd.f32 %v881, %v1046
      %1048 = vmatmul.bf16.gmra.mxu0 %v836
      %v1049 = vpop.f32.mrf.mxu0
      %v1050 = vadd.f32 %v881, %v1049
      %v1051 = vpop.f32.mrf.mxu0
      %v1052 = vadd.f32 %v881, %v1051
      %1053 = vmatmul.bf16.gmra.mxu0 %v837
      %v1054 = vpop.f32.mrf.mxu0
      %v1055 = vadd.f32 %v881, %v1054
      %v1056 = vpop.f32.mrf.mxu0
      %v1057 = vadd.f32 %v881, %v1056
      %1058 = vmatmul.bf16.gmra.mxu0 %v838
      %v1059 = vpop.f32.mrf.mxu0
      %v1060 = vadd.f32 %v881, %v1059
      %v1061 = vpop.f32.mrf.mxu0
      %v1062 = vadd.f32 %v881, %v1061
      %1063 = vmatmul.bf16.gmra.mxu0 %v839
      %v1064 = vpop.f32.mrf.mxu0
      %v1065 = vadd.f32 %v881, %v1064
      %v1066 = vpop.f32.mrf.mxu0
      %v1067 = vadd.f32 %v881, %v1066
      %1068 = vmatmul.bf16.gmra.mxu0 %v840
      %v1069 = vpop.f32.mrf.mxu0
      %v1070 = vadd.f32 %v881, %v1069
      %v1071 = vpop.f32.mrf.mxu0
      %v1072 = vadd.f32 %v881, %v1071
      %1073 = vmatmul.bf16.gmra.mxu0 %v841
      %v1074 = vpop.f32.mrf.mxu0
      %v1075 = vadd.f32 %v881, %v1074
      %v1076 = vpop.f32.mrf.mxu0
      %v1077 = vadd.f32 %v881, %v1076
      %1078 = vmatmul.bf16.gmra.mxu0 %v842
      %v1079 = vpop.f32.mrf.mxu0
      %v1080 = vadd.f32 %v881, %v1079
      %v1081 = vpop.f32.mrf.mxu0
      %v1082 = vadd.f32 %v881, %v1081
      %1083 = vmatmul.bf16.gmra.mxu0 %v843
      %v1084 = vpop.f32.mrf.mxu0
      %v1085 = vadd.f32 %v881, %v1084
      %v1086 = vpop.f32.mrf.mxu0
      %v1087 = vadd.f32 %v881, %v1086
      %1088 = vmatmul.bf16.gmra.mxu0 %v844
      %v1089 = vpop.f32.mrf.mxu0
      %v1090 = vadd.f32 %v881, %v1089
      %v1091 = vpop.f32.mrf.mxu0
      %v1092 = vadd.f32 %v881, %v1091
      %1093 = vmatmul.bf16.gmra.mxu0 %v845
      %v1094 = vpop.f32.mrf.mxu0
      %v1095 = vadd.f32 %v881, %v1094
      %v1096 = vpop.f32.mrf.mxu0
      %v1097 = vadd.f32 %v881, %v1096
      %1098 = vmatmul.bf16.gmra.mxu0 %v846
      %v1099 = vpop.f32.mrf.mxu0
      %v1100 = vadd.f32 %v881, %v1099
      %v1101 = vpop.f32.mrf.mxu0
      %v1102 = vadd.f32 %v881, %v1101
      %1103 = vdwg.mxu0
      %1104 = vmatpush.bf16.msra.mxu0 %v989
      %1105 = vmatpush.bf16.msra.mxu0 %v986
      %1106 = vmatpush.bf16.msra.mxu0 %v983
      %1107 = vmatpush.bf16.msra.mxu0 %v980
      %1108 = vmatpush.bf16.msra.mxu0 %v977
      %1109 = vmatpush.bf16.msra.mxu0 %v974
      %1110 = vmatpush.bf16.msra.mxu0 %v971
      %1111 = vmatpush.bf16.msra.mxu0 %v968
      %1112 = vmatmul.bf16.gmra.mxu0 %v831
      %v1113 = vpop.f32.mrf.mxu0
      %v1114 = vadd.f32 %v882, %v1113
      %v1115 = vpop.f32.mrf.mxu0
      %v1116 = vadd.f32 %v882, %v1115
      %1117 = vmatmul.bf16.gmra.mxu0 %v832
      %v1118 = vpop.f32.mrf.mxu0
      %v1119 = vadd.f32 %v882, %v1118
      %v1120 = vpop.f32.mrf.mxu0
      %v1121 = vadd.f32 %v882, %v1120
      %1122 = vmatmul.bf16.gmra.mxu0 %v833
      %v1123 = vpop.f32.mrf.mxu0
      %v1124 = vadd.f32 %v882, %v1123
      %v1125 = vpop.f32.mrf.mxu0
      %v1126 = vadd.f32 %v882, %v1125
      %1127 = vmatmul.bf16.gmra.mxu0 %v834
      %v1128 = vpop.f32.mrf.mxu0
      %v1129 = vadd.f32 %v882, %v1128
      %v1130 = vpop.f32.mrf.mxu0
      %v1131 = vadd.f32 %v882, %v1130
      %1132 = vmatmul.bf16.gmra.mxu0 %v835
      %v1133 = vpop.f32.mrf.mxu0
      %v1134 = vadd.f32 %v882, %v1133
      %v1135 = vpop.f32.mrf.mxu0
      %v1136 = vadd.f32 %v882, %v1135
      %1137 = vmatmul.bf16.gmra.mxu0 %v836
      %v1138 = vpop.f32.mrf.mxu0
      %v1139 = vadd.f32 %v882, %v1138
      %v1140 = vpop.f32.mrf.mxu0
      %v1141 = vadd.f32 %v882, %v1140
      %1142 = vmatmul.bf16.gmra.mxu0 %v837
      %v1143 = vpop.f32.mrf.mxu0
      %v1144 = vadd.f32 %v882, %v1143
      %v1145 = vpop.f32.mrf.mxu0
      %v1146 = vadd.f32 %v882, %v1145
      %1147 = vmatmul.bf16.gmra.mxu0 %v838
      %v1148 = vpop.f32.mrf.mxu0
      %v1149 = vadd.f32 %v882, %v1148
      %v1150 = vpop.f32.mrf.mxu0
      %v1151 = vadd.f32 %v882, %v1150
      %1152 = vmatmul.bf16.gmra.mxu0 %v839
      %v1153 = vpop.f32.mrf.mxu0
      %v1154 = vadd.f32 %v882, %v1153
      %v1155 = vpop.f32.mrf.mxu0
      %v1156 = vadd.f32 %v882, %v1155
      %1157 = vmatmul.bf16.gmra.mxu0 %v840
      %v1158 = vpop.f32.mrf.mxu0
      %v1159 = vadd.f32 %v882, %v1158
      %v1160 = vpop.f32.mrf.mxu0
      %v1161 = vadd.f32 %v882, %v1160
      %1162 = vmatmul.bf16.gmra.mxu0 %v841
      %v1163 = vpop.f32.mrf.mxu0
      %v1164 = vadd.f32 %v882, %v1163
      %v1165 = vpop.f32.mrf.mxu0
      %v1166 = vadd.f32 %v882, %v1165
      %1167 = vmatmul.bf16.gmra.mxu0 %v842
      %v1168 = vpop.f32.mrf.mxu0
      %v1169 = vadd.f32 %v882, %v1168
      %v1170 = vpop.f32.mrf.mxu0
      %v1171 = vadd.f32 %v882, %v1170
      %1172 = vmatmul.bf16.gmra.mxu0 %v843
      %v1173 = vpop.f32.mrf.mxu0
      %v1174 = vadd.f32 %v882, %v1173
      %v1175 = vpop.f32.mrf.mxu0
      %v1176 = vadd.f32 %v882, %v1175
      %1177 = vmatmul.bf16.gmra.mxu0 %v844
      %v1178 = vpop.f32.mrf.mxu0
      %v1179 = vadd.f32 %v882, %v1178
      %v1180 = vpop.f32.mrf.mxu0
      %v1181 = vadd.f32 %v882, %v1180
      %1182 = vmatmul.bf16.gmra.mxu0 %v845
      %v1183 = vpop.f32.mrf.mxu0
      %v1184 = vadd.f32 %v882, %v1183
      %v1185 = vpop.f32.mrf.mxu0
      %v1186 = vadd.f32 %v882, %v1185
      %1187 = vmatmul.bf16.gmra.mxu0 %v846
      %v1188 = vpop.f32.mrf.mxu0
      %v1189 = vadd.f32 %v882, %v1188
      %v1190 = vpop.f32.mrf.mxu0
      %v1191 = vadd.f32 %v882, %v1190
      %1192 = vdwg.mxu0
      %1193 = vmatpush.bf16.msra.mxu0 %v990
      %1194 = vmatpush.bf16.msra.mxu0 %v987
      %1195 = vmatpush.bf16.msra.mxu0 %v984
      %1196 = vmatpush.bf16.msra.mxu0 %v981
      %1197 = vmatpush.bf16.msra.mxu0 %v978
      %1198 = vmatpush.bf16.msra.mxu0 %v975
      %1199 = vmatpush.bf16.msra.mxu0 %v972
      %1200 = vmatpush.bf16.msra.mxu0 %v969
      %1201 = vmatmul.bf16.gmra.mxu0 %v831
      %v1202 = vpop.f32.mrf.mxu0
      %v1203 = vadd.f32 %v883, %v1202
      %v1204 = vpop.f32.mrf.mxu0
      %v1205 = vadd.f32 %v883, %v1204
      %1206 = vmatmul.bf16.gmra.mxu0 %v832
      %v1207 = vpop.f32.mrf.mxu0
      %v1208 = vadd.f32 %v883, %v1207
      %v1209 = vpop.f32.mrf.mxu0
      %v1210 = vadd.f32 %v883, %v1209
      %1211 = vmatmul.bf16.gmra.mxu0 %v833
      %v1212 = vpop.f32.mrf.mxu0
      %v1213 = vadd.f32 %v883, %v1212
      %v1214 = vpop.f32.mrf.mxu0
      %v1215 = vadd.f32 %v883, %v1214
      %1216 = vmatmul.bf16.gmra.mxu0 %v834
      %v1217 = vpop.f32.mrf.mxu0
      %v1218 = vadd.f32 %v883, %v1217
      %v1219 = vpop.f32.mrf.mxu0
      %v1220 = vadd.f32 %v883, %v1219
      %1221 = vmatmul.bf16.gmra.mxu0 %v835
      %v1222 = vpop.f32.mrf.mxu0
      %v1223 = vadd.f32 %v883, %v1222
      %v1224 = vpop.f32.mrf.mxu0
      %v1225 = vadd.f32 %v883, %v1224
      %1226 = vmatmul.bf16.gmra.mxu0 %v836
      %v1227 = vpop.f32.mrf.mxu0
      %v1228 = vadd.f32 %v883, %v1227
      %v1229 = vpop.f32.mrf.mxu0
      %v1230 = vadd.f32 %v883, %v1229
      %1231 = vmatmul.bf16.gmra.mxu0 %v837
      %v1232 = vpop.f32.mrf.mxu0
      %v1233 = vadd.f32 %v883, %v1232
      %v1234 = vpop.f32.mrf.mxu0
      %v1235 = vadd.f32 %v883, %v1234
      %1236 = vmatmul.bf16.gmra.mxu0 %v838
      %v1237 = vpop.f32.mrf.mxu0
      %v1238 = vadd.f32 %v883, %v1237
      %v1239 = vpop.f32.mrf.mxu0
      %v1240 = vadd.f32 %v883, %v1239
      %1241 = vmatmul.bf16.gmra.mxu0 %v839
      %v1242 = vpop.f32.mrf.mxu0
      %v1243 = vadd.f32 %v883, %v1242
      %v1244 = vpop.f32.mrf.mxu0
      %v1245 = vadd.f32 %v883, %v1244
      %1246 = vmatmul.bf16.gmra.mxu0 %v840
      %v1247 = vpop.f32.mrf.mxu0
      %v1248 = vadd.f32 %v883, %v1247
      %v1249 = vpop.f32.mrf.mxu0
      %v1250 = vadd.f32 %v883, %v1249
      %1251 = vmatmul.bf16.gmra.mxu0 %v841
      %v1252 = vpop.f32.mrf.mxu0
      %v1253 = vadd.f32 %v883, %v1252
      %v1254 = vpop.f32.mrf.mxu0
      %v1255 = vadd.f32 %v883, %v1254
      %1256 = vmatmul.bf16.gmra.mxu0 %v842
      %v1257 = vpop.f32.mrf.mxu0
      %v1258 = vadd.f32 %v883, %v1257
      %v1259 = vpop.f32.mrf.mxu0
      %v1260 = vadd.f32 %v883, %v1259
      %1261 = vmatmul.bf16.gmra.mxu0 %v843
      %v1262 = vpop.f32.mrf.mxu0
      %v1263 = vadd.f32 %v883, %v1262
      %v1264 = vpop.f32.mrf.mxu0
      %v1265 = vadd.f32 %v883, %v1264
      %1266 = vmatmul.bf16.gmra.mxu0 %v844
      %v1267 = vpop.f32.mrf.mxu0
      %v1268 = vadd.f32 %v883, %v1267
      %v1269 = vpop.f32.mrf.mxu0
      %v1270 = vadd.f32 %v883, %v1269
      %1271 = vmatmul.bf16.gmra.mxu0 %v845
      %v1272 = vpop.f32.mrf.mxu0
      %v1273 = vadd.f32 %v883, %v1272
      %v1274 = vpop.f32.mrf.mxu0
      %v1275 = vadd.f32 %v883, %v1274
      %1276 = vmatmul.bf16.gmra.mxu0 %v846
      %v1277 = vpop.f32.mrf.mxu0
      %v1278 = vadd.f32 %v883, %v1277
      %v1279 = vpop.f32.mrf.mxu0
      %v1280 = vadd.f32 %v883, %v1279
      %1281 = vdwg.mxu0
      %v1282 = vlaneseq
      %v1283 = vshrl.u32 %v1282, 7
      %v1284 = vadd.s32 %v1283, 8
      %v1285 = vadd.s32 %v1283, 16
      %v1286 = vadd.s32 %v1283, 24
      %v1287 = vadd.s32 %v1283, 32
      %v1288 = vadd.s32 %v1283, 40
      %v1289 = vadd.s32 %v1283, 48
      %v1290 = vadd.s32 %v1283, 56
      %v1291 = vadd.s32 %v1283, 64
      %v1292 = vadd.s32 %v1283, 72
      %v1293 = vadd.s32 %v1283, 80
      %v1294 = vadd.s32 %v1283, 88
      %v1295 = vadd.s32 %v1283, 96
      %v1296 = vadd.s32 %v1283, 104
      %v1297 = vadd.s32 %v1283, 112
      %v1298 = vadd.s32 %v1283, 120
      %v1299 = vadd.s32 %v1283, 128
      %v1300 = vadd.s32 %v1283, 136
      %v1301 = vadd.s32 %v1283, 144
      %v1302 = vadd.s32 %v1283, 152
      %v1303 = vadd.s32 %v1283, 160
      %v1304 = vadd.s32 %v1283, 168
      %v1305 = vadd.s32 %v1283, 176
      %v1306 = vadd.s32 %v1283, 184
      %v1307 = vadd.s32 %v1283, 192
      %v1308 = vadd.s32 %v1283, 200
      %v1309 = vadd.s32 %v1283, 208
      %v1310 = vadd.s32 %v1283, 216
      %v1311 = vadd.s32 %v1283, 224
      %v1312 = vadd.s32 %v1283, 232
      %v1313 = vadd.s32 %v1283, 240
      %v1314 = vadd.s32 %v1283, 248
      %v1315 = vrot.slane %v1203, 7
      %v1316 = vrot.slane %v1205, 7
      %v1317 = vrot.slane %v1208, 7
      %v1318 = vrot.slane %v1210, 7
      %v1319 = vrot.slane %v1213, 7
      %v1320 = vrot.slane %v1215, 7
      %v1321 = vrot.slane %v1218, 7
      %v1322 = vrot.slane %v1220, 7
      %v1323 = vrot.slane %v1223, 7
      %v1324 = vrot.slane %v1225, 7
      %v1325 = vrot.slane %v1228, 7
      %v1326 = vrot.slane %v1230, 7
      %v1327 = vrot.slane %v1233, 7
      %v1328 = vrot.slane %v1235, 7
      %v1329 = vrot.slane %v1238, 7
      %v1330 = vrot.slane %v1240, 7
      %v1331 = vrot.slane %v1243, 7
      %v1332 = vrot.slane %v1245, 7
      %v1333 = vrot.slane %v1248, 7
      %v1334 = vrot.slane %v1250, 7
      %v1335 = vrot.slane %v1253, 7
      %v1336 = vrot.slane %v1255, 7
      %v1337 = vrot.slane %v1258, 7
      %v1338 = vrot.slane %v1260, 7
      %v1339 = vrot.slane %v1263, 7
      %v1340 = vrot.slane %v1265, 7
      %v1341 = vrot.slane %v1268, 7
      %v1342 = vrot.slane %v1270, 7
      %v1343 = vrot.slane %v1273, 7
      %v1344 = vrot.slane %v1275, 7
      %v1345 = vrot.slane %v1278, 7
      %v1346 = vrot.slane %v1280, 7
      %vm1347 = vcmp.lt.s32.totalorder %v1283, 1
      %v1348 = vsel %vm1347, %v1345, %v1346
      %v1349 = vsel %vm1347, %v1344, %v1345
      %v1350 = vsel %vm1347, %v1343, %v1344
      %v1351 = vsel %vm1347, %v1342, %v1343
      %v1352 = vsel %vm1347, %v1341, %v1342
      %v1353 = vsel %vm1347, %v1340, %v1341
      %v1354 = vsel %vm1347, %v1339, %v1340
      %v1355 = vsel %vm1347, %v1338, %v1339
      %v1356 = vsel %vm1347, %v1337, %v1338
      %v1357 = vsel %vm1347, %v1336, %v1337
      %v1358 = vsel %vm1347, %v1335, %v1336
      %v1359 = vsel %vm1347, %v1334, %v1335
      %v1360 = vsel %vm1347, %v1333, %v1334
      %v1361 = vsel %vm1347, %v1332, %v1333
      %v1362 = vsel %vm1347, %v1331, %v1332
      %v1363 = vsel %vm1347, %v1330, %v1331
      %v1364 = vsel %vm1347, %v1329, %v1330
      %v1365 = vsel %vm1347, %v1328, %v1329
      %v1366 = vsel %vm1347, %v1327, %v1328
      %v1367 = vsel %vm1347, %v1326, %v1327
      %v1368 = vsel %vm1347, %v1325, %v1326
      %v1369 = vsel %vm1347, %v1324, %v1325
      %v1370 = vsel %vm1347, %v1323, %v1324
      %v1371 = vsel %vm1347, %v1322, %v1323
      %v1372 = vsel %vm1347, %v1321, %v1322
      %v1373 = vsel %vm1347, %v1320, %v1321
      %v1374 = vsel %vm1347, %v1319, %v1320
      %v1375 = vsel %vm1347, %v1318, %v1319
      %v1376 = vsel %vm1347, %v1317, %v1318
      %v1377 = vsel %vm1347, %v1316, %v1317
      %v1378 = vsel %vm1347, %v1315, %v1316
      %v1379 = vsel %vm1347, %v1346, %v1315
      %v1380 = vrot.slane %v1203, 6
      %v1381 = vrot.slane %v1205, 6
      %v1382 = vrot.slane %v1208, 6
      %v1383 = vrot.slane %v1210, 6
      %v1384 = vrot.slane %v1213, 6
      %v1385 = vrot.slane %v1215, 6
      %v1386 = vrot.slane %v1218, 6
      %v1387 = vrot.slane %v1220, 6
      %v1388 = vrot.slane %v1223, 6
      %v1389 = vrot.slane %v1225, 6
      %v1390 = vrot.slane %v1228, 6
      %v1391 = vrot.slane %v1230, 6
      %v1392 = vrot.slane %v1233, 6
      %v1393 = vrot.slane %v1235, 6
      %v1394 = vrot.slane %v1238, 6
      %v1395 = vrot.slane %v1240, 6
      %v1396 = vrot.slane %v1243, 6
      %v1397 = vrot.slane %v1245, 6
      %v1398 = vrot.slane %v1248, 6
      %v1399 = vrot.slane %v1250, 6
      %v1400 = vrot.slane %v1253, 6
      %v1401 = vrot.slane %v1255, 6
      %v1402 = vrot.slane %v1258, 6
      %v1403 = vrot.slane %v1260, 6
      %v1404 = vrot.slane %v1263, 6
      %v1405 = vrot.slane %v1265, 6
      %v1406 = vrot.slane %v1268, 6
      %v1407 = vrot.slane %v1270, 6
      %v1408 = vrot.slane %v1273, 6
      %v1409 = vrot.slane %v1275, 6
      %v1410 = vrot.slane %v1278, 6
      %v1411 = vrot.slane %v1280, 6
      %vm1412 = vcmp.lt.s32.totalorder %v1283, 2
      %v1413 = vsel %vm1412, %v1410, %v1411
      %v1414 = vsel %vm1412, %v1409, %v1410
      %v1415 = vsel %vm1412, %v1408, %v1409
      %v1416 = vsel %vm1412, %v1407, %v1408
      %v1417 = vsel %vm1412, %v1406, %v1407
      %v1418 = vsel %vm1412, %v1405, %v1406
      %v1419 = vsel %vm1412, %v1404, %v1405
      %v1420 = vsel %vm1412, %v1403, %v1404
      %v1421 = vsel %vm1412, %v1402, %v1403
      %v1422 = vsel %vm1412, %v1401, %v1402
      %v1423 = vsel %vm1412, %v1400, %v1401
      %v1424 = vsel %vm1412, %v1399, %v1400
      %v1425 = vsel %vm1412, %v1398, %v1399
      %v1426 = vsel %vm1412, %v1397, %v1398
      %v1427 = vsel %vm1412, %v1396, %v1397
      %v1428 = vsel %vm1412, %v1395, %v1396
      %v1429 = vsel %vm1412, %v1394, %v1395
      %v1430 = vsel %vm1412, %v1393, %v1394
      %v1431 = vsel %vm1412, %v1392, %v1393
      %v1432 = vsel %vm1412, %v1391, %v1392
      %v1433 = vsel %vm1412, %v1390, %v1391
      %v1434 = vsel %vm1412, %v1389, %v1390
      %v1435 = vsel %vm1412, %v1388, %v1389
      %v1436 = vsel %vm1412, %v1387, %v1388
      %v1437 = vsel %vm1412, %v1386, %v1387
      %v1438 = vsel %vm1412, %v1385, %v1386
      %v1439 = vsel %vm1412, %v1384, %v1385
      %v1440 = vsel %vm1412, %v1383, %v1384
      %v1441 = vsel %vm1412, %v1382, %v1383
      %v1442 = vsel %vm1412, %v1381, %v1382
      %v1443 = vsel %vm1412, %v1380, %v1381
      %v1444 = vsel %vm1412, %v1411, %v1380
      %vm1445 = vcmp.ge.s32.totalorder %v1283, 1
      %vm1446 = vcmp.ge.s32.totalorder %v1284, 1
      %vm1447 = vcmp.ge.s32.totalorder %v1285, 1
      %vm1448 = vcmp.ge.s32.totalorder %v1286, 1
      %vm1449 = vcmp.ge.s32.totalorder %v1287, 1
      %vm1450 = vcmp.ge.s32.totalorder %v1288, 1
      %vm1451 = vcmp.ge.s32.totalorder %v1289, 1
      %vm1452 = vcmp.ge.s32.totalorder %v1290, 1
      %vm1453 = vcmp.ge.s32.totalorder %v1291, 1
      %vm1454 = vcmp.ge.s32.totalorder %v1292, 1
      %vm1455 = vcmp.ge.s32.totalorder %v1293, 1
      %vm1456 = vcmp.ge.s32.totalorder %v1294, 1
      %vm1457 = vcmp.ge.s32.totalorder %v1295, 1
      %vm1458 = vcmp.ge.s32.totalorder %v1296, 1
      %vm1459 = vcmp.ge.s32.totalorder %v1297, 1
      %vm1460 = vcmp.ge.s32.totalorder %v1298, 1
      %vm1461 = vcmp.ge.s32.totalorder %v1299, 1
      %vm1462 = vcmp.ge.s32.totalorder %v1300, 1
      %vm1463 = vcmp.ge.s32.totalorder %v1301, 1
      %vm1464 = vcmp.ge.s32.totalorder %v1302, 1
      %vm1465 = vcmp.ge.s32.totalorder %v1303, 1
      %vm1466 = vcmp.ge.s32.totalorder %v1304, 1
      %vm1467 = vcmp.ge.s32.totalorder %v1305, 1
      %vm1468 = vcmp.ge.s32.totalorder %v1306, 1
      %vm1469 = vcmp.ge.s32.totalorder %v1307, 1
      %vm1470 = vcmp.ge.s32.totalorder %v1308, 1
      %vm1471 = vcmp.ge.s32.totalorder %v1309, 1
      %vm1472 = vcmp.ge.s32.totalorder %v1310, 1
      %vm1473 = vcmp.ge.s32.totalorder %v1311, 1
      %vm1474 = vcmp.ge.s32.totalorder %v1312, 1
      %vm1475 = vcmp.ge.s32.totalorder %v1313, 1
      %vm1476 = vcmp.ge.s32.totalorder %v1314, 1
      %v1477 = vperm.slane %v467, 1
      %v1478 = vsel %vm1445, %v1379, %v1477
      %v1479 = vsel %vm1446, %v1378, %v1477
      %v1480 = vsel %vm1447, %v1377, %v1477
      %v1481 = vsel %vm1448, %v1376, %v1477
      %v1482 = vsel %vm1449, %v1375, %v1477
      %v1483 = vsel %vm1450, %v1374, %v1477
      %v1484 = vsel %vm1451, %v1373, %v1477
      %v1485 = vsel %vm1452, %v1372, %v1477
      %v1486 = vsel %vm1453, %v1371, %v1477
      %v1487 = vsel %vm1454, %v1370, %v1477
      %v1488 = vsel %vm1455, %v1369, %v1477
      %v1489 = vsel %vm1456, %v1368, %v1477
      %v1490 = vsel %vm1457, %v1367, %v1477
      %v1491 = vsel %vm1458, %v1366, %v1477
      %v1492 = vsel %vm1459, %v1365, %v1477
      %v1493 = vsel %vm1460, %v1364, %v1477
      %v1494 = vsel %vm1461, %v1363, %v1477
      %v1495 = vsel %vm1462, %v1362, %v1477
      %v1496 = vsel %vm1463, %v1361, %v1477
      %v1497 = vsel %vm1464, %v1360, %v1477
      %v1498 = vsel %vm1465, %v1359, %v1477
      %v1499 = vsel %vm1466, %v1358, %v1477
      %v1500 = vsel %vm1467, %v1357, %v1477
      %v1501 = vsel %vm1468, %v1356, %v1477
      %v1502 = vsel %vm1469, %v1355, %v1477
      %v1503 = vsel %vm1470, %v1354, %v1477
      %v1504 = vsel %vm1471, %v1353, %v1477
      %v1505 = vsel %vm1472, %v1352, %v1477
      %v1506 = vsel %vm1473, %v1351, %v1477
      %v1507 = vsel %vm1474, %v1350, %v1477
      %v1508 = vsel %vm1475, %v1349, %v1477
      %v1509 = vsel %vm1476, %v1348, %v1477
      %vm1510 = vcmp.ge.s32.totalorder %v1283, 2
      %vm1511 = vcmp.ge.s32.totalorder %v1284, 2
      %vm1512 = vcmp.ge.s32.totalorder %v1285, 2
      %vm1513 = vcmp.ge.s32.totalorder %v1286, 2
      %vm1514 = vcmp.ge.s32.totalorder %v1287, 2
      %vm1515 = vcmp.ge.s32.totalorder %v1288, 2
      %vm1516 = vcmp.ge.s32.totalorder %v1289, 2
      %vm1517 = vcmp.ge.s32.totalorder %v1290, 2
      %vm1518 = vcmp.ge.s32.totalorder %v1291, 2
      %vm1519 = vcmp.ge.s32.totalorder %v1292, 2
      %vm1520 = vcmp.ge.s32.totalorder %v1293, 2
      %vm1521 = vcmp.ge.s32.totalorder %v1294, 2
      %vm1522 = vcmp.ge.s32.totalorder %v1295, 2
      %vm1523 = vcmp.ge.s32.totalorder %v1296, 2
      %vm1524 = vcmp.ge.s32.totalorder %v1297, 2
      %vm1525 = vcmp.ge.s32.totalorder %v1298, 2
      %vm1526 = vcmp.ge.s32.totalorder %v1299, 2
      %vm1527 = vcmp.ge.s32.totalorder %v1300, 2
      %vm1528 = vcmp.ge.s32.totalorder %v1301, 2
      %vm1529 = vcmp.ge.s32.totalorder %v1302, 2
      %vm1530 = vcmp.ge.s32.totalorder %v1303, 2
      %vm1531 = vcmp.ge.s32.totalorder %v1304, 2
      %vm1532 = vcmp.ge.s32.totalorder %v1305, 2
      %vm1533 = vcmp.ge.s32.totalorder %v1306, 2
      %vm1534 = vcmp.ge.s32.totalorder %v1307, 2
      %vm1535 = vcmp.ge.s32.totalorder %v1308, 2
      %vm1536 = vcmp.ge.s32.totalorder %v1309, 2
      %vm1537 = vcmp.ge.s32.totalorder %v1310, 2
      %vm1538 = vcmp.ge.s32.totalorder %v1311, 2
      %vm1539 = vcmp.ge.s32.totalorder %v1312, 2
      %vm1540 = vcmp.ge.s32.totalorder %v1313, 2
      %vm1541 = vcmp.ge.s32.totalorder %v1314, 2
      %v1542 = vperm.slane %v467, 0
      %v1543 = vsel %vm1445, %v1477, %v1542
      %v1544 = vsel %vm1446, %v1477, %v1542
      %v1545 = vsel %vm1447, %v1477, %v1542
      %v1546 = vsel %vm1448, %v1477, %v1542
      %v1547 = vsel %vm1449, %v1477, %v1542
      %v1548 = vsel %vm1450, %v1477, %v1542
      %v1549 = vsel %vm1451, %v1477, %v1542
      %v1550 = vsel %vm1452, %v1477, %v1542
      %v1551 = vsel %vm1453, %v1477, %v1542
      %v1552 = vsel %vm1454, %v1477, %v1542
      %v1553 = vsel %vm1455, %v1477, %v1542
      %v1554 = vsel %vm1456, %v1477, %v1542
      %v1555 = vsel %vm1457, %v1477, %v1542
      %v1556 = vsel %vm1458, %v1477, %v1542
      %v1557 = vsel %vm1459, %v1477, %v1542
      %v1558 = vsel %vm1460, %v1477, %v1542
      %v1559 = vsel %vm1461, %v1477, %v1542
      %v1560 = vsel %vm1462, %v1477, %v1542
      %v1561 = vsel %vm1463, %v1477, %v1542
      %v1562 = vsel %vm1464, %v1477, %v1542
      %v1563 = vsel %vm1465, %v1477, %v1542
      %v1564 = vsel %vm1466, %v1477, %v1542
      %v1565 = vsel %vm1467, %v1477, %v1542
      %v1566 = vsel %vm1468, %v1477, %v1542
      %v1567 = vsel %vm1469, %v1477, %v1542
      %v1568 = vsel %vm1470, %v1477, %v1542
      %v1569 = vsel %vm1471, %v1477, %v1542
      %v1570 = vsel %vm1472, %v1477, %v1542
      %v1571 = vsel %vm1473, %v1477, %v1542
      %v1572 = vsel %vm1474, %v1477, %v1542
      %v1573 = vsel %vm1475, %v1477, %v1542
      %v1574 = vsel %vm1476, %v1477, %v1542
      %v1575 = vsel %vm1510, %v1444, %v1543
      %v1576 = vsel %vm1511, %v1443, %v1544
      %v1577 = vsel %vm1512, %v1442, %v1545
      %v1578 = vsel %vm1513, %v1441, %v1546
      %v1579 = vsel %vm1514, %v1440, %v1547
      %v1580 = vsel %vm1515, %v1439, %v1548
      %v1581 = vsel %vm1516, %v1438, %v1549
      %v1582 = vsel %vm1517, %v1437, %v1550
      %v1583 = vsel %vm1518, %v1436, %v1551
      %v1584 = vsel %vm1519, %v1435, %v1552
      %v1585 = vsel %vm1520, %v1434, %v1553
      %v1586 = vsel %vm1521, %v1433, %v1554
      %v1587 = vsel %vm1522, %v1432, %v1555
      %v1588 = vsel %vm1523, %v1431, %v1556
      %v1589 = vsel %vm1524, %v1430, %v1557
      %v1590 = vsel %vm1525, %v1429, %v1558
      %v1591 = vsel %vm1526, %v1428, %v1559
      %v1592 = vsel %vm1527, %v1427, %v1560
      %v1593 = vsel %vm1528, %v1426, %v1561
      %v1594 = vsel %vm1529, %v1425, %v1562
      %v1595 = vsel %vm1530, %v1424, %v1563
      %v1596 = vsel %vm1531, %v1423, %v1564
      %v1597 = vsel %vm1532, %v1422, %v1565
      %v1598 = vsel %vm1533, %v1421, %v1566
      %v1599 = vsel %vm1534, %v1420, %v1567
      %v1600 = vsel %vm1535, %v1419, %v1568
      %v1601 = vsel %vm1536, %v1418, %v1569
      %v1602 = vsel %vm1537, %v1417, %v1570
      %v1603 = vsel %vm1538, %v1416, %v1571
      %v1604 = vsel %vm1539, %v1415, %v1572
      %v1605 = vsel %vm1540, %v1414, %v1573
      %v1606 = vsel %vm1541, %v1413, %v1574
      %v1607 = vld [vmem:[%s5] sm:$0x7]
      %v1608 = vperm.slane %v1607, 0
      %v1609 = vmul.f32 %v1203, %v1608
      %v1610 = vmul.f32 %v1205, %v1608
      %v1611 = vmul.f32 %v1208, %v1608
      %v1612 = vmul.f32 %v1210, %v1608
      %v1613 = vmul.f32 %v1213, %v1608
      %v1614 = vmul.f32 %v1215, %v1608
      %v1615 = vmul.f32 %v1218, %v1608
      %v1616 = vmul.f32 %v1220, %v1608
      %v1617 = vmul.f32 %v1223, %v1608
      %v1618 = vmul.f32 %v1225, %v1608
      %v1619 = vmul.f32 %v1228, %v1608
      %v1620 = vmul.f32 %v1230, %v1608
      %v1621 = vmul.f32 %v1233, %v1608
      %v1622 = vmul.f32 %v1235, %v1608
      %v1623 = vmul.f32 %v1238, %v1608
      %v1624 = vmul.f32 %v1240, %v1608
      %v1625 = vmul.f32 %v1243, %v1608
      %v1626 = vmul.f32 %v1245, %v1608
      %v1627 = vmul.f32 %v1248, %v1608
      %v1628 = vmul.f32 %v1250, %v1608
      %v1629 = vmul.f32 %v1253, %v1608
      %v1630 = vmul.f32 %v1255, %v1608
      %v1631 = vmul.f32 %v1258, %v1608
      %v1632 = vmul.f32 %v1260, %v1608
      %v1633 = vmul.f32 %v1263, %v1608
      %v1634 = vmul.f32 %v1265, %v1608
      %v1635 = vmul.f32 %v1268, %v1608
      %v1636 = vmul.f32 %v1270, %v1608
      %v1637 = vmul.f32 %v1273, %v1608
      %v1638 = vmul.f32 %v1275, %v1608
      %v1639 = vmul.f32 %v1278, %v1608
      %v1640 = vmul.f32 %v1280, %v1608
      %v1641 = vperm.slane %v1607, 1
      %v1642 = vmul.f32 %v1478, %v1641
      %v1643 = vmul.f32 %v1479, %v1641
      %v1644 = vmul.f32 %v1480, %v1641
      %v1645 = vmul.f32 %v1481, %v1641
      %v1646 = vmul.f32 %v1482, %v1641
      %v1647 = vmul.f32 %v1483, %v1641
      %v1648 = vmul.f32 %v1484, %v1641
      %v1649 = vmul.f32 %v1485, %v1641
      %v1650 = vmul.f32 %v1486, %v1641
      %v1651 = vmul.f32 %v1487, %v1641
      %v1652 = vmul.f32 %v1488, %v1641
      %v1653 = vmul.f32 %v1489, %v1641
      %v1654 = vmul.f32 %v1490, %v1641
      %v1655 = vmul.f32 %v1491, %v1641
      %v1656 = vmul.f32 %v1492, %v1641
      %v1657 = vmul.f32 %v1493, %v1641
      %v1658 = vmul.f32 %v1494, %v1641
      %v1659 = vmul.f32 %v1495, %v1641
      %v1660 = vmul.f32 %v1496, %v1641
      %v1661 = vmul.f32 %v1497, %v1641
      %v1662 = vmul.f32 %v1498, %v1641
      %v1663 = vmul.f32 %v1499, %v1641
      %v1664 = vmul.f32 %v1500, %v1641
      %v1665 = vmul.f32 %v1501, %v1641
      %v1666 = vmul.f32 %v1502, %v1641
      %v1667 = vmul.f32 %v1503, %v1641
      %v1668 = vmul.f32 %v1504, %v1641
      %v1669 = vmul.f32 %v1505, %v1641
      %v1670 = vmul.f32 %v1506, %v1641
      %v1671 = vmul.f32 %v1507, %v1641
      %v1672 = vmul.f32 %v1508, %v1641
      %v1673 = vmul.f32 %v1509, %v1641
      %v1674 = vadd.f32 %v1609, %v1642
      %v1675 = vadd.f32 %v1610, %v1643
      %v1676 = vadd.f32 %v1611, %v1644
      %v1677 = vadd.f32 %v1612, %v1645
      %v1678 = vadd.f32 %v1613, %v1646
      %v1679 = vadd.f32 %v1614, %v1647
      %v1680 = vadd.f32 %v1615, %v1648
      %v1681 = vadd.f32 %v1616, %v1649
      %v1682 = vadd.f32 %v1617, %v1650
      %v1683 = vadd.f32 %v1618, %v1651
      %v1684 = vadd.f32 %v1619, %v1652
      %v1685 = vadd.f32 %v1620, %v1653
      %v1686 = vadd.f32 %v1621, %v1654
      %v1687 = vadd.f32 %v1622, %v1655
      %v1688 = vadd.f32 %v1623, %v1656
      %v1689 = vadd.f32 %v1624, %v1657
      %v1690 = vadd.f32 %v1625, %v1658
      %v1691 = vadd.f32 %v1626, %v1659
      %v1692 = vadd.f32 %v1627, %v1660
      %v1693 = vadd.f32 %v1628, %v1661
      %v1694 = vadd.f32 %v1629, %v1662
      %v1695 = vadd.f32 %v1630, %v1663
      %v1696 = vadd.f32 %v1631, %v1664
      %v1697 = vadd.f32 %v1632, %v1665
      %v1698 = vadd.f32 %v1633, %v1666
      %v1699 = vadd.f32 %v1634, %v1667
      %v1700 = vadd.f32 %v1635, %v1668
      %v1701 = vadd.f32 %v1636, %v1669
      %v1702 = vadd.f32 %v1637, %v1670
      %v1703 = vadd.f32 %v1638, %v1671
      %v1704 = vadd.f32 %v1639, %v1672
      %v1705 = vadd.f32 %v1640, %v1673
      %v1706 = vperm.slane %v1607, 2
      %v1707 = vmul.f32 %v1575, %v1706
      %v1708 = vmul.f32 %v1576, %v1706
      %v1709 = vmul.f32 %v1577, %v1706
      %v1710 = vmul.f32 %v1578, %v1706
      %v1711 = vmul.f32 %v1579, %v1706
      %v1712 = vmul.f32 %v1580, %v1706
      %v1713 = vmul.f32 %v1581, %v1706
      %v1714 = vmul.f32 %v1582, %v1706
      %v1715 = vmul.f32 %v1583, %v1706
      %v1716 = vmul.f32 %v1584, %v1706
      %v1717 = vmul.f32 %v1585, %v1706
      %v1718 = vmul.f32 %v1586, %v1706
      %v1719 = vmul.f32 %v1587, %v1706
      %v1720 = vmul.f32 %v1588, %v1706
      %v1721 = vmul.f32 %v1589, %v1706
      %v1722 = vmul.f32 %v1590, %v1706
      %v1723 = vmul.f32 %v1591, %v1706
      %v1724 = vmul.f32 %v1592, %v1706
      %v1725 = vmul.f32 %v1593, %v1706
      %v1726 = vmul.f32 %v1594, %v1706
      %v1727 = vmul.f32 %v1595, %v1706
      %v1728 = vmul.f32 %v1596, %v1706
      %v1729 = vmul.f32 %v1597, %v1706
      %v1730 = vmul.f32 %v1598, %v1706
      %v1731 = vmul.f32 %v1599, %v1706
      %v1732 = vmul.f32 %v1600, %v1706
      %v1733 = vmul.f32 %v1601, %v1706
      %v1734 = vmul.f32 %v1602, %v1706
      %v1735 = vmul.f32 %v1603, %v1706
      %v1736 = vmul.f32 %v1604, %v1706
      %v1737 = vmul.f32 %v1605, %v1706
      %v1738 = vmul.f32 %v1606, %v1706
      %v1739 = vadd.f32 %v1674, %v1707
      %v1740 = vadd.f32 %v1675, %v1708
      %v1741 = vadd.f32 %v1676, %v1709
      %v1742 = vadd.f32 %v1677, %v1710
      %v1743 = vadd.f32 %v1678, %v1711
      %v1744 = vadd.f32 %v1679, %v1712
      %v1745 = vadd.f32 %v1680, %v1713
      %v1746 = vadd.f32 %v1681, %v1714
      %v1747 = vadd.f32 %v1682, %v1715
      %v1748 = vadd.f32 %v1683, %v1716
      %v1749 = vadd.f32 %v1684, %v1717
      %v1750 = vadd.f32 %v1685, %v1718
      %v1751 = vadd.f32 %v1686, %v1719
      %v1752 = vadd.f32 %v1687, %v1720
      %v1753 = vadd.f32 %v1688, %v1721
      %v1754 = vadd.f32 %v1689, %v1722
      %v1755 = vadd.f32 %v1690, %v1723
      %v1756 = vadd.f32 %v1691, %v1724
      %v1757 = vadd.f32 %v1692, %v1725
      %v1758 = vadd.f32 %v1693, %v1726
      %v1759 = vadd.f32 %v1694, %v1727
      %v1760 = vadd.f32 %v1695, %v1728
      %v1761 = vadd.f32 %v1696, %v1729
      %v1762 = vadd.f32 %v1697, %v1730
      %v1763 = vadd.f32 %v1698, %v1731
      %v1764 = vadd.f32 %v1699, %v1732
      %v1765 = vadd.f32 %v1700, %v1733
      %v1766 = vadd.f32 %v1701, %v1734
      %v1767 = vadd.f32 %v1702, %v1735
      %v1768 = vadd.f32 %v1703, %v1736
      %v1769 = vadd.f32 %v1704, %v1737
      %v1770 = vadd.f32 %v1705, %v1738
      %1771 = vst [vmem:[#allocation2 - $0x6] sm:$0xc0] %v1280
      %v1772 = vmul.f32 %v1114, %v1739
      %v1773 = vmul.f32 %v1116, %v1740
      %v1774 = vmul.f32 %v1119, %v1741
      %v1775 = vmul.f32 %v1121, %v1742
      %v1776 = vmul.f32 %v1124, %v1743
      %v1777 = vmul.f32 %v1126, %v1744
      %v1778 = vmul.f32 %v1129, %v1745
      %v1779 = vmul.f32 %v1131, %v1746
      %v1780 = vmul.f32 %v1134, %v1747
      %v1781 = vmul.f32 %v1136, %v1748
      %v1782 = vmul.f32 %v1139, %v1749
      %v1783 = vmul.f32 %v1141, %v1750
      %v1784 = vmul.f32 %v1144, %v1751
      %v1785 = vmul.f32 %v1146, %v1752
      %v1786 = vmul.f32 %v1149, %v1753
      %v1787 = vmul.f32 %v1151, %v1754
      %v1788 = vmul.f32 %v1154, %v1755
      %v1789 = vmul.f32 %v1156, %v1756
      %v1790 = vmul.f32 %v1159, %v1757
      %v1791 = vmul.f32 %v1161, %v1758
      %v1792 = vmul.f32 %v1164, %v1759
      %v1793 = vmul.f32 %v1166, %v1760
      %v1794 = vmul.f32 %v1169, %v1761
      %v1795 = vmul.f32 %v1171, %v1762
      %v1796 = vmul.f32 %v1174, %v1763
      %v1797 = vmul.f32 %v1176, %v1764
      %v1798 = vmul.f32 %v1179, %v1765
      %v1799 = vmul.f32 %v1181, %v1766
      %v1800 = vmul.f32 %v1184, %v1767
      %v1801 = vmul.f32 %v1186, %v1768
      %v1802 = vmul.f32 %v1189, %v1769
      %v1803 = vmul.f32 %v1191, %v1770
      %v1804 = vxor.u32 %v1772, 2147483648
      %v1805 = vxor.u32 %v1773, 2147483648
      %v1806 = vxor.u32 %v1774, 2147483648
      %v1807 = vxor.u32 %v1775, 2147483648
      %v1808 = vxor.u32 %v1776, 2147483648
      %v1809 = vxor.u32 %v1777, 2147483648
      %v1810 = vxor.u32 %v1778, 2147483648
      %v1811 = vxor.u32 %v1779, 2147483648
      %v1812 = vxor.u32 %v1780, 2147483648
      %v1813 = vxor.u32 %v1781, 2147483648
      %v1814 = vxor.u32 %v1782, 2147483648
      %v1815 = vxor.u32 %v1783, 2147483648
      %v1816 = vxor.u32 %v1784, 2147483648
      %v1817 = vxor.u32 %v1785, 2147483648
      %v1818 = vxor.u32 %v1786, 2147483648
      %v1819 = vxor.u32 %v1787, 2147483648
      %v1820 = vxor.u32 %v1788, 2147483648
      %v1821 = vxor.u32 %v1789, 2147483648
      %v1822 = vxor.u32 %v1790, 2147483648
      %v1823 = vxor.u32 %v1791, 2147483648
      %v1824 = vxor.u32 %v1792, 2147483648
      %v1825 = vxor.u32 %v1793, 2147483648
      %v1826 = vxor.u32 %v1794, 2147483648
      %v1827 = vxor.u32 %v1795, 2147483648
      %v1828 = vxor.u32 %v1796, 2147483648
      %v1829 = vxor.u32 %v1797, 2147483648
      %v1830 = vxor.u32 %v1798, 2147483648
      %v1831 = vxor.u32 %v1799, 2147483648
      %v1832 = vxor.u32 %v1800, 2147483648
      %v1833 = vxor.u32 %v1801, 2147483648
      %v1834 = vxor.u32 %v1802, 2147483648
      %v1835 = vxor.u32 %v1803, 2147483648
      %v1836 = vmul.f32 %v1804, 1.442695
      %v1837 = vpow.pop %v1836
      %v1838 = vmul.f32 %v1805, 1.442695
      %v1839 = vpow.pop %v1838
      %v1840 = vmul.f32 %v1806, 1.442695
      %v1841 = vpow.pop %v1840
      %v1842 = vmul.f32 %v1807, 1.442695
      %v1843 = vpow.pop %v1842
      %v1844 = vmul.f32 %v1808, 1.442695
      %v1845 = vpow.pop %v1844
      %v1846 = vmul.f32 %v1809, 1.442695
      %v1847 = vpow.pop %v1846
      %v1848 = vmul.f32 %v1810, 1.442695
      %v1849 = vpow.pop %v1848
      %v1850 = vmul.f32 %v1811, 1.442695
      %v1851 = vpow.pop %v1850
      %v1852 = vmul.f32 %v1812, 1.442695
      %v1853 = vpow.pop %v1852
      %v1854 = vmul.f32 %v1813, 1.442695
      %v1855 = vpow.pop %v1854
      %v1856 = vmul.f32 %v1814, 1.442695
      %v1857 = vpow.pop %v1856
      %v1858 = vmul.f32 %v1815, 1.442695
      %v1859 = vpow.pop %v1858
      %v1860 = vmul.f32 %v1816, 1.442695
      %v1861 = vpow.pop %v1860
      %v1862 = vmul.f32 %v1817, 1.442695
      %v1863 = vpow.pop %v1862
      %v1864 = vmul.f32 %v1818, 1.442695
      %v1865 = vpow.pop %v1864
      %v1866 = vmul.f32 %v1819, 1.442695
      %v1867 = vpow.pop %v1866
      %v1868 = vmul.f32 %v1820, 1.442695
      %v1869 = vpow.pop %v1868
      %v1870 = vmul.f32 %v1821, 1.442695
      %v1871 = vpow.pop %v1870
      %v1872 = vmul.f32 %v1822, 1.442695
      %v1873 = vpow.pop %v1872
      %v1874 = vmul.f32 %v1823, 1.442695
      %v1875 = vpow.pop %v1874
      %v1876 = vmul.f32 %v1824, 1.442695
      %v1877 = vpow.pop %v1876
      %v1878 = vmul.f32 %v1825, 1.442695
      %v1879 = vpow.pop %v1878
      %v1880 = vmul.f32 %v1826, 1.442695
      %v1881 = vpow.pop %v1880
      %v1882 = vmul.f32 %v1827, 1.442695
      %v1883 = vpow.pop %v1882
      %v1884 = vmul.f32 %v1828, 1.442695
      %v1885 = vpow.pop %v1884
      %v1886 = vmul.f32 %v1829, 1.442695
      %v1887 = vpow.pop %v1886
      %v1888 = vmul.f32 %v1830, 1.442695
      %v1889 = vpow.pop %v1888
      %v1890 = vmul.f32 %v1831, 1.442695
      %v1891 = vpow.pop %v1890
      %v1892 = vmul.f32 %v1832, 1.442695
      %v1893 = vpow.pop %v1892
      %v1894 = vmul.f32 %v1833, 1.442695
      %v1895 = vpow.pop %v1894
      %v1896 = vmul.f32 %v1834, 1.442695
      %v1897 = vpow.pop %v1896
      %v1898 = vmul.f32 %v1835, 1.442695
      %v1899 = vpow.pop %v1898
      %v1900 = vadd.f32 %v1837, 1.0
      %v1901 = vadd.f32 %v1839, 1.0
      %v1902 = vadd.f32 %v1841, 1.0
      %v1903 = vadd.f32 %v1843, 1.0
      %v1904 = vadd.f32 %v1845, 1.0
      %v1905 = vadd.f32 %v1847, 1.0
      %v1906 = vadd.f32 %v1849, 1.0
      %v1907 = vadd.f32 %v1851, 1.0
      %v1908 = vadd.f32 %v1853, 1.0
      %v1909 = vadd.f32 %v1855, 1.0
      %v1910 = vadd.f32 %v1857, 1.0
      %v1911 = vadd.f32 %v1859, 1.0
      %v1912 = vadd.f32 %v1861, 1.0
      %v1913 = vadd.f32 %v1863, 1.0
      %v1914 = vadd.f32 %v1865, 1.0
      %v1915 = vadd.f32 %v1867, 1.0
      %v1916 = vadd.f32 %v1869, 1.0
      %v1917 = vadd.f32 %v1871, 1.0
      %v1918 = vadd.f32 %v1873, 1.0
      %v1919 = vadd.f32 %v1875, 1.0
      %v1920 = vadd.f32 %v1877, 1.0
      %v1921 = vadd.f32 %v1879, 1.0
      %v1922 = vadd.f32 %v1881, 1.0
      %v1923 = vadd.f32 %v1883, 1.0
      %v1924 = vadd.f32 %v1885, 1.0
      %v1925 = vadd.f32 %v1887, 1.0
      %v1926 = vadd.f32 %v1889, 1.0
      %v1927 = vadd.f32 %v1891, 1.0
      %v1928 = vadd.f32 %v1893, 1.0
      %v1929 = vadd.f32 %v1895, 1.0
      %v1930 = vadd.f32 %v1897, 1.0
      %v1931 = vadd.f32 %v1899, 1.0
      %v1932 = vrcp.pop %v1900
      %v1933 = vmul.f32 %v1900, %v1932
      %v1934 = vsub.f32 1.0, %v1933
      %v1935 = vmul.f32 %v1932, %v1934
      %v1936 = vadd.f32 %v1932, %v1935
      %vm1937 = vweird.f32 %v1900
      %vm1938 = vweird.f32 %v1932
      %vm1939 = vmor %vm1937, %vm1938
      %v1940 = vsel %vm1939, %v1932, %v1936
      %v1941 = vand.u32 2147483647, %v1900
      %vm1942 = vcmp.eq.f32.partialorder %v1941, 8.507059e+37
      %v1943 = vand.u32 %v1900, 2147483648
      %v1944 = vor.u32 1.1754944e-38, %v1943
      %v1945 = vsel %vm1942, %v1944, %v1940
      %v1946 = vmul.f32 1.0, %v1945
      %v1947 = vrcp.pop %v1901
      %v1948 = vmul.f32 %v1901, %v1947
      %v1949 = vsub.f32 1.0, %v1948
      %v1950 = vmul.f32 %v1947, %v1949
      %v1951 = vadd.f32 %v1947, %v1950
      %vm1952 = vweird.f32 %v1901
      %vm1953 = vweird.f32 %v1947
      %vm1954 = vmor %vm1952, %vm1953
      %v1955 = vsel %vm1954, %v1947, %v1951
      %v1956 = vand.u32 2147483647, %v1901
      %vm1957 = vcmp.eq.f32.partialorder %v1956, 8.507059e+37
      %v1958 = vand.u32 %v1901, 2147483648
      %v1959 = vor.u32 1.1754944e-38, %v1958
      %v1960 = vsel %vm1957, %v1959, %v1955
      %v1961 = vmul.f32 1.0, %v1960
      %v1962 = vrcp.pop %v1902
      %v1963 = vmul.f32 %v1902, %v1962
      %v1964 = vsub.f32 1.0, %v1963
      %v1965 = vmul.f32 %v1962, %v1964
      %v1966 = vadd.f32 %v1962, %v1965
      %vm1967 = vweird.f32 %v1902
      %vm1968 = vweird.f32 %v1962
      %vm1969 = vmor %vm1967, %vm1968
      %v1970 = vsel %vm1969, %v1962, %v1966
      %v1971 = vand.u32 2147483647, %v1902
      %vm1972 = vcmp.eq.f32.partialorder %v1971, 8.507059e+37
      %v1973 = vand.u32 %v1902, 2147483648
      %v1974 = vor.u32 1.1754944e-38, %v1973
      %v1975 = vsel %vm1972, %v1974, %v1970
      %v1976 = vmul.f32 1.0, %v1975
      %v1977 = vrcp.pop %v1903
      %v1978 = vmul.f32 %v1903, %v1977
      %v1979 = vsub.f32 1.0, %v1978
      %v1980 = vmul.f32 %v1977, %v1979
      %v1981 = vadd.f32 %v1977, %v1980
      %vm1982 = vweird.f32 %v1903
      %vm1983 = vweird.f32 %v1977
      %vm1984 = vmor %vm1982, %vm1983
      %v1985 = vsel %vm1984, %v1977, %v1981
      %v1986 = vand.u32 2147483647, %v1903
      %vm1987 = vcmp.eq.f32.partialorder %v1986, 8.507059e+37
      %v1988 = vand.u32 %v1903, 2147483648
      %v1989 = vor.u32 1.1754944e-38, %v1988
      %v1990 = vsel %vm1987, %v1989, %v1985
      %v1991 = vmul.f32 1.0, %v1990
      %v1992 = vrcp.pop %v1904
      %v1993 = vmul.f32 %v1904, %v1992
      %v1994 = vsub.f32 1.0, %v1993
      %v1995 = vmul.f32 %v1992, %v1994
      %v1996 = vadd.f32 %v1992, %v1995
      %vm1997 = vweird.f32 %v1904
      %vm1998 = vweird.f32 %v1992
      %vm1999 = vmor %vm1997, %vm1998
      %v2000 = vsel %vm1999, %v1992, %v1996
      %v2001 = vand.u32 2147483647, %v1904
      %vm2002 = vcmp.eq.f32.partialorder %v2001, 8.507059e+37
      %v2003 = vand.u32 %v1904, 2147483648
      %v2004 = vor.u32 1.1754944e-38, %v2003
      %v2005 = vsel %vm2002, %v2004, %v2000
      %v2006 = vmul.f32 1.0, %v2005
      %v2007 = vrcp.pop %v1905
      %v2008 = vmul.f32 %v1905, %v2007
      %v2009 = vsub.f32 1.0, %v2008
      %v2010 = vmul.f32 %v2007, %v2009
      %v2011 = vadd.f32 %v2007, %v2010
      %vm2012 = vweird.f32 %v1905
      %vm2013 = vweird.f32 %v2007
      %vm2014 = vmor %vm2012, %vm2013
      %v2015 = vsel %vm2014, %v2007, %v2011
      %v2016 = vand.u32 2147483647, %v1905
      %vm2017 = vcmp.eq.f32.partialorder %v2016, 8.507059e+37
      %v2018 = vand.u32 %v1905, 2147483648
      %v2019 = vor.u32 1.1754944e-38, %v2018
      %v2020 = vsel %vm2017, %v2019, %v2015
      %v2021 = vmul.f32 1.0, %v2020
      %v2022 = vrcp.pop %v1906
      %v2023 = vmul.f32 %v1906, %v2022
      %v2024 = vsub.f32 1.0, %v2023
      %v2025 = vmul.f32 %v2022, %v2024
      %v2026 = vadd.f32 %v2022, %v2025
      %vm2027 = vweird.f32 %v1906
      %vm2028 = vweird.f32 %v2022
      %vm2029 = vmor %vm2027, %vm2028
      %v2030 = vsel %vm2029, %v2022, %v2026
      %v2031 = vand.u32 2147483647, %v1906
      %vm2032 = vcmp.eq.f32.partialorder %v2031, 8.507059e+37
      %v2033 = vand.u32 %v1906, 2147483648
      %v2034 = vor.u32 1.1754944e-38, %v2033
      %v2035 = vsel %vm2032, %v2034, %v2030
      %v2036 = vmul.f32 1.0, %v2035
      %v2037 = vrcp.pop %v1907
      %v2038 = vmul.f32 %v1907, %v2037
      %v2039 = vsub.f32 1.0, %v2038
      %v2040 = vmul.f32 %v2037, %v2039
      %v2041 = vadd.f32 %v2037, %v2040
      %vm2042 = vweird.f32 %v1907
      %vm2043 = vweird.f32 %v2037
      %vm2044 = vmor %vm2042, %vm2043
      %v2045 = vsel %vm2044, %v2037, %v2041
      %v2046 = vand.u32 2147483647, %v1907
      %vm2047 = vcmp.eq.f32.partialorder %v2046, 8.507059e+37
      %v2048 = vand.u32 %v1907, 2147483648
      %v2049 = vor.u32 1.1754944e-38, %v2048
      %v2050 = vsel %vm2047, %v2049, %v2045
      %v2051 = vmul.f32 1.0, %v2050
      %v2052 = vrcp.pop %v1908
      %v2053 = vmul.f32 %v1908, %v2052
      %v2054 = vsub.f32 1.0, %v2053
      %v2055 = vmul.f32 %v2052, %v2054
      %v2056 = vadd.f32 %v2052, %v2055
      %vm2057 = vweird.f32 %v1908
      %vm2058 = vweird.f32 %v2052
      %vm2059 = vmor %vm2057, %vm2058
      %v2060 = vsel %vm2059, %v2052, %v2056
      %v2061 = vand.u32 2147483647, %v1908
      %vm2062 = vcmp.eq.f32.partialorder %v2061, 8.507059e+37
      %v2063 = vand.u32 %v1908, 2147483648
      %v2064 = vor.u32 1.1754944e-38, %v2063
      %v2065 = vsel %vm2062, %v2064, %v2060
      %v2066 = vmul.f32 1.0, %v2065
      %v2067 = vrcp.pop %v1909
      %v2068 = vmul.f32 %v1909, %v2067
      %v2069 = vsub.f32 1.0, %v2068
      %v2070 = vmul.f32 %v2067, %v2069
      %v2071 = vadd.f32 %v2067, %v2070
      %vm2072 = vweird.f32 %v1909
      %vm2073 = vweird.f32 %v2067
      %vm2074 = vmor %vm2072, %vm2073
      %v2075 = vsel %vm2074, %v2067, %v2071
      %v2076 = vand.u32 2147483647, %v1909
      %vm2077 = vcmp.eq.f32.partialorder %v2076, 8.507059e+37
      %v2078 = vand.u32 %v1909, 2147483648
      %v2079 = vor.u32 1.1754944e-38, %v2078
      %v2080 = vsel %vm2077, %v2079, %v2075
      %v2081 = vmul.f32 1.0, %v2080
      %v2082 = vrcp.pop %v1910
      %v2083 = vmul.f32 %v1910, %v2082
      %v2084 = vsub.f32 1.0, %v2083
      %v2085 = vmul.f32 %v2082, %v2084
      %v2086 = vadd.f32 %v2082, %v2085
      %vm2087 = vweird.f32 %v1910
      %vm2088 = vweird.f32 %v2082
      %vm2089 = vmor %vm2087, %vm2088
      %v2090 = vsel %vm2089, %v2082, %v2086
      %v2091 = vand.u32 2147483647, %v1910
      %vm2092 = vcmp.eq.f32.partialorder %v2091, 8.507059e+37
      %v2093 = vand.u32 %v1910, 2147483648
      %v2094 = vor.u32 1.1754944e-38, %v2093
      %v2095 = vsel %vm2092, %v2094, %v2090
      %v2096 = vmul.f32 1.0, %v2095
      %v2097 = vrcp.pop %v1911
      %v2098 = vmul.f32 %v1911, %v2097
      %v2099 = vsub.f32 1.0, %v2098
      %v2100 = vmul.f32 %v2097, %v2099
      %v2101 = vadd.f32 %v2097, %v2100
      %vm2102 = vweird.f32 %v1911
      %vm2103 = vweird.f32 %v2097
      %vm2104 = vmor %vm2102, %vm2103
      %v2105 = vsel %vm2104, %v2097, %v2101
      %v2106 = vand.u32 2147483647, %v1911
      %vm2107 = vcmp.eq.f32.partialorder %v2106, 8.507059e+37
      %v2108 = vand.u32 %v1911, 2147483648
      %v2109 = vor.u32 1.1754944e-38, %v2108
      %v2110 = vsel %vm2107, %v2109, %v2105
      %v2111 = vmul.f32 1.0, %v2110
      %v2112 = vrcp.pop %v1912
      %v2113 = vmul.f32 %v1912, %v2112
      %v2114 = vsub.f32 1.0, %v2113
      %v2115 = vmul.f32 %v2112, %v2114
      %v2116 = vadd.f32 %v2112, %v2115
      %vm2117 = vweird.f32 %v1912
      %vm2118 = vweird.f32 %v2112
      %vm2119 = vmor %vm2117, %vm2118
      %v2120 = vsel %vm2119, %v2112, %v2116
      %v2121 = vand.u32 2147483647, %v1912
      %vm2122 = vcmp.eq.f32.partialorder %v2121, 8.507059e+37
      %v2123 = vand.u32 %v1912, 2147483648
      %v2124 = vor.u32 1.1754944e-38, %v2123
      %v2125 = vsel %vm2122, %v2124, %v2120
      %v2126 = vmul.f32 1.0, %v2125
      %v2127 = vrcp.pop %v1913
      %v2128 = vmul.f32 %v1913, %v2127
      %v2129 = vsub.f32 1.0, %v2128
      %v2130 = vmul.f32 %v2127, %v2129
      %v2131 = vadd.f32 %v2127, %v2130
      %vm2132 = vweird.f32 %v1913
      %vm2133 = vweird.f32 %v2127
      %vm2134 = vmor %vm2132, %vm2133
      %v2135 = vsel %vm2134, %v2127, %v2131
      %v2136 = vand.u32 2147483647, %v1913
      %vm2137 = vcmp.eq.f32.partialorder %v2136, 8.507059e+37
      %v2138 = vand.u32 %v1913, 2147483648
      %v2139 = vor.u32 1.1754944e-38, %v2138
      %v2140 = vsel %vm2137, %v2139, %v2135
      %v2141 = vmul.f32 1.0, %v2140
      %v2142 = vrcp.pop %v1914
      %v2143 = vmul.f32 %v1914, %v2142
      %v2144 = vsub.f32 1.0, %v2143
      %v2145 = vmul.f32 %v2142, %v2144
      %v2146 = vadd.f32 %v2142, %v2145
      %vm2147 = vweird.f32 %v1914
      %vm2148 = vweird.f32 %v2142
      %vm2149 = vmor %vm2147, %vm2148
      %v2150 = vsel %vm2149, %v2142, %v2146
      %v2151 = vand.u32 2147483647, %v1914
      %vm2152 = vcmp.eq.f32.partialorder %v2151, 8.507059e+37
      %v2153 = vand.u32 %v1914, 2147483648
      %v2154 = vor.u32 1.1754944e-38, %v2153
      %v2155 = vsel %vm2152, %v2154, %v2150
      %v2156 = vmul.f32 1.0, %v2155
      %v2157 = vrcp.pop %v1915
      %v2158 = vmul.f32 %v1915, %v2157
      %v2159 = vsub.f32 1.0, %v2158
      %v2160 = vmul.f32 %v2157, %v2159
      %v2161 = vadd.f32 %v2157, %v2160
      %vm2162 = vweird.f32 %v1915
      %vm2163 = vweird.f32 %v2157
      %vm2164 = vmor %vm2162, %vm2163
      %v2165 = vsel %vm2164, %v2157, %v2161
      %v2166 = vand.u32 2147483647, %v1915
      %vm2167 = vcmp.eq.f32.partialorder %v2166, 8.507059e+37
      %v2168 = vand.u32 %v1915, 2147483648
      %v2169 = vor.u32 1.1754944e-38, %v2168
      %v2170 = vsel %vm2167, %v2169, %v2165
      %v2171 = vmul.f32 1.0, %v2170
      %v2172 = vrcp.pop %v1916
      %v2173 = vmul.f32 %v1916, %v2172
      %v2174 = vsub.f32 1.0, %v2173
      %v2175 = vmul.f32 %v2172, %v2174
      %v2176 = vadd.f32 %v2172, %v2175
      %vm2177 = vweird.f32 %v1916
      %vm2178 = vweird.f32 %v2172
      %vm2179 = vmor %vm2177, %vm2178
      %v2180 = vsel %vm2179, %v2172, %v2176
      %v2181 = vand.u32 2147483647, %v1916
      %vm2182 = vcmp.eq.f32.partialorder %v2181, 8.507059e+37
      %v2183 = vand.u32 %v1916, 2147483648
      %v2184 = vor.u32 1.1754944e-38, %v2183
      %v2185 = vsel %vm2182, %v2184, %v2180
      %v2186 = vmul.f32 1.0, %v2185
      %v2187 = vrcp.pop %v1917
      %v2188 = vmul.f32 %v1917, %v2187
      %v2189 = vsub.f32 1.0, %v2188
      %v2190 = vmul.f32 %v2187, %v2189
      %v2191 = vadd.f32 %v2187, %v2190
      %vm2192 = vweird.f32 %v1917
      %vm2193 = vweird.f32 %v2187
      %vm2194 = vmor %vm2192, %vm2193
      %v2195 = vsel %vm2194, %v2187, %v2191
      %v2196 = vand.u32 2147483647, %v1917
      %vm2197 = vcmp.eq.f32.partialorder %v2196, 8.507059e+37
      %v2198 = vand.u32 %v1917, 2147483648
      %v2199 = vor.u32 1.1754944e-38, %v2198
      %v2200 = vsel %vm2197, %v2199, %v2195
      %v2201 = vmul.f32 1.0, %v2200
      %v2202 = vrcp.pop %v1918
      %v2203 = vmul.f32 %v1918, %v2202
      %v2204 = vsub.f32 1.0, %v2203
      %v2205 = vmul.f32 %v2202, %v2204
      %v2206 = vadd.f32 %v2202, %v2205
      %vm2207 = vweird.f32 %v1918
      %vm2208 = vweird.f32 %v2202
      %vm2209 = vmor %vm2207, %vm2208
      %v2210 = vsel %vm2209, %v2202, %v2206
      %v2211 = vand.u32 2147483647, %v1918
      %vm2212 = vcmp.eq.f32.partialorder %v2211, 8.507059e+37
      %v2213 = vand.u32 %v1918, 2147483648
      %v2214 = vor.u32 1.1754944e-38, %v2213
      %v2215 = vsel %vm2212, %v2214, %v2210
      %v2216 = vmul.f32 1.0, %v2215
      %v2217 = vrcp.pop %v1919
      %v2218 = vmul.f32 %v1919, %v2217
      %v2219 = vsub.f32 1.0, %v2218
      %v2220 = vmul.f32 %v2217, %v2219
      %v2221 = vadd.f32 %v2217, %v2220
      %vm2222 = vweird.f32 %v1919
      %vm2223 = vweird.f32 %v2217
      %vm2224 = vmor %vm2222, %vm2223
      %v2225 = vsel %vm2224, %v2217, %v2221
      %v2226 = vand.u32 2147483647, %v1919
      %vm2227 = vcmp.eq.f32.partialorder %v2226, 8.507059e+37
      %v2228 = vand.u32 %v1919, 2147483648
      %v2229 = vor.u32 1.1754944e-38, %v2228
      %v2230 = vsel %vm2227, %v2229, %v2225
      %v2231 = vmul.f32 1.0, %v2230
      %v2232 = vrcp.pop %v1920
      %v2233 = vmul.f32 %v1920, %v2232
      %v2234 = vsub.f32 1.0, %v2233
      %v2235 = vmul.f32 %v2232, %v2234
      %v2236 = vadd.f32 %v2232, %v2235
      %vm2237 = vweird.f32 %v1920
      %vm2238 = vweird.f32 %v2232
      %vm2239 = vmor %vm2237, %vm2238
      %v2240 = vsel %vm2239, %v2232, %v2236
      %v2241 = vand.u32 2147483647, %v1920
      %vm2242 = vcmp.eq.f32.partialorder %v2241, 8.507059e+37
      %v2243 = vand.u32 %v1920, 2147483648
      %v2244 = vor.u32 1.1754944e-38, %v2243
      %v2245 = vsel %vm2242, %v2244, %v2240
      %v2246 = vmul.f32 1.0, %v2245
      %v2247 = vrcp.pop %v1921
      %v2248 = vmul.f32 %v1921, %v2247
      %v2249 = vsub.f32 1.0, %v2248
      %v2250 = vmul.f32 %v2247, %v2249
      %v2251 = vadd.f32 %v2247, %v2250
      %vm2252 = vweird.f32 %v1921
      %vm2253 = vweird.f32 %v2247
      %vm2254 = vmor %vm2252, %vm2253
      %v2255 = vsel %vm2254, %v2247, %v2251
      %v2256 = vand.u32 2147483647, %v1921
      %vm2257 = vcmp.eq.f32.partialorder %v2256, 8.507059e+37
      %v2258 = vand.u32 %v1921, 2147483648
      %v2259 = vor.u32 1.1754944e-38, %v2258
      %v2260 = vsel %vm2257, %v2259, %v2255
      %v2261 = vmul.f32 1.0, %v2260
      %v2262 = vrcp.pop %v1922
      %v2263 = vmul.f32 %v1922, %v2262
      %v2264 = vsub.f32 1.0, %v2263
      %v2265 = vmul.f32 %v2262, %v2264
      %v2266 = vadd.f32 %v2262, %v2265
      %vm2267 = vweird.f32 %v1922
      %vm2268 = vweird.f32 %v2262
      %vm2269 = vmor %vm2267, %vm2268
      %v2270 = vsel %vm2269, %v2262, %v2266
      %v2271 = vand.u32 2147483647, %v1922
      %vm2272 = vcmp.eq.f32.partialorder %v2271, 8.507059e+37
      %v2273 = vand.u32 %v1922, 2147483648
      %v2274 = vor.u32 1.1754944e-38, %v2273
      %v2275 = vsel %vm2272, %v2274, %v2270
      %v2276 = vmul.f32 1.0, %v2275
      %v2277 = vrcp.pop %v1923
      %v2278 = vmul.f32 %v1923, %v2277
      %v2279 = vsub.f32 1.0, %v2278
      %v2280 = vmul.f32 %v2277, %v2279
      %v2281 = vadd.f32 %v2277, %v2280
      %vm2282 = vweird.f32 %v1923
      %vm2283 = vweird.f32 %v2277
      %vm2284 = vmor %vm2282, %vm2283
      %v2285 = vsel %vm2284, %v2277, %v2281
      %v2286 = vand.u32 2147483647, %v1923
      %vm2287 = vcmp.eq.f32.partialorder %v2286, 8.507059e+37
      %v2288 = vand.u32 %v1923, 2147483648
      %v2289 = vor.u32 1.1754944e-38, %v2288
      %v2290 = vsel %vm2287, %v2289, %v2285
      %v2291 = vmul.f32 1.0, %v2290
      %v2292 = vrcp.pop %v1924
      %v2293 = vmul.f32 %v1924, %v2292
      %v2294 = vsub.f32 1.0, %v2293
      %v2295 = vmul.f32 %v2292, %v2294
      %v2296 = vadd.f32 %v2292, %v2295
      %vm2297 = vweird.f32 %v1924
      %vm2298 = vweird.f32 %v2292
      %vm2299 = vmor %vm2297, %vm2298
      %v2300 = vsel %vm2299, %v2292, %v2296
      %v2301 = vand.u32 2147483647, %v1924
      %vm2302 = vcmp.eq.f32.partialorder %v2301, 8.507059e+37
      %v2303 = vand.u32 %v1924, 2147483648
      %v2304 = vor.u32 1.1754944e-38, %v2303
      %v2305 = vsel %vm2302, %v2304, %v2300
      %v2306 = vmul.f32 1.0, %v2305
      %v2307 = vrcp.pop %v1925
      %v2308 = vmul.f32 %v1925, %v2307
      %v2309 = vsub.f32 1.0, %v2308
      %v2310 = vmul.f32 %v2307, %v2309
      %v2311 = vadd.f32 %v2307, %v2310
      %vm2312 = vweird.f32 %v1925
      %vm2313 = vweird.f32 %v2307
      %vm2314 = vmor %vm2312, %vm2313
      %v2315 = vsel %vm2314, %v2307, %v2311
      %v2316 = vand.u32 2147483647, %v1925
      %vm2317 = vcmp.eq.f32.partialorder %v2316, 8.507059e+37
      %v2318 = vand.u32 %v1925, 2147483648
      %v2319 = vor.u32 1.1754944e-38, %v2318
      %v2320 = vsel %vm2317, %v2319, %v2315
      %v2321 = vmul.f32 1.0, %v2320
      %v2322 = vrcp.pop %v1926
      %v2323 = vmul.f32 %v1926, %v2322
      %v2324 = vsub.f32 1.0, %v2323
      %v2325 = vmul.f32 %v2322, %v2324
      %v2326 = vadd.f32 %v2322, %v2325
      %vm2327 = vweird.f32 %v1926
      %vm2328 = vweird.f32 %v2322
      %vm2329 = vmor %vm2327, %vm2328
      %v2330 = vsel %vm2329, %v2322, %v2326
      %v2331 = vand.u32 2147483647, %v1926
      %vm2332 = vcmp.eq.f32.partialorder %v2331, 8.507059e+37
      %v2333 = vand.u32 %v1926, 2147483648
      %v2334 = vor.u32 1.1754944e-38, %v2333
      %v2335 = vsel %vm2332, %v2334, %v2330
      %v2336 = vmul.f32 1.0, %v2335
      %v2337 = vrcp.pop %v1927
      %v2338 = vmul.f32 %v1927, %v2337
      %v2339 = vsub.f32 1.0, %v2338
      %v2340 = vmul.f32 %v2337, %v2339
      %v2341 = vadd.f32 %v2337, %v2340
      %vm2342 = vweird.f32 %v1927
      %vm2343 = vweird.f32 %v2337
      %vm2344 = vmor %vm2342, %vm2343
      %v2345 = vsel %vm2344, %v2337, %v2341
      %v2346 = vand.u32 2147483647, %v1927
      %vm2347 = vcmp.eq.f32.partialorder %v2346, 8.507059e+37
      %v2348 = vand.u32 %v1927, 2147483648
      %v2349 = vor.u32 1.1754944e-38, %v2348
      %v2350 = vsel %vm2347, %v2349, %v2345
      %v2351 = vmul.f32 1.0, %v2350
      %v2352 = vrcp.pop %v1928
      %v2353 = vmul.f32 %v1928, %v2352
      %v2354 = vsub.f32 1.0, %v2353
      %v2355 = vmul.f32 %v2352, %v2354
      %v2356 = vadd.f32 %v2352, %v2355
      %vm2357 = vweird.f32 %v1928
      %vm2358 = vweird.f32 %v2352
      %vm2359 = vmor %vm2357, %vm2358
      %v2360 = vsel %vm2359, %v2352, %v2356
      %v2361 = vand.u32 2147483647, %v1928
      %vm2362 = vcmp.eq.f32.partialorder %v2361, 8.507059e+37
      %v2363 = vand.u32 %v1928, 2147483648
      %v2364 = vor.u32 1.1754944e-38, %v2363
      %v2365 = vsel %vm2362, %v2364, %v2360
      %v2366 = vmul.f32 1.0, %v2365
      %v2367 = vrcp.pop %v1929
      %v2368 = vmul.f32 %v1929, %v2367
      %v2369 = vsub.f32 1.0, %v2368
      %v2370 = vmul.f32 %v2367, %v2369
      %v2371 = vadd.f32 %v2367, %v2370
      %vm2372 = vweird.f32 %v1929
      %vm2373 = vweird.f32 %v2367
      %vm2374 = vmor %vm2372, %vm2373
      %v2375 = vsel %vm2374, %v2367, %v2371
      %v2376 = vand.u32 2147483647, %v1929
      %vm2377 = vcmp.eq.f32.partialorder %v2376, 8.507059e+37
      %v2378 = vand.u32 %v1929, 2147483648
      %v2379 = vor.u32 1.1754944e-38, %v2378
      %v2380 = vsel %vm2377, %v2379, %v2375
      %v2381 = vmul.f32 1.0, %v2380
      %v2382 = vrcp.pop %v1930
      %v2383 = vmul.f32 %v1930, %v2382
      %v2384 = vsub.f32 1.0, %v2383
      %v2385 = vmul.f32 %v2382, %v2384
      %v2386 = vadd.f32 %v2382, %v2385
      %vm2387 = vweird.f32 %v1930
      %vm2388 = vweird.f32 %v2382
      %vm2389 = vmor %vm2387, %vm2388
      %v2390 = vsel %vm2389, %v2382, %v2386
      %v2391 = vand.u32 2147483647, %v1930
      %vm2392 = vcmp.eq.f32.partialorder %v2391, 8.507059e+37
      %v2393 = vand.u32 %v1930, 2147483648
      %v2394 = vor.u32 1.1754944e-38, %v2393
      %v2395 = vsel %vm2392, %v2394, %v2390
      %v2396 = vmul.f32 1.0, %v2395
      %v2397 = vrcp.pop %v1931
      %v2398 = vmul.f32 %v1931, %v2397
      %v2399 = vsub.f32 1.0, %v2398
      %v2400 = vmul.f32 %v2397, %v2399
      %v2401 = vadd.f32 %v2397, %v2400
      %vm2402 = vweird.f32 %v1931
      %vm2403 = vweird.f32 %v2397
      %vm2404 = vmor %vm2402, %vm2403
      %v2405 = vsel %vm2404, %v2397, %v2401
      %v2406 = vand.u32 2147483647, %v1931
      %vm2407 = vcmp.eq.f32.partialorder %v2406, 8.507059e+37
      %v2408 = vand.u32 %v1931, 2147483648
      %v2409 = vor.u32 1.1754944e-38, %v2408
      %v2410 = vsel %vm2407, %v2409, %v2405
      %v2411 = vmul.f32 1.0, %v2410
      %v2412 = vmul.f32 %v1772, %v1946
      %v2413 = vmul.f32 %v1773, %v1961
      %v2414 = vmul.f32 %v1774, %v1976
      %v2415 = vmul.f32 %v1775, %v1991
      %v2416 = vmul.f32 %v1776, %v2006
      %v2417 = vmul.f32 %v1777, %v2021
      %v2418 = vmul.f32 %v1778, %v2036
      %v2419 = vmul.f32 %v1779, %v2051
      %v2420 = vmul.f32 %v1780, %v2066
      %v2421 = vmul.f32 %v1781, %v2081
      %v2422 = vmul.f32 %v1782, %v2096
      %v2423 = vmul.f32 %v1783, %v2111
      %v2424 = vmul.f32 %v1784, %v2126
      %v2425 = vmul.f32 %v1785, %v2141
      %v2426 = vmul.f32 %v1786, %v2156
      %v2427 = vmul.f32 %v1787, %v2171
      %v2428 = vmul.f32 %v1788, %v2186
      %v2429 = vmul.f32 %v1789, %v2201
      %v2430 = vmul.f32 %v1790, %v2216
      %v2431 = vmul.f32 %v1791, %v2231
      %v2432 = vmul.f32 %v1792, %v2246
      %v2433 = vmul.f32 %v1793, %v2261
      %v2434 = vmul.f32 %v1794, %v2276
      %v2435 = vmul.f32 %v1795, %v2291
      %v2436 = vmul.f32 %v1796, %v2306
      %v2437 = vmul.f32 %v1797, %v2321
      %v2438 = vmul.f32 %v1798, %v2336
      %v2439 = vmul.f32 %v1799, %v2351
      %v2440 = vmul.f32 %v1800, %v2366
      %v2441 = vmul.f32 %v1801, %v2381
      %v2442 = vmul.f32 %v1802, %v2396
      %v2443 = vmul.f32 %v1803, %v2411
      %v2444 = vmul.f32 %v1025, %v2412
      %v2445 = vmul.f32 %v1027, %v2413
      %v2446 = vmul.f32 %v1030, %v2414
      %v2447 = vmul.f32 %v1032, %v2415
      %v2448 = vmul.f32 %v1035, %v2416
      %v2449 = vmul.f32 %v1037, %v2417
      %v2450 = vmul.f32 %v1040, %v2418
      %v2451 = vmul.f32 %v1042, %v2419
      %v2452 = vmul.f32 %v1045, %v2420
      %v2453 = vmul.f32 %v1047, %v2421
      %v2454 = vmul.f32 %v1050, %v2422
      %v2455 = vmul.f32 %v1052, %v2423
      %v2456 = vmul.f32 %v1055, %v2424
      %v2457 = vmul.f32 %v1057, %v2425
      %v2458 = vmul.f32 %v1060, %v2426
      %v2459 = vmul.f32 %v1062, %v2427
      %v2460 = vmul.f32 %v1065, %v2428
      %v2461 = vmul.f32 %v1067, %v2429
      %v2462 = vmul.f32 %v1070, %v2430
      %v2463 = vmul.f32 %v1072, %v2431
      %v2464 = vmul.f32 %v1075, %v2432
      %v2465 = vmul.f32 %v1077, %v2433
      %v2466 = vmul.f32 %v1080, %v2434
      %v2467 = vmul.f32 %v1082, %v2435
      %v2468 = vmul.f32 %v1085, %v2436
      %v2469 = vmul.f32 %v1087, %v2437
      %v2470 = vmul.f32 %v1090, %v2438
      %v2471 = vmul.f32 %v1092, %v2439
      %v2472 = vmul.f32 %v1095, %v2440
      %v2473 = vmul.f32 %v1097, %v2441
      %v2474 = vmul.f32 %v1100, %v2442
      %v2475 = vmul.f32 %v1102, %v2443
      %v2476 = vpack.c.bf16 %v2445, %v2444
      %v2477 = vpack.c.bf16 %v2447, %v2446
      %v2478 = vpack.c.bf16 %v2449, %v2448
      %v2479 = vpack.c.bf16 %v2451, %v2450
      %v2480 = vpack.c.bf16 %v2453, %v2452
      %v2481 = vpack.c.bf16 %v2455, %v2454
      %v2482 = vpack.c.bf16 %v2457, %v2456
      %v2483 = vpack.c.bf16 %v2459, %v2458
      %v2484 = vpack.c.bf16 %v2461, %v2460
      %v2485 = vpack.c.bf16 %v2463, %v2462
      %v2486 = vpack.c.bf16 %v2465, %v2464
      %v2487 = vpack.c.bf16 %v2467, %v2466
      %v2488 = vpack.c.bf16 %v2469, %v2468
      %v2489 = vpack.c.bf16 %v2471, %v2470
      %v2490 = vpack.c.bf16 %v2473, %v2472
      %v2491 = vpack.c.bf16 %v2475, %v2474
      %v2492 = vld [vmem:[%s6] sm:$0xf]
      %v2493 = vld [vmem:[%s6 + $0x4] sm:$0xf]
      %v2494 = vld [vmem:[%s6 + $0x8] sm:$0xf]
      %v2495 = vld [vmem:[%s6 + $0xc] sm:$0xf]
      %v2496 = vld [vmem:[%s6 + $0x10] sm:$0xf]
      %v2497 = vld [vmem:[%s6 + $0x14] sm:$0xf]
      %v2498 = vld [vmem:[%s6 + $0x18] sm:$0xf]
      %v2499 = vld [vmem:[%s6 + $0x1c] sm:$0xf]
      %v2500 = vld [vmem:[%s6 + $0x20] sm:$0xf]
      %v2501 = vld [vmem:[%s6 + $0x24] sm:$0xf]
      %v2502 = vld [vmem:[%s6 + $0x28] sm:$0xf]
      %v2503 = vld [vmem:[%s6 + $0x2c] sm:$0xf]
      %v2504 = vld [vmem:[%s6 + $0x30] sm:$0xf]
      %v2505 = vld [vmem:[%s6 + $0x34] sm:$0xf]
      %v2506 = vld [vmem:[%s6 + $0x38] sm:$0xf]
      %v2507 = vld [vmem:[%s6 + $0x3c] sm:$0xf]
      %v2508 = vld [vmem:[%s7] sm:$0x1]
      %v2510 = vperm.slane %v2508, 0
      %v2528 = vunpack.c.l.b16 %v2492
      %v2529 = vunpack.c.l.b16 %v2493
      %v2530 = vunpack.c.l.b16 %v2494
      %v2531 = vunpack.c.l.b16 %v2495
      %v2532 = vunpack.c.l.b16 %v2496
      %v2533 = vunpack.c.l.b16 %v2497
      %v2534 = vunpack.c.l.b16 %v2498
      %v2535 = vunpack.c.l.b16 %v2499
      %v2536 = vunpack.c.l.b16 %v2500
      %v2537 = vunpack.c.l.b16 %v2501
      %v2538 = vunpack.c.l.b16 %v2502
      %v2539 = vunpack.c.l.b16 %v2503
      %v2540 = vunpack.c.l.b16 %v2504
      %v2541 = vunpack.c.l.b16 %v2505
      %v2542 = vunpack.c.l.b16 %v2506
      %v2543 = vunpack.c.l.b16 %v2507
      %v2544 = vpack.c.b16 %v2529, %v2528
      %v2545 = vpack.c.b16 %v2531, %v2530
      %v2546 = vpack.c.b16 %v2533, %v2532
      %v2547 = vpack.c.b16 %v2535, %v2534
      %v2548 = vpack.c.b16 %v2537, %v2536
      %v2549 = vpack.c.b16 %v2539, %v2538
      %v2550 = vpack.c.b16 %v2541, %v2540
      %v2551 = vpack.c.b16 %v2543, %v2542
      %2560 = vmatpush.bf16.msra.mxu0 %v2551
      %2561 = vmatpush.bf16.msra.mxu0 %v2550
      %2562 = vmatpush.bf16.msra.mxu0 %v2549
      %2563 = vmatpush.bf16.msra.mxu0 %v2548
      %2564 = vmatpush.bf16.msra.mxu0 %v2547
      %2565 = vmatpush.bf16.msra.mxu0 %v2546
      %2566 = vmatpush.bf16.msra.mxu0 %v2545
      %2567 = vmatpush.bf16.msra.mxu0 %v2544
      %2568 = vmatmul.bf16.gmra.mxu0 %v2476
      %v2569 = vpop.f32.mrf.mxu0
      %v2570 = vadd.f32 %v2510, %v2569
      %v2571 = vpop.f32.mrf.mxu0
      %v2572 = vadd.f32 %v2510, %v2571
      %2573 = vmatmul.bf16.gmra.mxu0 %v2477
      %v2574 = vpop.f32.mrf.mxu0
      %v2575 = vadd.f32 %v2510, %v2574
      %v2576 = vpop.f32.mrf.mxu0
      %v2577 = vadd.f32 %v2510, %v2576
      %2578 = vmatmul.bf16.gmra.mxu0 %v2478
      %v2579 = vpop.f32.mrf.mxu0
      %v2580 = vadd.f32 %v2510, %v2579
      %v2581 = vpop.f32.mrf.mxu0
      %v2582 = vadd.f32 %v2510, %v2581
      %2583 = vmatmul.bf16.gmra.mxu0 %v2479
      %v2584 = vpop.f32.mrf.mxu0
      %v2585 = vadd.f32 %v2510, %v2584
      %v2586 = vpop.f32.mrf.mxu0
      %v2587 = vadd.f32 %v2510, %v2586
      %2588 = vmatmul.bf16.gmra.mxu0 %v2480
      %v2589 = vpop.f32.mrf.mxu0
      %v2590 = vadd.f32 %v2510, %v2589
      %v2591 = vpop.f32.mrf.mxu0
      %v2592 = vadd.f32 %v2510, %v2591
      %2593 = vmatmul.bf16.gmra.mxu0 %v2481
      %v2594 = vpop.f32.mrf.mxu0
      %v2595 = vadd.f32 %v2510, %v2594
      %v2596 = vpop.f32.mrf.mxu0
      %v2597 = vadd.f32 %v2510, %v2596
      %2598 = vmatmul.bf16.gmra.mxu0 %v2482
      %v2599 = vpop.f32.mrf.mxu0
      %v2600 = vadd.f32 %v2510, %v2599
      %v2601 = vpop.f32.mrf.mxu0
      %v2602 = vadd.f32 %v2510, %v2601
      %2603 = vmatmul.bf16.gmra.mxu0 %v2483
      %v2604 = vpop.f32.mrf.mxu0
      %v2605 = vadd.f32 %v2510, %v2604
      %v2606 = vpop.f32.mrf.mxu0
      %v2607 = vadd.f32 %v2510, %v2606
      %2608 = vmatmul.bf16.gmra.mxu0 %v2484
      %v2609 = vpop.f32.mrf.mxu0
      %v2610 = vadd.f32 %v2510, %v2609
      %v2611 = vpop.f32.mrf.mxu0
      %v2612 = vadd.f32 %v2510, %v2611
      %2613 = vmatmul.bf16.gmra.mxu0 %v2485
      %v2614 = vpop.f32.mrf.mxu0
      %v2615 = vadd.f32 %v2510, %v2614
      %v2616 = vpop.f32.mrf.mxu0
      %v2617 = vadd.f32 %v2510, %v2616
      %2618 = vmatmul.bf16.gmra.mxu0 %v2486
      %v2619 = vpop.f32.mrf.mxu0
      %v2620 = vadd.f32 %v2510, %v2619
      %v2621 = vpop.f32.mrf.mxu0
      %v2622 = vadd.f32 %v2510, %v2621
      %2623 = vmatmul.bf16.gmra.mxu0 %v2487
      %v2624 = vpop.f32.mrf.mxu0
      %v2625 = vadd.f32 %v2510, %v2624
      %v2626 = vpop.f32.mrf.mxu0
      %v2627 = vadd.f32 %v2510, %v2626
      %2628 = vmatmul.bf16.gmra.mxu0 %v2488
      %v2629 = vpop.f32.mrf.mxu0
      %v2630 = vadd.f32 %v2510, %v2629
      %v2631 = vpop.f32.mrf.mxu0
      %v2632 = vadd.f32 %v2510, %v2631
      %2633 = vmatmul.bf16.gmra.mxu0 %v2489
      %v2634 = vpop.f32.mrf.mxu0
      %v2635 = vadd.f32 %v2510, %v2634
      %v2636 = vpop.f32.mrf.mxu0
      %v2637 = vadd.f32 %v2510, %v2636
      %2638 = vmatmul.bf16.gmra.mxu0 %v2490
      %v2639 = vpop.f32.mrf.mxu0
      %v2640 = vadd.f32 %v2510, %v2639
      %v2641 = vpop.f32.mrf.mxu0
      %v2642 = vadd.f32 %v2510, %v2641
      %2643 = vmatmul.bf16.gmra.mxu0 %v2491
      %v2644 = vpop.f32.mrf.mxu0
      %v2645 = vadd.f32 %v2510, %v2644
      %v2646 = vpop.f32.mrf.mxu0
      %v2647 = vadd.f32 %v2510, %v2646
      %2648 = vdwg.mxu0
      %v2649 = vadd.f32 %v752, %v2570
      %v2650 = vadd.f32 %v754, %v2572
      %v2651 = vadd.f32 %v757, %v2575
      %v2652 = vadd.f32 %v759, %v2577
      %v2653 = vadd.f32 %v762, %v2580
      %v2654 = vadd.f32 %v764, %v2582
      %v2655 = vadd.f32 %v767, %v2585
      %v2656 = vadd.f32 %v769, %v2587
      %v2657 = vadd.f32 %v772, %v2590
      %v2658 = vadd.f32 %v774, %v2592
      %v2659 = vadd.f32 %v777, %v2595
      %v2660 = vadd.f32 %v779, %v2597
      %v2661 = vadd.f32 %v782, %v2600
      %v2662 = vadd.f32 %v784, %v2602
      %v2663 = vadd.f32 %v787, %v2605
      %v2664 = vadd.f32 %v789, %v2607
      %v2665 = vadd.f32 %v792, %v2610
      %v2666 = vadd.f32 %v794, %v2612
      %v2667 = vadd.f32 %v797, %v2615
      %v2668 = vadd.f32 %v799, %v2617
      %v2669 = vadd.f32 %v802, %v2620
      %v2670 = vadd.f32 %v804, %v2622
      %v2671 = vadd.f32 %v807, %v2625
      %v2672 = vadd.f32 %v809, %v2627
      %v2673 = vadd.f32 %v812, %v2630
      %v2674 = vadd.f32 %v814, %v2632
      %v2675 = vadd.f32 %v817, %v2635
      %v2676 = vadd.f32 %v819, %v2637
      %v2677 = vadd.f32 %v822, %v2640
      %v2678 = vadd.f32 %v824, %v2642
      %v2679 = vadd.f32 %v827, %v2645
      %v2680 = vadd.f32 %v829, %v2647
      %v2681 = vpack.c.bf16 %v2650, %v2649
      %v2682 = vpack.c.bf16 %v2652, %v2651
      %v2683 = vpack.c.bf16 %v2654, %v2653
      %v2684 = vpack.c.bf16 %v2656, %v2655
      %v2685 = vpack.c.bf16 %v2658, %v2657
      %v2686 = vpack.c.bf16 %v2660, %v2659
      %v2687 = vpack.c.bf16 %v2662, %v2661
      %v2688 = vpack.c.bf16 %v2664, %v2663
      %v2689 = vpack.c.bf16 %v2666, %v2665
      %v2690 = vpack.c.bf16 %v2668, %v2667
      %v2691 = vpack.c.bf16 %v2670, %v2669
      %v2692 = vpack.c.bf16 %v2672, %v2671
      %v2693 = vpack.c.bf16 %v2674, %v2673
      %v2694 = vpack.c.bf16 %v2676, %v2675
      %v2695 = vpack.c.bf16 %v2678, %v2677
      %v2696 = vpack.c.bf16 %v2680, %v2679
      %v2697 = vld [vmem:[%s8] sm:$0xf]
      %v2698 = vld [vmem:[%s8 + $0x4] sm:$0xf]
      %v2699 = vld [vmem:[%s8 + $0x8] sm:$0xf]
      %v2700 = vld [vmem:[%s8 + $0xc] sm:$0xf]
      %v2701 = vld [vmem:[%s8 + $0x10] sm:$0xf]
      %v2702 = vld [vmem:[%s8 + $0x14] sm:$0xf]
      %v2703 = vld [vmem:[%s8 + $0x18] sm:$0xf]
      %v2704 = vld [vmem:[%s8 + $0x1c] sm:$0xf]
      %v2705 = vld [vmem:[%s8 + $0x20] sm:$0xf]
      %v2706 = vld [vmem:[%s8 + $0x24] sm:$0xf]
      %v2707 = vld [vmem:[%s8 + $0x28] sm:$0xf]
      %v2708 = vld [vmem:[%s8 + $0x2c] sm:$0xf]
      %v2709 = vld [vmem:[%s8 + $0x30] sm:$0xf]
      %v2710 = vld [vmem:[%s8 + $0x34] sm:$0xf]
      %v2711 = vld [vmem:[%s8 + $0x38] sm:$0xf]
      %v2712 = vld [vmem:[%s8 + $0x3c] sm:$0xf]
      %v2713 = vld [vmem:[%s450] sm:$0xff]
      %v2714 = vld [vmem:[%s450 + $0x8] sm:$0xff]
      %v2715 = vld [vmem:[%s450 + $0x10] sm:$0xff]
      %v2716 = vld [vmem:[%s450 + $0x18] sm:$0xff]
      %v2717 = vld [vmem:[%s450 + $0x20] sm:$0xff]
      %v2718 = vld [vmem:[%s450 + $0x28] sm:$0xff]
      %v2719 = vld [vmem:[%s450 + $0x30] sm:$0xff]
      %v2720 = vld [vmem:[%s450 + $0x38] sm:$0xff]
      %v2721 = vld [vmem:[%s450 + $0x40] sm:$0xff]
      %v2722 = vld [vmem:[%s450 + $0x48] sm:$0xff]
      %v2723 = vld [vmem:[%s450 + $0x50] sm:$0xff]
      %v2724 = vld [vmem:[%s450 + $0x58] sm:$0xff]
      %v2725 = vld [vmem:[%s450 + $0x60] sm:$0xff]
      %v2726 = vld [vmem:[%s450 + $0x68] sm:$0xff]
      %v2727 = vld [vmem:[%s450 + $0x70] sm:$0xff]
      %v2728 = vld [vmem:[%s450 + $0x78] sm:$0xff]
      %v2729 = vld [vmem:[%s450 + $0x80] sm:$0xff]
      %v2730 = vld [vmem:[%s450 + $0x88] sm:$0xff]
      %v2731 = vld [vmem:[%s450 + $0x90] sm:$0xff]
      %v2732 = vld [vmem:[%s450 + $0x98] sm:$0xff]
      %v2733 = vld [vmem:[%s450 + $0xa0] sm:$0xff]
      %v2734 = vld [vmem:[%s450 + $0xa8] sm:$0xff]
      %v2735 = vld [vmem:[%s450 + $0xb0] sm:$0xff]
      %v2736 = vld [vmem:[%s450 + $0xb8] sm:$0xff]
      %v2737 = vld [vmem:[%s450 + $0xc0] sm:$0xff]
      %v2738 = vld [vmem:[%s450 + $0xc8] sm:$0xff]
      %v2739 = vld [vmem:[%s450 + $0xd0] sm:$0xff]
      %v2740 = vld [vmem:[%s450 + $0xd8] sm:$0xff]
      %v2741 = vld [vmem:[%s450 + $0xe0] sm:$0xff]
      %v2742 = vld [vmem:[%s450 + $0xe8] sm:$0xff]
      %v2743 = vld [vmem:[%s450 + $0xf0] sm:$0xff]
      %v2744 = vld [vmem:[%s450 + $0xf8] sm:$0xff]
      %v2745 = vld [vmem:[%s9] sm:$0x1]
      %2747 = vset.pattern.permute.xlu0 0
      %2748 = vperm.xlu0 %2747, %v2713
      %v2749 = vpop.permute.xlu0 %2748
      %2752 = vset.pattern.permute.xlu0 0
      %2753 = vperm.xlu0 %2752, %v2714
      %v2754 = vpop.permute.xlu0 %2753
      %2757 = vset.pattern.permute.xlu0 0
      %2758 = vperm.xlu0 %2757, %v2715
      %v2759 = vpop.permute.xlu0 %2758
      %2762 = vset.pattern.permute.xlu0 0
      %2763 = vperm.xlu0 %2762, %v2716
      %v2764 = vpop.permute.xlu0 %2763
      %2767 = vset.pattern.permute.xlu0 0
      %2768 = vperm.xlu0 %2767, %v2717
      %v2769 = vpop.permute.xlu0 %2768
      %2772 = vset.pattern.permute.xlu0 0
      %2773 = vperm.xlu0 %2772, %v2718
      %v2774 = vpop.permute.xlu0 %2773
      %2777 = vset.pattern.permute.xlu0 0
      %2778 = vperm.xlu0 %2777, %v2719
      %v2779 = vpop.permute.xlu0 %2778
      %2782 = vset.pattern.permute.xlu0 0
      %2783 = vperm.xlu0 %2782, %v2720
      %v2784 = vpop.permute.xlu0 %2783
      %2787 = vset.pattern.permute.xlu0 0
      %2788 = vperm.xlu0 %2787, %v2721
      %v2789 = vpop.permute.xlu0 %2788
      %2792 = vset.pattern.permute.xlu0 0
      %2793 = vperm.xlu0 %2792, %v2722
      %v2794 = vpop.permute.xlu0 %2793
      %2797 = vset.pattern.permute.xlu0 0
      %2798 = vperm.xlu0 %2797, %v2723
      %v2799 = vpop.permute.xlu0 %2798
      %2802 = vset.pattern.permute.xlu0 0
      %2803 = vperm.xlu0 %2802, %v2724
      %v2804 = vpop.permute.xlu0 %2803
      %2807 = vset.pattern.permute.xlu0 0
      %2808 = vperm.xlu0 %2807, %v2725
      %v2809 = vpop.permute.xlu0 %2808
      %2812 = vset.pattern.permute.xlu0 0
      %2813 = vperm.xlu0 %2812, %v2726
      %v2814 = vpop.permute.xlu0 %2813
      %2817 = vset.pattern.permute.xlu0 0
      %2818 = vperm.xlu0 %2817, %v2727
      %v2819 = vpop.permute.xlu0 %2818
      %2822 = vset.pattern.permute.xlu0 0
      %2823 = vperm.xlu0 %2822, %v2728
      %v2824 = vpop.permute.xlu0 %2823
      %2827 = vset.pattern.permute.xlu0 0
      %2828 = vperm.xlu0 %2827, %v2729
      %v2829 = vpop.permute.xlu0 %2828
      %2832 = vset.pattern.permute.xlu0 0
      %2833 = vperm.xlu0 %2832, %v2730
      %v2834 = vpop.permute.xlu0 %2833
      %2837 = vset.pattern.permute.xlu0 0
      %2838 = vperm.xlu0 %2837, %v2731
      %v2839 = vpop.permute.xlu0 %2838
      %2842 = vset.pattern.permute.xlu0 0
      %2843 = vperm.xlu0 %2842, %v2732
      %v2844 = vpop.permute.xlu0 %2843
      %2847 = vset.pattern.permute.xlu0 0
      %2848 = vperm.xlu0 %2847, %v2733
      %v2849 = vpop.permute.xlu0 %2848
      %2852 = vset.pattern.permute.xlu0 0
      %2853 = vperm.xlu0 %2852, %v2734
      %v2854 = vpop.permute.xlu0 %2853
      %2857 = vset.pattern.permute.xlu0 0
      %2858 = vperm.xlu0 %2857, %v2735
      %v2859 = vpop.permute.xlu0 %2858
      %2862 = vset.pattern.permute.xlu0 0
      %2863 = vperm.xlu0 %2862, %v2736
      %v2864 = vpop.permute.xlu0 %2863
      %2867 = vset.pattern.permute.xlu0 0
      %2868 = vperm.xlu0 %2867, %v2737
      %v2869 = vpop.permute.xlu0 %2868
      %2872 = vset.pattern.permute.xlu0 0
      %2873 = vperm.xlu0 %2872, %v2738
      %v2874 = vpop.permute.xlu0 %2873
      %2877 = vset.pattern.permute.xlu0 0
      %2878 = vperm.xlu0 %2877, %v2739
      %v2879 = vpop.permute.xlu0 %2878
      %2882 = vset.pattern.permute.xlu0 0
      %2883 = vperm.xlu0 %2882, %v2740
      %v2884 = vpop.permute.xlu0 %2883
      %2887 = vset.pattern.permute.xlu0 0
      %2888 = vperm.xlu0 %2887, %v2741
      %v2889 = vpop.permute.xlu0 %2888
      %2892 = vset.pattern.permute.xlu0 0
      %2893 = vperm.xlu0 %2892, %v2742
      %v2894 = vpop.permute.xlu0 %2893
      %2897 = vset.pattern.permute.xlu0 0
      %2898 = vperm.xlu0 %2897, %v2743
      %v2899 = vpop.permute.xlu0 %2898
      %2902 = vset.pattern.permute.xlu0 0
      %2903 = vperm.xlu0 %2902, %v2744
      %v2904 = vpop.permute.xlu0 %2903
      %v2907 = vperm.slane %v2745, 0
      %v2909 = vmul.f32 %v2749, %v2907
      %v2910 = vmul.f32 %v2754, %v2907
      %v2911 = vmul.f32 %v2759, %v2907
      %v2912 = vmul.f32 %v2764, %v2907
      %v2913 = vmul.f32 %v2769, %v2907
      %v2914 = vmul.f32 %v2774, %v2907
      %v2915 = vmul.f32 %v2779, %v2907
      %v2916 = vmul.f32 %v2784, %v2907
      %v2917 = vmul.f32 %v2789, %v2907
      %v2918 = vmul.f32 %v2794, %v2907
      %v2919 = vmul.f32 %v2799, %v2907
      %v2920 = vmul.f32 %v2804, %v2907
      %v2921 = vmul.f32 %v2809, %v2907
      %v2922 = vmul.f32 %v2814, %v2907
      %v2923 = vmul.f32 %v2819, %v2907
      %v2924 = vmul.f32 %v2824, %v2907
      %v2925 = vmul.f32 %v2829, %v2907
      %v2926 = vmul.f32 %v2834, %v2907
      %v2927 = vmul.f32 %v2839, %v2907
      %v2928 = vmul.f32 %v2844, %v2907
      %v2929 = vmul.f32 %v2849, %v2907
      %v2930 = vmul.f32 %v2854, %v2907
      %v2931 = vmul.f32 %v2859, %v2907
      %v2932 = vmul.f32 %v2864, %v2907
      %v2933 = vmul.f32 %v2869, %v2907
      %v2934 = vmul.f32 %v2874, %v2907
      %v2935 = vmul.f32 %v2879, %v2907
      %v2936 = vmul.f32 %v2884, %v2907
      %v2937 = vmul.f32 %v2889, %v2907
      %v2938 = vmul.f32 %v2894, %v2907
      %v2939 = vmul.f32 %v2899, %v2907
      %v2940 = vmul.f32 %v2904, %v2907
      %v2957 = vunpack.c.l.b16 %v2697
      %v2958 = vunpack.c.l.b16 %v2698
      %v2959 = vunpack.c.l.b16 %v2699
      %v2960 = vunpack.c.l.b16 %v2700
      %v2961 = vunpack.c.l.b16 %v2701
      %v2962 = vunpack.c.l.b16 %v2702
      %v2963 = vunpack.c.l.b16 %v2703
      %v2964 = vunpack.c.l.b16 %v2704
      %v2965 = vunpack.c.l.b16 %v2705
      %v2966 = vunpack.c.l.b16 %v2706
      %v2967 = vunpack.c.l.b16 %v2707
      %v2968 = vunpack.c.l.b16 %v2708
      %v2969 = vunpack.c.l.b16 %v2709
      %v2970 = vunpack.c.l.b16 %v2710
      %v2971 = vunpack.c.l.b16 %v2711
      %v2972 = vunpack.c.l.b16 %v2712
      %v2973 = vpack.c.b16 %v2958, %v2957
      %v2974 = vpack.c.b16 %v2960, %v2959
      %v2975 = vpack.c.b16 %v2962, %v2961
      %v2976 = vpack.c.b16 %v2964, %v2963
      %v2977 = vpack.c.b16 %v2966, %v2965
      %v2978 = vpack.c.b16 %v2968, %v2967
      %v2979 = vpack.c.b16 %v2970, %v2969
      %v2980 = vpack.c.b16 %v2972, %v2971
      %2989 = vmatpush.bf16.msra.mxu0 %v2980
      %2990 = vmatpush.bf16.msra.mxu0 %v2979
      %2991 = vmatpush.bf16.msra.mxu0 %v2978
      %2992 = vmatpush.bf16.msra.mxu0 %v2977
      %2993 = vmatpush.bf16.msra.mxu0 %v2976
      %2994 = vmatpush.bf16.msra.mxu0 %v2975
      %2995 = vmatpush.bf16.msra.mxu0 %v2974
      %2996 = vmatpush.bf16.msra.mxu0 %v2973
      %2997 = vmatmul.bf16.gmra.mxu0 %v2681
      %v2998 = vpop.f32.mrf.mxu0
      %v2999 = vadd.f32 %v2909, %v2998
      %v3000 = vpop.f32.mrf.mxu0
      %v3001 = vadd.f32 %v2910, %v3000
      %3002 = vmatmul.bf16.gmra.mxu0 %v2682
      %v3003 = vpop.f32.mrf.mxu0
      %v3004 = vadd.f32 %v2911, %v3003
      %v3005 = vpop.f32.mrf.mxu0
      %v3006 = vadd.f32 %v2912, %v3005
      %3007 = vmatmul.bf16.gmra.mxu0 %v2683
      %v3008 = vpop.f32.mrf.mxu0
      %v3009 = vadd.f32 %v2913, %v3008
      %v3010 = vpop.f32.mrf.mxu0
      %v3011 = vadd.f32 %v2914, %v3010
      %3012 = vmatmul.bf16.gmra.mxu0 %v2684
      %v3013 = vpop.f32.mrf.mxu0
      %v3014 = vadd.f32 %v2915, %v3013
      %v3015 = vpop.f32.mrf.mxu0
      %v3016 = vadd.f32 %v2916, %v3015
      %3017 = vmatmul.bf16.gmra.mxu0 %v2685
      %v3018 = vpop.f32.mrf.mxu0
      %v3019 = vadd.f32 %v2917, %v3018
      %v3020 = vpop.f32.mrf.mxu0
      %v3021 = vadd.f32 %v2918, %v3020
      %3022 = vmatmul.bf16.gmra.mxu0 %v2686
      %v3023 = vpop.f32.mrf.mxu0
      %v3024 = vadd.f32 %v2919, %v3023
      %v3025 = vpop.f32.mrf.mxu0
      %v3026 = vadd.f32 %v2920, %v3025
      %3027 = vmatmul.bf16.gmra.mxu0 %v2687
      %v3028 = vpop.f32.mrf.mxu0
      %v3029 = vadd.f32 %v2921, %v3028
      %v3030 = vpop.f32.mrf.mxu0
      %v3031 = vadd.f32 %v2922, %v3030
      %3032 = vmatmul.bf16.gmra.mxu0 %v2688
      %v3033 = vpop.f32.mrf.mxu0
      %v3034 = vadd.f32 %v2923, %v3033
      %v3035 = vpop.f32.mrf.mxu0
      %v3036 = vadd.f32 %v2924, %v3035
      %3037 = vmatmul.bf16.gmra.mxu0 %v2689
      %v3038 = vpop.f32.mrf.mxu0
      %v3039 = vadd.f32 %v2925, %v3038
      %v3040 = vpop.f32.mrf.mxu0
      %v3041 = vadd.f32 %v2926, %v3040
      %3042 = vmatmul.bf16.gmra.mxu0 %v2690
      %v3043 = vpop.f32.mrf.mxu0
      %v3044 = vadd.f32 %v2927, %v3043
      %v3045 = vpop.f32.mrf.mxu0
      %v3046 = vadd.f32 %v2928, %v3045
      %3047 = vmatmul.bf16.gmra.mxu0 %v2691
      %v3048 = vpop.f32.mrf.mxu0
      %v3049 = vadd.f32 %v2929, %v3048
      %v3050 = vpop.f32.mrf.mxu0
      %v3051 = vadd.f32 %v2930, %v3050
      %3052 = vmatmul.bf16.gmra.mxu0 %v2692
      %v3053 = vpop.f32.mrf.mxu0
      %v3054 = vadd.f32 %v2931, %v3053
      %v3055 = vpop.f32.mrf.mxu0
      %v3056 = vadd.f32 %v2932, %v3055
      %3057 = vmatmul.bf16.gmra.mxu0 %v2693
      %v3058 = vpop.f32.mrf.mxu0
      %v3059 = vadd.f32 %v2933, %v3058
      %v3060 = vpop.f32.mrf.mxu0
      %v3061 = vadd.f32 %v2934, %v3060
      %3062 = vmatmul.bf16.gmra.mxu0 %v2694
      %v3063 = vpop.f32.mrf.mxu0
      %v3064 = vadd.f32 %v2935, %v3063
      %v3065 = vpop.f32.mrf.mxu0
      %v3066 = vadd.f32 %v2936, %v3065
      %3067 = vmatmul.bf16.gmra.mxu0 %v2695
      %v3068 = vpop.f32.mrf.mxu0
      %v3069 = vadd.f32 %v2937, %v3068
      %v3070 = vpop.f32.mrf.mxu0
      %v3071 = vadd.f32 %v2938, %v3070
      %3072 = vmatmul.bf16.gmra.mxu0 %v2696
      %v3073 = vpop.f32.mrf.mxu0
      %v3074 = vadd.f32 %v2939, %v3073
      %v3075 = vpop.f32.mrf.mxu0
      %v3076 = vadd.f32 %v2940, %v3075
      %3077 = vdwg.mxu0
      %v3078 = vld [vmem:[%s10] sm:$0x1]
      %v3080 = vperm.slane %v3078, 0
      %v3082 = vadd.f32 %v2999, %v3080
      %v3083 = vadd.f32 %v3001, %v3080
      %v3084 = vadd.f32 %v3004, %v3080
      %v3085 = vadd.f32 %v3006, %v3080
      %v3086 = vadd.f32 %v3009, %v3080
      %v3087 = vadd.f32 %v3011, %v3080
      %v3088 = vadd.f32 %v3014, %v3080
      %v3089 = vadd.f32 %v3016, %v3080
      %v3090 = vadd.f32 %v3019, %v3080
      %v3091 = vadd.f32 %v3021, %v3080
      %v3092 = vadd.f32 %v3024, %v3080
      %v3093 = vadd.f32 %v3026, %v3080
      %v3094 = vadd.f32 %v3029, %v3080
      %v3095 = vadd.f32 %v3031, %v3080
      %v3096 = vadd.f32 %v3034, %v3080
      %v3097 = vadd.f32 %v3036, %v3080
      %v3098 = vadd.f32 %v3039, %v3080
      %v3099 = vadd.f32 %v3041, %v3080
      %v3100 = vadd.f32 %v3044, %v3080
      %v3101 = vadd.f32 %v3046, %v3080
      %v3102 = vadd.f32 %v3049, %v3080
      %v3103 = vadd.f32 %v3051, %v3080
      %v3104 = vadd.f32 %v3054, %v3080
      %v3105 = vadd.f32 %v3056, %v3080
      %v3106 = vadd.f32 %v3059, %v3080
      %v3107 = vadd.f32 %v3061, %v3080
      %v3108 = vadd.f32 %v3064, %v3080
      %v3109 = vadd.f32 %v3066, %v3080
      %v3110 = vadd.f32 %v3069, %v3080
      %v3111 = vadd.f32 %v3071, %v3080
      %v3112 = vadd.f32 %v3074, %v3080
      %v3113 = vadd.f32 %v3076, %v3080
      %v3114 = vpack.c.bf16 %v3082, %v3082
      %v3115 = vpack.c.bf16 %v3083, %v3083
      %v3116 = vpack.c.bf16 %v3084, %v3084
      %v3117 = vpack.c.bf16 %v3085, %v3085
      %v3118 = vpack.c.bf16 %v3086, %v3086
      %v3119 = vpack.c.bf16 %v3087, %v3087
      %v3120 = vpack.c.bf16 %v3088, %v3088
      %v3121 = vpack.c.bf16 %v3089, %v3089
      %v3122 = vpack.c.bf16 %v3090, %v3090
      %v3123 = vpack.c.bf16 %v3091, %v3091
      %v3124 = vpack.c.bf16 %v3092, %v3092
      %v3125 = vpack.c.bf16 %v3093, %v3093
      %v3126 = vpack.c.bf16 %v3094, %v3094
      %v3127 = vpack.c.bf16 %v3095, %v3095
      %v3128 = vpack.c.bf16 %v3096, %v3096
      %v3129 = vpack.c.bf16 %v3097, %v3097
      %v3130 = vpack.c.bf16 %v3098, %v3098
      %v3131 = vpack.c.bf16 %v3099, %v3099
      %v3132 = vpack.c.bf16 %v3100, %v3100
      %v3133 = vpack.c.bf16 %v3101, %v3101
      %v3134 = vpack.c.bf16 %v3102, %v3102
      %v3135 = vpack.c.bf16 %v3103, %v3103
      %v3136 = vpack.c.bf16 %v3104, %v3104
      %v3137 = vpack.c.bf16 %v3105, %v3105
      %v3138 = vpack.c.bf16 %v3106, %v3106
      %v3139 = vpack.c.bf16 %v3107, %v3107
      %v3140 = vpack.c.bf16 %v3108, %v3108
      %v3141 = vpack.c.bf16 %v3109, %v3109
      %v3142 = vpack.c.bf16 %v3110, %v3110
      %v3143 = vpack.c.bf16 %v3111, %v3111
      %v3144 = vpack.c.bf16 %v3112, %v3112
      %v3145 = vpack.c.bf16 %v3113, %v3113
      %3146 = vst [vmem:[%s460] sm:$0xf] %v3114
      %3147 = vst [vmem:[%s460 + $0x4] sm:$0xf] %v3115
      %3148 = vst [vmem:[%s460 + $0x8] sm:$0xf] %v3116
      %3149 = vst [vmem:[%s460 + $0xc] sm:$0xf] %v3117
      %3150 = vst [vmem:[%s460 + $0x10] sm:$0xf] %v3118
      %3151 = vst [vmem:[%s460 + $0x14] sm:$0xf] %v3119
      %3152 = vst [vmem:[%s460 + $0x18] sm:$0xf] %v3120
      %3153 = vst [vmem:[%s460 + $0x1c] sm:$0xf] %v3121
      %3154 = vst [vmem:[%s460 + $0x20] sm:$0xf] %v3122
      %3155 = vst [vmem:[%s460 + $0x24] sm:$0xf] %v3123
      %3156 = vst [vmem:[%s460 + $0x28] sm:$0xf] %v3124
      %3157 = vst [vmem:[%s460 + $0x2c] sm:$0xf] %v3125
      %3158 = vst [vmem:[%s460 + $0x30] sm:$0xf] %v3126
      %3159 = vst [vmem:[%s460 + $0x34] sm:$0xf] %v3127
      %3160 = vst [vmem:[%s460 + $0x38] sm:$0xf] %v3128
      %3161 = vst [vmem:[%s460 + $0x3c] sm:$0xf] %v3129
      %3162 = vst [vmem:[%s460 + $0x40] sm:$0xf] %v3130
      %3163 = vst [vmem:[%s460 + $0x44] sm:$0xf] %v3131
      %3164 = vst [vmem:[%s460 + $0x48] sm:$0xf] %v3132
      %3165 = vst [vmem:[%s460 + $0x4c] sm:$0xf] %v3133
      %3166 = vst [vmem:[%s460 + $0x50] sm:$0xf] %v3134
      %3167 = vst [vmem:[%s460 + $0x54] sm:$0xf] %v3135
      %3168 = vst [vmem:[%s460 + $0x58] sm:$0xf] %v3136
      %3169 = vst [vmem:[%s460 + $0x5c] sm:$0xf] %v3137
      %3170 = vst [vmem:[%s460 + $0x60] sm:$0xf] %v3138
      %3171 = vst [vmem:[%s460 + $0x64] sm:$0xf] %v3139
      %3172 = vst [vmem:[%s460 + $0x68] sm:$0xf] %v3140
      %3173 = vst [vmem:[%s460 + $0x6c] sm:$0xf] %v3141
      %3174 = vst [vmem:[%s460 + $0x70] sm:$0xf] %v3142
      %3175 = vst [vmem:[%s460 + $0x74] sm:$0xf] %v3143
      %3176 = vst [vmem:[%s460 + $0x78] sm:$0xf] %v3144
      %3177 = vst [vmem:[%s460 + $0x7c] sm:$0xf] %v3145
      %s3178 = smul.u32 32, %s27
      %p3179 = scmp.lt.s32.totalorder %s26, 1
      %s3180 = scalar_select %p3179, %s26, 1
      %p3181 = scmp.lt.s32.totalorder %s3178, 63
      %s3182 = scalar_select %p3181, %s3178, 63
      %s3183 = smul.addr %s3180, 64
      %s3184 = sadd.s32 %s3182, %s3183
      %s3185 = smul.addr %s3184, 4
      %s3186 = scalar_lea.vmem %s11, %s3185
      // Predicated region
      $region69: #{token_classification_forward.1} parent=63 // pred_check
        %p3187 = pneg %p299
      $region70: #{token_classification_forward.1} parent=63 // pred_check_branch
        %3189 = sbr.rel (%p3187) target = $region72
      $region71: #{token_classification_forward.1} parent=63 // pred_region
        %s3190 = smul.u32 32, %s27
      $region72: #{token_classification_forward.1} parent=63 // pred_fallthru
        _
    $region64: #{token_classification_forward.1} parent=5 // pred_fallthru
      _
    %p3191 = scmp.le.s32.totalorder 2, %s17
    // Predicated region
    $region73: #{token_classification_forward.1} parent=5 // pred_check
      %p3192 = pneg %p3191
    $region74: #{token_classification_forward.1} parent=5 // pred_check_branch
      %3194 = sbr.rel (%p3192) target = $region76
    $region75: #{token_classification_forward.1} parent=5 // pred_region
      %s3195 = ssub.s32 %s17, 2
      // Predicated region
      $region77: #{token_classification_forward.1} parent=75 // pred_check
        %p3196 = pneg %p305
      $region78: #{token_classification_forward.1} parent=75 // pred_check_branch
        %3198 = sbr.rel (%p3196) target = $region80
      $region79: #{token_classification_forward.1} parent=75 // pred_region
        %s3199 = smul.u32 32, %s29
        %p3200 = scmp.lt.s32.totalorder %s28, 1
        %s3201 = scalar_select %p3200, %s28, 1
        %p3202 = scmp.lt.s32.totalorder %s3199, 63
        %s3203 = scalar_select %p3202, %s3199, 63
        %s3204 = smul.addr %s3201, 64
        %s3205 = sadd.s32 %s3203, %s3204
        %s3206 = smul.addr %s3205, 4
        %s3207 = scalar_lea.vmem %s11, %s3206
      $region80: #{token_classification_forward.1} parent=75 // pred_fallthru
        _
    $region76: #{token_classification_forward.1} parent=5 // pred_fallthru
      _
  $region6: #{token_classification_forward.1} parent=0 // loop_footer
    %s21 = sadd.s32 1, %s17
  $region7: #{token_classification_forward.1} parent=0 // loop_footer_branch
    %16 = sbr.rel target = $region3
  $region8: #{token_classification_forward.1} parent=0 // loop_exit
    _

</llo_original>
